<compile_context>
chip_gen: v6e
topology: v6e:2x2x1
jax: 0.10.0
libtpu: 0.0.40
codegen_flags: <defaults>
</compile_context>

<pallas_src>
import math
import functools

import jax
import jax.numpy as jnp
from jax.experimental import pallas as pl
from jax.experimental.pallas import tpu as pltpu


# ------------------------------ small helpers -------------------------------

def _layernorm(v, g, b, eps):
    # PyTorch-style (biased variance) LayerNorm over the last dim, f32 stats.
    mu = jnp.mean(v, axis=-1, keepdims=True)
    var = jnp.mean(jnp.square(v - mu), axis=-1, keepdims=True)
    return (v - mu) * jax.lax.rsqrt(var + eps) * g + b


# ------------------------------ fused kernel --------------------------------

def _fused_forward_kernel(*refs, nhead, eps, scale, has_fc):
    # grid = (B, L): one batch element per outer step, one encoder layer per
    # inner step.  xs_ref (VMEM scratch) carries the (S, D) activation across
    # the layer axis.
    if has_fc:
        (x_ref, bias_ref, pe_ref, fcw_ref, fcb_ref, *rest) = refs
    else:
        (x_ref, bias_ref, pe_ref, *rest) = refs
        fcw_ref = fcb_ref = None
    (inw_ref, inb_ref, outw_ref, outb_ref,
     n1g_ref, n1b_ref, l1w_ref, l1b_ref, l2w_ref, l2b_ref,
     n2g_ref, n2b_ref,
     fng_ref, fnb_ref, hw_ref, hb_ref,
     o_ref, xs_ref) = rest

    layer = pl.program_id(1)
    num_layers = pl.num_programs(1)

    # ---- preprocess (only at layer 0): optional fc -> *sqrt(D) -> + PE ----
    @pl.when(layer == 0)
    def _():
        x0 = x_ref[0]                                       # (S, d_in) f32
        if has_fc:
            x0 = (jnp.dot(x0.astype(jnp.bfloat16), fcw_ref[...],
                          preferred_element_type=jnp.float32) + fcb_ref[...])
        xs_ref[...] = x0 * scale + pe_ref[...]

    x = xs_ref[...]                                         # (S, D) f32
    S, D = x.shape
    Dh = D // nhead
    bias = bias_ref[0]                                      # (1, S) key-pad bias

    # ---- self attention (1/sqrt(Dh) already folded into q weights) ----
    xb = x.astype(jnp.bfloat16)
    qkv = (jnp.dot(xb, inw_ref[0], preferred_element_type=jnp.float32)
           + inb_ref[0])                                    # (S, 3D) f32
    out_w = outw_ref[0]                                     # (D, D) bf16

    sa = jnp.zeros((S, D), jnp.float32)
    for h in range(nhead):                                  # static unroll
        q = qkv[:, h * Dh:(h + 1) * Dh].astype(jnp.bfloat16)
        k = qkv[:, D + h * Dh:D + (h + 1) * Dh].astype(jnp.bfloat16)
        v = qkv[:, 2 * D + h * Dh:2 * D + (h + 1) * Dh].astype(jnp.bfloat16)
        s = jax.lax.dot_general(q, k, (((1,), (1,)), ((), ())),
                                preferred_element_type=jnp.float32)   # (S, S)
        s = s + bias                                        # additive key-pad bias
        s = s - jnp.max(s, axis=-1, keepdims=True)
        p = jnp.exp(s)
        p = p * pl.reciprocal(jnp.sum(p, axis=-1, keepdims=True), approx=False)
        ctx = jnp.dot(p.astype(jnp.bfloat16), v,
                      preferred_element_type=jnp.float32)   # (S, Dh)
        # fold out_proj per head -> no lane-axis concat
        sa = sa + jnp.dot(ctx.astype(jnp.bfloat16), out_w[h * Dh:(h + 1) * Dh, :],
                          preferred_element_type=jnp.float32)
    sa = sa + outb_ref[0]

    x1 = _layernorm(x + sa, n1g_ref[0], n1b_ref[0], eps)

    # ---- feed-forward (relu); dim_ff intermediate stays in vregs/VMEM ----
    h1 = (jnp.dot(x1.astype(jnp.bfloat16), l1w_ref[0],
                  preferred_element_type=jnp.float32) + l1b_ref[0])
    h1 = jnp.maximum(h1, 0.0)
    ff = (jnp.dot(h1.astype(jnp.bfloat16), l2w_ref[0],
                  preferred_element_type=jnp.float32) + l2b_ref[0])

    x2 = _layernorm(x1 + ff, n2g_ref[0], n2b_ref[0], eps)
    xs_ref[...] = x2

    # ---- classifier head (only at the last layer step) ----
    @pl.when(layer == num_layers - 1)
    def _():
        xn = _layernorm(x2, fng_ref[...], fnb_ref[...], eps)
        logits = (jnp.dot(xn.astype(jnp.bfloat16), hw_ref[...],
                          preferred_element_type=jnp.float32) + hb_ref[...])
        m = jnp.max(logits, axis=-1, keepdims=True)
        lse = jnp.log(jnp.sum(jnp.exp(logits - m), axis=-1, keepdims=True)) + m
        o_ref[0] = logits - lse                             # (S, Cp) lane-dense


# ------------------------- parameters / PE buffer ---------------------------

def make_pe(max_len, d_model):
    # Exactly mirrors the PositionalEncoding buffer construction.
    position = jnp.arange(max_len, dtype=jnp.float32)[:, None]
    div_term = jnp.exp(jnp.arange(0, d_model, 2, dtype=jnp.float32)
                       * (-math.log(10000.0) / d_model))
    pe = jnp.zeros((max_len, d_model), jnp.float32)
    pe = pe.at[:, 0::2].set(jnp.sin(position * div_term))
    cos = jnp.cos(position * div_term)
    if d_model % 2 != 0:
        pe = pe.at[:, 1::2].set(cos[:, :-1])
    else:
        pe = pe.at[:, 1::2].set(cos)
    return pe[:, None, :]   # (max_len, 1, d_model)


def init_params(key, d_in, d_model, num_layers, dim_ff, num_class, fc_before):
    keys = iter(jax.random.split(key, 64))

    def wgt(shape, scale=0.02):          # matmul weights stored bf16 (W.T layout)
        return (jax.random.normal(next(keys), shape, jnp.float32)
                * scale).astype(jnp.bfloat16)

    def vec(shape, scale=0.01):
        return jax.random.normal(next(keys), shape, jnp.float32) * scale

    params = {}
    if fc_before:
        params["fc_w"] = wgt((d_in, d_model))
        params["fc_b"] = vec((d_model,))
    layers = []
    for _ in range(num_layers):
        layers.append({
            "in_proj_w": wgt((d_model, 3 * d_model)),   # (D, 3D) = W.T ; [q|k|v]
            "in_proj_b": vec((3 * d_model,)),
            "out_proj_w": wgt((d_model, d_model)),
            "out_proj_b": vec((d_model,)),
            "lin1_w": wgt((d_model, dim_ff)),
            "lin1_b": vec((dim_ff,)),
            "lin2_w": wgt((dim_ff, d_model)),
            "lin2_b": vec((d_model,)),
            "norm1_g": jnp.ones((d_model,), jnp.float32),
            "norm1_b": jnp.zeros((d_model,), jnp.float32),
            "norm2_g": jnp.ones((d_model,), jnp.float32),
            "norm2_b": jnp.zeros((d_model,), jnp.float32),
        })
    params["layers"] = layers
    params["norm_g"] = jnp.ones((d_model,), jnp.float32)   # final encoder LayerNorm
    params["norm_b"] = jnp.zeros((d_model,), jnp.float32)
    params["out_w"] = wgt((d_model, num_class))
    params["out_b"] = vec((num_class,))
    return params


def prepare_params(params, *, d_model, nhead, num_class, fc_before):
    """One-time (outside jit) weight prep: stack layers on a leading L axis,
    fold 1/sqrt(Dh) into the q block, pad the classifier to 128 lanes."""
    layers = params["layers"]
    Dh = d_model // nhead
    q_scale = 1.0 / math.sqrt(Dh)
    col_scale = jnp.concatenate(
        [jnp.full((d_model,), q_scale, jnp.float32),
         jnp.ones((2 * d_model,), jnp.float32)])

    def stack(name):
        return jnp.stack([lp[name] for lp in layers], axis=0)

    prep = {}
    prep["in_w"] = (stack("in_proj_w").astype(jnp.float32)
                    * col_scale).astype(jnp.bfloat16)          # (L, D, 3D)
    prep["in_b"] = (stack("in_proj_b") * col_scale)[:, None, :]  # (L, 1, 3D)
    prep["out_w"] = stack("out_proj_w")                          # (L, D, D)
    prep["out_b"] = stack("out_proj_b")[:, None, :]
    prep["n1g"] = stack("norm1_g")[:, None, :]
    prep["n1b"] = stack("norm1_b")[:, None, :]
    prep["l1_w"] = stack("lin1_w")                               # (L, D, F)
    prep["l1_b"] = stack("lin1_b")[:, None, :]
    prep["l2_w"] = stack("lin2_w")                               # (L, F, D)
    prep["l2_b"] = stack("lin2_b")[:, None, :]
    prep["n2g"] = stack("norm2_g")[:, None, :]
    prep["n2b"] = stack("norm2_b")[:, None, :]
    prep["fn_g"] = params["norm_g"][None, :]
    prep["fn_b"] = params["norm_b"][None, :]

    # lane-dense classifier head: pad num_class to a multiple of 128; padded
    # classes get zero weights and -1e30 bias so they never affect log_softmax.
    c_pad = max(128, ((num_class + 127) // 128) * 128)
    hw = jnp.zeros((d_model, c_pad), jnp.float32).at[:, :num_class].set(
        params["out_w"].astype(jnp.float32))
    hb = jnp.full((c_pad,), -1e30, jnp.float32).at[:num_class].set(params["out_b"])
    prep["head_w"] = hw.astype(jnp.bfloat16)
    prep["head_b"] = hb[None, :]

    if fc_before:
        prep["fc_w"] = params["fc_w"]
        prep["fc_b"] = params["fc_b"][None, :]
    prep["pe"] = params["pe"]
    return prep


# ------------------------------- forward pass --------------------------------

def encoder_crf_forward(prep, src, mask, *, d_model, nhead, num_class,
                        fc_before, layer_norm_eps=1e-5):
    S, B, d_in = src.shape
    L = prep["in_w"].shape[0]
    Fd = prep["l1_w"].shape[2]
    Cp = prep["head_w"].shape[1]

    # Tiny boundary layout changes only (everything between stays in VMEM).
    # TODO(synk): these could be folded into BlockSpec index maps, but a
    # (.., 1, d) block over the batch-sized middle dim is not (8,128)-tile safe.
    x = jnp.transpose(src.astype(jnp.float32), (1, 0, 2))        # (B, S, d_in)
    pe = prep["pe"][:S, 0, :]                                    # (S, D)
    # key padding -> per-batch additive bias row (B, 1, S).  A hypothetically
    # fully-masked row gives a uniform softmax (PyTorch -inf would give NaN) —
    # unreachable with length-style masks.
    bias = jnp.where(mask, 0.0, -1e30).astype(jnp.float32)[:, None, :]

    per_b = lambda b, l: (b, 0, 0)
    per_l = lambda b, l: (l, 0, 0)
    rep2 = lambda b, l: (0, 0)

    args = [x, bias, pe]
    in_specs = [pl.BlockSpec((1, S, d_in), per_b),
                pl.BlockSpec((1, 1, S), per_b),
                pl.BlockSpec((S, d_model), rep2)]
    if fc_before:
        args += [prep["fc_w"], prep["fc_b"]]
        in_specs += [pl.BlockSpec((d_in, d_model), rep2),
                     pl.BlockSpec((1, d_model), rep2)]
    args += [prep["in_w"], prep["in_b"], prep["out_w"], prep["out_b"],
             prep["n1g"], prep["n1b"],
             prep["l1_w"], prep["l1_b"], prep["l2_w"], prep["l2_b"],
             prep["n2g"], prep["n2b"],
             prep["fn_g"], prep["fn_b"], prep["head_w"], prep["head_b"]]
    in_specs += [
        pl.BlockSpec((1, d_model, 3 * d_model), per_l),   # in_proj w (per layer)
        pl.BlockSpec((1, 1, 3 * d_model), per_l),         # in_proj b
        pl.BlockSpec((1, d_model, d_model), per_l),       # out_proj w
        pl.BlockSpec((1, 1, d_model), per_l),             # out_proj b
        pl.BlockSpec((1, 1, d_model), per_l),             # norm1 g
        pl.BlockSpec((1, 1, d_model), per_l),             # norm1 b
        pl.BlockSpec((1, d_model, Fd), per_l),            # lin1 w
        pl.BlockSpec((1, 1, Fd), per_l),                  # lin1 b
        pl.BlockSpec((1, Fd, d_model), per_l),            # lin2 w
        pl.BlockSpec((1, 1, d_model), per_l),             # lin2 b
        pl.BlockSpec((1, 1, d_model), per_l),             # norm2 g
        pl.BlockSpec((1, 1, d_model), per_l),             # norm2 b
        pl.BlockSpec((1, d_model), rep2),                 # final norm g (resident)
        pl.BlockSpec((1, d_model), rep2),                 # final norm b
        pl.BlockSpec((d_model, Cp), rep2),                # head w (resident)
        pl.BlockSpec((1, Cp), rep2),                      # head b
    ]

    kernel = functools.partial(_fused_forward_kernel, nhead=nhead,
                               eps=layer_norm_eps, scale=math.sqrt(d_model),
                               has_fc=fc_before)
    out = pl.pallas_call(
        kernel,
        grid=(B, L),                                      # B parallel, L arbitrary
        in_specs=in_specs,
        out_specs=pl.BlockSpec((1, S, Cp), per_b),        # constant over L -> resident
        out_shape=jax.ShapeDtypeStruct((B, S, Cp), jnp.float32),
        scratch_shapes=[pltpu.VMEM((S, d_model), jnp.float32)],   # activation carry
        compiler_params=pltpu.CompilerParams(
            dimension_semantics=("parallel", "arbitrary"),
            vmem_limit_bytes=32 * 1024 * 1024),
    )(*args)

    # (B,S,Cp) -> PyTorch's seq-major `view(-1, d_model)` flatten order, then
    # drop the lane padding of the classifier.
    out = jnp.transpose(out, (1, 0, 2)).reshape(S * B, Cp)
    return out[:, :num_class]


# ------------------------- pure-JAX f32 reference ----------------------------

def reference_forward(params, src, mask, *, d_model, nhead, num_class,
                      fc_before, layer_norm_eps=1e-5):
    S, B, _ = src.shape
    Dh = d_model // nhead
    f32 = lambda a: a.astype(jnp.float32)
    x = f32(src)
    if fc_before:
        x = x @ f32(params["fc_w"]) + params["fc_b"]
    x = x * math.sqrt(d_model) + params["pe"][:S]                  # (S, B, D)
    keypad = jnp.logical_not(mask)                                 # (B, S)
    for lp in params["layers"]:
        qkv = x @ f32(lp["in_proj_w"]) + lp["in_proj_b"]
        q = qkv[..., :d_model].reshape(S, B, nhead, Dh)
        k = qkv[..., d_model:2 * d_model].reshape(S, B, nhead, Dh)
        v = qkv[..., 2 * d_model:].reshape(S, B, nhead, Dh)
        scores = jnp.einsum('qbhd,kbhd->bhqk', q, k) / math.sqrt(Dh)
        scores = jnp.where(keypad[:, None, None, :], -1e30, scores)
        p = jax.nn.softmax(scores, axis=-1)
        ctx = jnp.einsum('bhqk,kbhd->qbhd', p, v).reshape(S, B, d_model)
        sa = ctx @ f32(lp["out_proj_w"]) + lp["out_proj_b"]
        x = _layernorm(x + sa, lp["norm1_g"], lp["norm1_b"], layer_norm_eps)
        h = jax.nn.relu(x @ f32(lp["lin1_w"]) + lp["lin1_b"])
        ff = h @ f32(lp["lin2_w"]) + lp["lin2_b"]
        x = _layernorm(x + ff, lp["norm2_g"], lp["norm2_b"], layer_norm_eps)
    x = _layernorm(x, params["norm_g"], params["norm_b"], layer_norm_eps)
    logits = x.reshape(S * B, d_model) @ f32(params["out_w"]) + params["out_b"]
    return jax.nn.log_softmax(logits, axis=-1)


# ----------------------------------- main ------------------------------------

if __name__ == "__main__":
    S, B = 8, 2                   # seq-first layout (batch_first=False)
    d_model_arg = 32              # module's d_model argument
    nhead = 4
    num_encoder_layers = 2
    dim_feedforward = 64
    num_class = 5
    fc_before_encoders = True     # -> effective d_model = 256 (as in set_d_model)
    d_model = 256 if fc_before_encoders else d_model_arg

    key = jax.random.PRNGKey(0)
    k_src, k_param = jax.random.split(key)

    src = jax.random.normal(k_src, (S, B, d_model_arg), jnp.float32)
    lengths = jnp.array([8, 6], dtype=jnp.int32)
    mask = jnp.arange(S)[None, :] < lengths[:, None]          # (B, S) True = valid

    params = init_params(k_param, d_model_arg, d_model,
                         num_encoder_layers, dim_feedforward,
                         num_class, fc_before_encoders)
    params["pe"] = make_pe(300, d_model)
    prep = prepare_params(params, d_model=d_model, nhead=nhead,
                          num_class=num_class, fc_before=fc_before_encoders)

    fwd = jax.jit(functools.partial(encoder_crf_forward,
                                    d_model=d_model, nhead=nhead,
                                    num_class=num_class,
                                    fc_before=fc_before_encoders))
    out = fwd(prep, src, mask)
    jax.block_until_ready(out)

    assert out.shape == (S * B, num_class), out.shape
    assert bool(jnp.all(jnp.isfinite(out)))
    # each row of log_softmax output should exp-sum to 1
    assert bool(jnp.allclose(jnp.sum(jnp.exp(out), axis=1), 1.0, atol=1e-4))
    # compare against a pure-JAX f32 reference (kernel uses bf16 MXU operands)
    ref = reference_forward(params, src, mask, d_model=d_model, nhead=nhead,
                            num_class=num_class, fc_before=fc_before_encoders)
    max_err = float(jnp.max(jnp.abs(out - ref)))
    assert max_err < 0.15, f"kernel vs f32 reference max_err={max_err}"
    print("KERNEL_OK")
</pallas_src>

<mosaic_0001>
module attributes {stable_mosaic.version = 11 : i64} {
  func.func @_fused_forward_kernel(%arg0: i32, %arg1: i32, %arg2: memref<1x8x32xf32, #tpu.memory_space<vmem>>, %arg3: memref<1x1x8xf32, #tpu.memory_space<vmem>>, %arg4: memref<8x256xf32, #tpu.memory_space<vmem>>, %arg5: memref<32x256xbf16, #tpu.memory_space<vmem>>, %arg6: memref<1x256xf32, #tpu.memory_space<vmem>>, %arg7: memref<1x256x768xbf16, #tpu.memory_space<vmem>>, %arg8: memref<1x1x768xf32, #tpu.memory_space<vmem>>, %arg9: memref<1x256x256xbf16, #tpu.memory_space<vmem>>, %arg10: memref<1x1x256xf32, #tpu.memory_space<vmem>>, %arg11: memref<1x1x256xf32, #tpu.memory_space<vmem>>, %arg12: memref<1x1x256xf32, #tpu.memory_space<vmem>>, %arg13: memref<1x256x64xbf16, #tpu.memory_space<vmem>>, %arg14: memref<1x1x64xf32, #tpu.memory_space<vmem>>, %arg15: memref<1x64x256xbf16, #tpu.memory_space<vmem>>, %arg16: memref<1x1x256xf32, #tpu.memory_space<vmem>>, %arg17: memref<1x1x256xf32, #tpu.memory_space<vmem>>, %arg18: memref<1x1x256xf32, #tpu.memory_space<vmem>>, %arg19: memref<1x256xf32, #tpu.memory_space<vmem>>, %arg20: memref<1x256xf32, #tpu.memory_space<vmem>>, %arg21: memref<256x128xbf16, #tpu.memory_space<vmem>>, %arg22: memref<1x128xf32, #tpu.memory_space<vmem>>, %arg23: memref<1x8x128xf32, #tpu.memory_space<vmem>>, %arg24: memref<8x256xf32, #tpu.memory_space<vmem>>) attributes {dimension_semantics = [#tpu.dimension_semantics<parallel>, #tpu.dimension_semantics<arbitrary>], iteration_bounds = array<i64: 2, 2>, scalar_prefetch = 0 : i64, scratch_operands = 1 : i64, tpu.core_type = #tpu.core_type<tc>, window_params = [{transform_indices = @transform_0, window_bounds = array<i64: 1, 8, 32>}, {transform_indices = @transform_1, window_bounds = array<i64: 1, 1, 8>}, {pipeline_mode = #tpu.pipeline_mode<synchronous>, transform_indices = @transform_2, window_bounds = array<i64: 8, 256>}, {pipeline_mode = #tpu.pipeline_mode<synchronous>, transform_indices = @transform_3, window_bounds = array<i64: 32, 256>}, {pipeline_mode = #tpu.pipeline_mode<synchronous>, transform_indices = @transform_4, window_bounds = array<i64: 1, 256>}, {transform_indices = @transform_5, window_bounds = array<i64: 1, 256, 768>}, {transform_indices = @transform_6, window_bounds = array<i64: 1, 1, 768>}, {transform_indices = @transform_7, window_bounds = array<i64: 1, 256, 256>}, {transform_indices = @transform_8, window_bounds = array<i64: 1, 1, 256>}, {transform_indices = @transform_9, window_bounds = array<i64: 1, 1, 256>}, {transform_indices = @transform_10, window_bounds = array<i64: 1, 1, 256>}, {transform_indices = @transform_11, window_bounds = array<i64: 1, 256, 64>}, {transform_indices = @transform_12, window_bounds = array<i64: 1, 1, 64>}, {transform_indices = @transform_13, window_bounds = array<i64: 1, 64, 256>}, {transform_indices = @transform_14, window_bounds = array<i64: 1, 1, 256>}, {transform_indices = @transform_15, window_bounds = array<i64: 1, 1, 256>}, {transform_indices = @transform_16, window_bounds = array<i64: 1, 1, 256>}, {pipeline_mode = #tpu.pipeline_mode<synchronous>, transform_indices = @transform_17, window_bounds = array<i64: 1, 256>}, {pipeline_mode = #tpu.pipeline_mode<synchronous>, transform_indices = @transform_18, window_bounds = array<i64: 1, 256>}, {pipeline_mode = #tpu.pipeline_mode<synchronous>, transform_indices = @transform_19, window_bounds = array<i64: 256, 128>}, {pipeline_mode = #tpu.pipeline_mode<synchronous>, transform_indices = @transform_20, window_bounds = array<i64: 1, 128>}, {transform_indices = @transform_21, window_bounds = array<i64: 1, 8, 128>}]} {
    %c0_i32 = arith.constant 0 : i32
    %0 = arith.cmpi eq, %arg1, %c0_i32 : i32
    %1 = arith.extui %0 : i1 to i32
    %c0_i32_0 = arith.constant 0 : i32
    %2 = arith.cmpi ne, %1, %c0_i32_0 : i32
    scf.if %2 {
      %c0_78 = arith.constant 0 : index
      %c0_79 = arith.constant 0 : index
      %c0_80 = arith.constant 0 : index
      %197 = vector.load %arg2[%c0_78, %c0_79, %c0_80] : memref<1x8x32xf32, #tpu.memory_space<vmem>>, vector<1x8x32xf32>
      %198 = vector.shape_cast %197 : vector<1x8x32xf32> to vector<8x32xf32>
      %199 = arith.truncf %198 : vector<8x32xf32> to vector<8x32xbf16>
      %c0_81 = arith.constant 0 : index
      %c0_82 = arith.constant 0 : index
      %200 = vector.load %arg5[%c0_81, %c0_82] : memref<32x256xbf16, #tpu.memory_space<vmem>>, vector<32x256xbf16>
      %cst_83 = arith.constant dense<0.000000e+00> : vector<8x256xf32>
      %201 = tpu.matmul %199, %200, %cst_83 {dimension_numbers = #tpu.dot_dimension_numbers<[1], [0], [0], [1], [0, 0, 1, 1], [], []>} : vector<8x32xbf16>, vector<32x256xbf16>, vector<8x256xf32> -> vector<8x256xf32>
      %c0_84 = arith.constant 0 : index
      %c0_85 = arith.constant 0 : index
      %202 = vector.load %arg6[%c0_84, %c0_85] : memref<1x256xf32, #tpu.memory_space<vmem>>, vector<1x256xf32>
      %203 = vector.broadcast %202 : vector<1x256xf32> to vector<8x256xf32>
      %204 = arith.addf %201, %203 : vector<8x256xf32>
      %cst_86 = arith.constant 1.600000e+01 : f32
      %205 = vector.broadcast %cst_86 : f32 to vector<8x256xf32>
      %206 = arith.mulf %204, %205 : vector<8x256xf32>
      %c0_87 = arith.constant 0 : index
      %c0_88 = arith.constant 0 : index
      %207 = vector.load %arg4[%c0_87, %c0_88] : memref<8x256xf32, #tpu.memory_space<vmem>>, vector<8x256xf32>
      %208 = arith.addf %206, %207 : vector<8x256xf32>
      %c0_89 = arith.constant 0 : index
      %c0_90 = arith.constant 0 : index
      %209 = vector.load %arg24[%c0_89, %c0_90] : memref<8x256xf32, #tpu.memory_space<vmem>>, vector<8x256xf32>
      tpu.vector_store %arg24[%c0_89, %c0_90], %208 {strides = array<i32>} : memref<8x256xf32, #tpu.memory_space<vmem>>, vector<8x256xf32>,
    } else {
    }
    %c0 = arith.constant 0 : index
    %c0_1 = arith.constant 0 : index
    %3 = vector.load %arg24[%c0, %c0_1] : memref<8x256xf32, #tpu.memory_space<vmem>>, vector<8x256xf32>
    %c0_2 = arith.constant 0 : index
    %c0_3 = arith.constant 0 : index
    %c0_4 = arith.constant 0 : index
    %4 = vector.load %arg3[%c0_2, %c0_3, %c0_4] : memref<1x1x8xf32, #tpu.memory_space<vmem>>, vector<1x1x8xf32>
    %5 = vector.shape_cast %4 : vector<1x1x8xf32> to vector<1x8xf32>
    %6 = arith.truncf %3 : vector<8x256xf32> to vector<8x256xbf16>
    %c0_5 = arith.constant 0 : index
    %c0_6 = arith.constant 0 : index
    %c0_7 = arith.constant 0 : index
    %7 = vector.load %arg7[%c0_5, %c0_6, %c0_7] : memref<1x256x768xbf16, #tpu.memory_space<vmem>>, vector<1x256x768xbf16>
    %8 = vector.shape_cast %7 : vector<1x256x768xbf16> to vector<256x768xbf16>
    %cst = arith.constant dense<0.000000e+00> : vector<8x768xf32>
    %9 = tpu.matmul %6, %8, %cst {dimension_numbers = #tpu.dot_dimension_numbers<[1], [0], [0], [1], [0, 0, 1, 1], [], []>} : vector<8x256xbf16>, vector<256x768xbf16>, vector<8x768xf32> -> vector<8x768xf32>
    %c0_8 = arith.constant 0 : index
    %c0_9 = arith.constant 0 : index
    %c0_10 = arith.constant 0 : index
    %10 = vector.load %arg8[%c0_8, %c0_9, %c0_10] : memref<1x1x768xf32, #tpu.memory_space<vmem>>, vector<1x1x768xf32>
    %11 = vector.shape_cast %10 : vector<1x1x768xf32> to vector<1x768xf32>
    %12 = vector.broadcast %11 : vector<1x768xf32> to vector<8x768xf32>
    %13 = arith.addf %9, %12 : vector<8x768xf32>
    %c0_11 = arith.constant 0 : index
    %c0_12 = arith.constant 0 : index
    %c0_13 = arith.constant 0 : index
    %14 = vector.load %arg9[%c0_11, %c0_12, %c0_13] : memref<1x256x256xbf16, #tpu.memory_space<vmem>>, vector<1x256x256xbf16>
    %15 = vector.shape_cast %14 : vector<1x256x256xbf16> to vector<256x256xbf16>
    %cst_14 = arith.constant 0.000000e+00 : f32
    %16 = vector.broadcast %cst_14 : f32 to vector<8x256xf32>
    %17 = vector.extract_strided_slice %13 {offsets = [0, 0], sizes = [8, 64], strides = [1, 1]} : vector<8x768xf32> to vector<8x64xf32>
    %18 = arith.truncf %17 : vector<8x64xf32> to vector<8x64xbf16>
    %19 = vector.extract_strided_slice %13 {offsets = [0, 256], sizes = [8, 64], strides = [1, 1]} : vector<8x768xf32> to vector<8x64xf32>
    %20 = arith.truncf %19 : vector<8x64xf32> to vector<8x64xbf16>
    %21 = vector.extract_strided_slice %13 {offsets = [0, 512], sizes = [8, 64], strides = [1, 1]} : vector<8x768xf32> to vector<8x64xf32>
    %22 = arith.truncf %21 : vector<8x64xf32> to vector<8x64xbf16>
    %cst_15 = arith.constant dense<0.000000e+00> : vector<8x8xf32>
    %23 = tpu.matmul %18, %20, %cst_15 {dimension_numbers = #tpu.dot_dimension_numbers<[1], [1], [0], [0], [0, 0, 1, 0], [], []>} : vector<8x64xbf16>, vector<8x64xbf16>, vector<8x8xf32> -> vector<8x8xf32>
    %24 = vector.broadcast %5 : vector<1x8xf32> to vector<8x8xf32>
    %25 = arith.addf %23, %24 : vector<8x8xf32>
    %cst_16 = arith.constant dense<0xFF800000> : vector<8xf32>
    %26 = vector.multi_reduction <maximumf>, %25, %cst_16 [1] : vector<8x8xf32> to vector<8xf32>
    %27 = vector.shape_cast %26 : vector<8xf32> to vector<8x1xf32>
    %28 = vector.broadcast %27 : vector<8x1xf32> to vector<8x8xf32>
    %29 = arith.subf %25, %28 : vector<8x8xf32>
    %30 = math.exp %29 : vector<8x8xf32>
    %cst_17 = arith.constant dense<0.000000e+00> : vector<8xf32>
    %31 = vector.multi_reduction <add>, %30, %cst_17 [1] : vector<8x8xf32> to vector<8xf32>
    %32 = vector.shape_cast %31 : vector<8xf32> to vector<8x1xf32>
    %33 = tpu.reciprocal %32 : vector<8x1xf32> -> vector<8x1xf32>
    %34 = vector.broadcast %33 : vector<8x1xf32> to vector<8x8xf32>
    %35 = arith.mulf %30, %34 : vector<8x8xf32>
    %36 = arith.truncf %35 : vector<8x8xf32> to vector<8x8xbf16>
    %cst_18 = arith.constant dense<0.000000e+00> : vector<8x64xf32>
    %37 = tpu.matmul %36, %22, %cst_18 {dimension_numbers = #tpu.dot_dimension_numbers<[1], [0], [0], [1], [0, 0, 1, 1], [], []>} : vector<8x8xbf16>, vector<8x64xbf16>, vector<8x64xf32> -> vector<8x64xf32>
    %38 = arith.truncf %37 : vector<8x64xf32> to vector<8x64xbf16>
    %39 = vector.extract_strided_slice %15 {offsets = [0, 0], sizes = [64, 256], strides = [1, 1]} : vector<256x256xbf16> to vector<64x256xbf16>
    %cst_19 = arith.constant dense<0.000000e+00> : vector<8x256xf32>
    %40 = tpu.matmul %38, %39, %cst_19 {dimension_numbers = #tpu.dot_dimension_numbers<[1], [0], [0], [1], [0, 0, 1, 1], [], []>} : vector<8x64xbf16>, vector<64x256xbf16>, vector<8x256xf32> -> vector<8x256xf32>
    %41 = arith.addf %16, %40 : vector<8x256xf32>
    %42 = vector.extract_strided_slice %13 {offsets = [0, 64], sizes = [8, 64], strides = [1, 1]} : vector<8x768xf32> to vector<8x64xf32>
    %43 = arith.truncf %42 : vector<8x64xf32> to vector<8x64xbf16>
    %44 = vector.extract_strided_slice %13 {offsets = [0, 320], sizes = [8, 64], strides = [1, 1]} : vector<8x768xf32> to vector<8x64xf32>
    %45 = arith.truncf %44 : vector<8x64xf32> to vector<8x64xbf16>
    %46 = vector.extract_strided_slice %13 {offsets = [0, 576], sizes = [8, 64], strides = [1, 1]} : vector<8x768xf32> to vector<8x64xf32>
    %47 = arith.truncf %46 : vector<8x64xf32> to vector<8x64xbf16>
    %cst_20 = arith.constant dense<0.000000e+00> : vector<8x8xf32>
    %48 = tpu.matmul %43, %45, %cst_20 {dimension_numbers = #tpu.dot_dimension_numbers<[1], [1], [0], [0], [0, 0, 1, 0], [], []>} : vector<8x64xbf16>, vector<8x64xbf16>, vector<8x8xf32> -> vector<8x8xf32>
    %49 = vector.broadcast %5 : vector<1x8xf32> to vector<8x8xf32>
    %50 = arith.addf %48, %49 : vector<8x8xf32>
    %cst_21 = arith.constant dense<0xFF800000> : vector<8xf32>
    %51 = vector.multi_reduction <maximumf>, %50, %cst_21 [1] : vector<8x8xf32> to vector<8xf32>
    %52 = vector.shape_cast %51 : vector<8xf32> to vector<8x1xf32>
    %53 = vector.broadcast %52 : vector<8x1xf32> to vector<8x8xf32>
    %54 = arith.subf %50, %53 : vector<8x8xf32>
    %55 = math.exp %54 : vector<8x8xf32>
    %cst_22 = arith.constant dense<0.000000e+00> : vector<8xf32>
    %56 = vector.multi_reduction <add>, %55, %cst_22 [1] : vector<8x8xf32> to vector<8xf32>
    %57 = vector.shape_cast %56 : vector<8xf32> to vector<8x1xf32>
    %58 = tpu.reciprocal %57 : vector<8x1xf32> -> vector<8x1xf32>
    %59 = vector.broadcast %58 : vector<8x1xf32> to vector<8x8xf32>
    %60 = arith.mulf %55, %59 : vector<8x8xf32>
    %61 = arith.truncf %60 : vector<8x8xf32> to vector<8x8xbf16>
    %cst_23 = arith.constant dense<0.000000e+00> : vector<8x64xf32>
    %62 = tpu.matmul %61, %47, %cst_23 {dimension_numbers = #tpu.dot_dimension_numbers<[1], [0], [0], [1], [0, 0, 1, 1], [], []>} : vector<8x8xbf16>, vector<8x64xbf16>, vector<8x64xf32> -> vector<8x64xf32>
    %63 = arith.truncf %62 : vector<8x64xf32> to vector<8x64xbf16>
    %64 = vector.extract_strided_slice %15 {offsets = [64, 0], sizes = [64, 256], strides = [1, 1]} : vector<256x256xbf16> to vector<64x256xbf16>
    %cst_24 = arith.constant dense<0.000000e+00> : vector<8x256xf32>
    %65 = tpu.matmul %63, %64, %cst_24 {dimension_numbers = #tpu.dot_dimension_numbers<[1], [0], [0], [1], [0, 0, 1, 1], [], []>} : vector<8x64xbf16>, vector<64x256xbf16>, vector<8x256xf32> -> vector<8x256xf32>
    %66 = arith.addf %41, %65 : vector<8x256xf32>
    %67 = vector.extract_strided_slice %13 {offsets = [0, 128], sizes = [8, 64], strides = [1, 1]} : vector<8x768xf32> to vector<8x64xf32>
    %68 = arith.truncf %67 : vector<8x64xf32> to vector<8x64xbf16>
    %69 = vector.extract_strided_slice %13 {offsets = [0, 384], sizes = [8, 64], strides = [1, 1]} : vector<8x768xf32> to vector<8x64xf32>
    %70 = arith.truncf %69 : vector<8x64xf32> to vector<8x64xbf16>
    %71 = vector.extract_strided_slice %13 {offsets = [0, 640], sizes = [8, 64], strides = [1, 1]} : vector<8x768xf32> to vector<8x64xf32>
    %72 = arith.truncf %71 : vector<8x64xf32> to vector<8x64xbf16>
    %cst_25 = arith.constant dense<0.000000e+00> : vector<8x8xf32>
    %73 = tpu.matmul %68, %70, %cst_25 {dimension_numbers = #tpu.dot_dimension_numbers<[1], [1], [0], [0], [0, 0, 1, 0], [], []>} : vector<8x64xbf16>, vector<8x64xbf16>, vector<8x8xf32> -> vector<8x8xf32>
    %74 = vector.broadcast %5 : vector<1x8xf32> to vector<8x8xf32>
    %75 = arith.addf %73, %74 : vector<8x8xf32>
    %cst_26 = arith.constant dense<0xFF800000> : vector<8xf32>
    %76 = vector.multi_reduction <maximumf>, %75, %cst_26 [1] : vector<8x8xf32> to vector<8xf32>
    %77 = vector.shape_cast %76 : vector<8xf32> to vector<8x1xf32>
    %78 = vector.broadcast %77 : vector<8x1xf32> to vector<8x8xf32>
    %79 = arith.subf %75, %78 : vector<8x8xf32>
    %80 = math.exp %79 : vector<8x8xf32>
    %cst_27 = arith.constant dense<0.000000e+00> : vector<8xf32>
    %81 = vector.multi_reduction <add>, %80, %cst_27 [1] : vector<8x8xf32> to vector<8xf32>
    %82 = vector.shape_cast %81 : vector<8xf32> to vector<8x1xf32>
    %83 = tpu.reciprocal %82 : vector<8x1xf32> -> vector<8x1xf32>
    %84 = vector.broadcast %83 : vector<8x1xf32> to vector<8x8xf32>
    %85 = arith.mulf %80, %84 : vector<8x8xf32>
    %86 = arith.truncf %85 : vector<8x8xf32> to vector<8x8xbf16>
    %cst_28 = arith.constant dense<0.000000e+00> : vector<8x64xf32>
    %87 = tpu.matmul %86, %72, %cst_28 {dimension_numbers = #tpu.dot_dimension_numbers<[1], [0], [0], [1], [0, 0, 1, 1], [], []>} : vector<8x8xbf16>, vector<8x64xbf16>, vector<8x64xf32> -> vector<8x64xf32>
    %88 = arith.truncf %87 : vector<8x64xf32> to vector<8x64xbf16>
    %89 = vector.extract_strided_slice %15 {offsets = [128, 0], sizes = [64, 256], strides = [1, 1]} : vector<256x256xbf16> to vector<64x256xbf16>
    %cst_29 = arith.constant dense<0.000000e+00> : vector<8x256xf32>
    %90 = tpu.matmul %88, %89, %cst_29 {dimension_numbers = #tpu.dot_dimension_numbers<[1], [0], [0], [1], [0, 0, 1, 1], [], []>} : vector<8x64xbf16>, vector<64x256xbf16>, vector<8x256xf32> -> vector<8x256xf32>
    %91 = arith.addf %66, %90 : vector<8x256xf32>
    %92 = vector.extract_strided_slice %13 {offsets = [0, 192], sizes = [8, 64], strides = [1, 1]} : vector<8x768xf32> to vector<8x64xf32>
    %93 = arith.truncf %92 : vector<8x64xf32> to vector<8x64xbf16>
    %94 = vector.extract_strided_slice %13 {offsets = [0, 448], sizes = [8, 64], strides = [1, 1]} : vector<8x768xf32> to vector<8x64xf32>
    %95 = arith.truncf %94 : vector<8x64xf32> to vector<8x64xbf16>
    %96 = vector.extract_strided_slice %13 {offsets = [0, 704], sizes = [8, 64], strides = [1, 1]} : vector<8x768xf32> to vector<8x64xf32>
    %97 = arith.truncf %96 : vector<8x64xf32> to vector<8x64xbf16>
    %cst_30 = arith.constant dense<0.000000e+00> : vector<8x8xf32>
    %98 = tpu.matmul %93, %95, %cst_30 {dimension_numbers = #tpu.dot_dimension_numbers<[1], [1], [0], [0], [0, 0, 1, 0], [], []>} : vector<8x64xbf16>, vector<8x64xbf16>, vector<8x8xf32> -> vector<8x8xf32>
    %99 = vector.broadcast %5 : vector<1x8xf32> to vector<8x8xf32>
    %100 = arith.addf %98, %99 : vector<8x8xf32>
    %cst_31 = arith.constant dense<0xFF800000> : vector<8xf32>
    %101 = vector.multi_reduction <maximumf>, %100, %cst_31 [1] : vector<8x8xf32> to vector<8xf32>
    %102 = vector.shape_cast %101 : vector<8xf32> to vector<8x1xf32>
    %103 = vector.broadcast %102 : vector<8x1xf32> to vector<8x8xf32>
    %104 = arith.subf %100, %103 : vector<8x8xf32>
    %105 = math.exp %104 : vector<8x8xf32>
    %cst_32 = arith.constant dense<0.000000e+00> : vector<8xf32>
    %106 = vector.multi_reduction <add>, %105, %cst_32 [1] : vector<8x8xf32> to vector<8xf32>
    %107 = vector.shape_cast %106 : vector<8xf32> to vector<8x1xf32>
    %108 = tpu.reciprocal %107 : vector<8x1xf32> -> vector<8x1xf32>
    %109 = vector.broadcast %108 : vector<8x1xf32> to vector<8x8xf32>
    %110 = arith.mulf %105, %109 : vector<8x8xf32>
    %111 = arith.truncf %110 : vector<8x8xf32> to vector<8x8xbf16>
    %cst_33 = arith.constant dense<0.000000e+00> : vector<8x64xf32>
    %112 = tpu.matmul %111, %97, %cst_33 {dimension_numbers = #tpu.dot_dimension_numbers<[1], [0], [0], [1], [0, 0, 1, 1], [], []>} : vector<8x8xbf16>, vector<8x64xbf16>, vector<8x64xf32> -> vector<8x64xf32>
    %113 = arith.truncf %112 : vector<8x64xf32> to vector<8x64xbf16>
    %114 = vector.extract_strided_slice %15 {offsets = [192, 0], sizes = [64, 256], strides = [1, 1]} : vector<256x256xbf16> to vector<64x256xbf16>
    %cst_34 = arith.constant dense<0.000000e+00> : vector<8x256xf32>
    %115 = tpu.matmul %113, %114, %cst_34 {dimension_numbers = #tpu.dot_dimension_numbers<[1], [0], [0], [1], [0, 0, 1, 1], [], []>} : vector<8x64xbf16>, vector<64x256xbf16>, vector<8x256xf32> -> vector<8x256xf32>
    %116 = arith.addf %91, %115 : vector<8x256xf32>
    %c0_35 = arith.constant 0 : index
    %c0_36 = arith.constant 0 : index
    %c0_37 = arith.constant 0 : index
    %117 = vector.load %arg10[%c0_35, %c0_36, %c0_37] : memref<1x1x256xf32, #tpu.memory_space<vmem>>, vector<1x1x256xf32>
    %118 = vector.shape_cast %117 : vector<1x1x256xf32> to vector<1x256xf32>
    %119 = vector.broadcast %118 : vector<1x256xf32> to vector<8x256xf32>
    %120 = arith.addf %116, %119 : vector<8x256xf32>
    %121 = arith.addf %3, %120 : vector<8x256xf32>
    %c0_38 = arith.constant 0 : index
    %c0_39 = arith.constant 0 : index
    %c0_40 = arith.constant 0 : index
    %122 = vector.load %arg11[%c0_38, %c0_39, %c0_40] : memref<1x1x256xf32, #tpu.memory_space<vmem>>, vector<1x1x256xf32>
    %123 = vector.shape_cast %122 : vector<1x1x256xf32> to vector<1x256xf32>
    %c0_41 = arith.constant 0 : index
    %c0_42 = arith.constant 0 : index
    %c0_43 = arith.constant 0 : index
    %124 = vector.load %arg12[%c0_41, %c0_42, %c0_43] : memref<1x1x256xf32, #tpu.memory_space<vmem>>, vector<1x1x256xf32>
    %125 = vector.shape_cast %124 : vector<1x1x256xf32> to vector<1x256xf32>
    %cst_44 = arith.constant dense<0.000000e+00> : vector<8xf32>
    %126 = vector.multi_reduction <add>, %121, %cst_44 [1] : vector<8x256xf32> to vector<8xf32>
    %127 = vector.shape_cast %126 : vector<8xf32> to vector<8x1xf32>
    %cst_45 = arith.constant 2.560000e+02 : f32
    %128 = vector.broadcast %cst_45 : f32 to vector<8x1xf32>
    %129 = arith.divf %127, %128 : vector<8x1xf32>
    %130 = vector.broadcast %129 : vector<8x1xf32> to vector<8x256xf32>
    %131 = arith.subf %121, %130 : vector<8x256xf32>
    %132 = arith.mulf %131, %131 : vector<8x256xf32>
    %cst_46 = arith.constant dense<0.000000e+00> : vector<8xf32>
    %133 = vector.multi_reduction <add>, %132, %cst_46 [1] : vector<8x256xf32> to vector<8xf32>
    %134 = vector.shape_cast %133 : vector<8xf32> to vector<8x1xf32>
    %cst_47 = arith.constant 2.560000e+02 : f32
    %135 = vector.broadcast %cst_47 : f32 to vector<8x1xf32>
    %136 = arith.divf %134, %135 : vector<8x1xf32>
    %137 = vector.broadcast %129 : vector<8x1xf32> to vector<8x256xf32>
    %138 = arith.subf %121, %137 : vector<8x256xf32>
    %cst_48 = arith.constant 9.99999974E-6 : f32
    %139 = vector.broadcast %cst_48 : f32 to vector<8x1xf32>
    %140 = arith.addf %136, %139 : vector<8x1xf32>
    %141 = math.rsqrt %140 : vector<8x1xf32>
    %142 = vector.broadcast %141 : vector<8x1xf32> to vector<8x256xf32>
    %143 = arith.mulf %138, %142 : vector<8x256xf32>
    %144 = vector.broadcast %123 : vector<1x256xf32> to vector<8x256xf32>
    %145 = arith.mulf %143, %144 : vector<8x256xf32>
    %146 = vector.broadcast %125 : vector<1x256xf32> to vector<8x256xf32>
    %147 = arith.addf %145, %146 : vector<8x256xf32>
    %148 = arith.truncf %147 : vector<8x256xf32> to vector<8x256xbf16>
    %c0_49 = arith.constant 0 : index
    %c0_50 = arith.constant 0 : index
    %c0_51 = arith.constant 0 : index
    %149 = vector.load %arg13[%c0_49, %c0_50, %c0_51] : memref<1x256x64xbf16, #tpu.memory_space<vmem>>, vector<1x256x64xbf16>
    %150 = vector.shape_cast %149 : vector<1x256x64xbf16> to vector<256x64xbf16>
    %cst_52 = arith.constant dense<0.000000e+00> : vector<8x64xf32>
    %151 = tpu.matmul %148, %150, %cst_52 {dimension_numbers = #tpu.dot_dimension_numbers<[1], [0], [0], [1], [0, 0, 1, 1], [], []>} : vector<8x256xbf16>, vector<256x64xbf16>, vector<8x64xf32> -> vector<8x64xf32>
    %c0_53 = arith.constant 0 : index
    %c0_54 = arith.constant 0 : index
    %c0_55 = arith.constant 0 : index
    %152 = vector.load %arg14[%c0_53, %c0_54, %c0_55] : memref<1x1x64xf32, #tpu.memory_space<vmem>>, vector<1x1x64xf32>
    %153 = vector.shape_cast %152 : vector<1x1x64xf32> to vector<1x64xf32>
    %154 = vector.broadcast %153 : vector<1x64xf32> to vector<8x64xf32>
    %155 = arith.addf %151, %154 : vector<8x64xf32>
    %cst_56 = arith.constant 0.000000e+00 : f32
    %156 = vector.broadcast %cst_56 : f32 to vector<8x64xf32>
    %157 = arith.maximumf %155, %156 : vector<8x64xf32>
    %158 = arith.truncf %157 : vector<8x64xf32> to vector<8x64xbf16>
    %c0_57 = arith.constant 0 : index
    %c0_58 = arith.constant 0 : index
    %c0_59 = arith.constant 0 : index
    %159 = vector.load %arg15[%c0_57, %c0_58, %c0_59] : memref<1x64x256xbf16, #tpu.memory_space<vmem>>, vector<1x64x256xbf16>
    %160 = vector.shape_cast %159 : vector<1x64x256xbf16> to vector<64x256xbf16>
    %cst_60 = arith.constant dense<0.000000e+00> : vector<8x256xf32>
    %161 = tpu.matmul %158, %160, %cst_60 {dimension_numbers = #tpu.dot_dimension_numbers<[1], [0], [0], [1], [0, 0, 1, 1], [], []>} : vector<8x64xbf16>, vector<64x256xbf16>, vector<8x256xf32> -> vector<8x256xf32>
    %c0_61 = arith.constant 0 : index
    %c0_62 = arith.constant 0 : index
    %c0_63 = arith.constant 0 : index
    %162 = vector.load %arg16[%c0_61, %c0_62, %c0_63] : memref<1x1x256xf32, #tpu.memory_space<vmem>>, vector<1x1x256xf32>
    %163 = vector.shape_cast %162 : vector<1x1x256xf32> to vector<1x256xf32>
    %164 = vector.broadcast %163 : vector<1x256xf32> to vector<8x256xf32>
    %165 = arith.addf %161, %164 : vector<8x256xf32>
    %166 = arith.addf %147, %165 : vector<8x256xf32>
    %c0_64 = arith.constant 0 : index
    %c0_65 = arith.constant 0 : index
    %c0_66 = arith.constant 0 : index
    %167 = vector.load %arg17[%c0_64, %c0_65, %c0_66] : memref<1x1x256xf32, #tpu.memory_space<vmem>>, vector<1x1x256xf32>
    %168 = vector.shape_cast %167 : vector<1x1x256xf32> to vector<1x256xf32>
    %c0_67 = arith.constant 0 : index
    %c0_68 = arith.constant 0 : index
    %c0_69 = arith.constant 0 : index
    %169 = vector.load %arg18[%c0_67, %c0_68, %c0_69] : memref<1x1x256xf32, #tpu.memory_space<vmem>>, vector<1x1x256xf32>
    %170 = vector.shape_cast %169 : vector<1x1x256xf32> to vector<1x256xf32>
    %cst_70 = arith.constant dense<0.000000e+00> : vector<8xf32>
    %171 = vector.multi_reduction <add>, %166, %cst_70 [1] : vector<8x256xf32> to vector<8xf32>
    %172 = vector.shape_cast %171 : vector<8xf32> to vector<8x1xf32>
    %cst_71 = arith.constant 2.560000e+02 : f32
    %173 = vector.broadcast %cst_71 : f32 to vector<8x1xf32>
    %174 = arith.divf %172, %173 : vector<8x1xf32>
    %175 = vector.broadcast %174 : vector<8x1xf32> to vector<8x256xf32>
    %176 = arith.subf %166, %175 : vector<8x256xf32>
    %177 = arith.mulf %176, %176 : vector<8x256xf32>
    %cst_72 = arith.constant dense<0.000000e+00> : vector<8xf32>
    %178 = vector.multi_reduction <add>, %177, %cst_72 [1] : vector<8x256xf32> to vector<8xf32>
    %179 = vector.shape_cast %178 : vector<8xf32> to vector<8x1xf32>
    %cst_73 = arith.constant 2.560000e+02 : f32
    %180 = vector.broadcast %cst_73 : f32 to vector<8x1xf32>
    %181 = arith.divf %179, %180 : vector<8x1xf32>
    %182 = vector.broadcast %174 : vector<8x1xf32> to vector<8x256xf32>
    %183 = arith.subf %166, %182 : vector<8x256xf32>
    %cst_74 = arith.constant 9.99999974E-6 : f32
    %184 = vector.broadcast %cst_74 : f32 to vector<8x1xf32>
    %185 = arith.addf %181, %184 : vector<8x1xf32>
    %186 = math.rsqrt %185 : vector<8x1xf32>
    %187 = vector.broadcast %186 : vector<8x1xf32> to vector<8x256xf32>
    %188 = arith.mulf %183, %187 : vector<8x256xf32>
    %189 = vector.broadcast %168 : vector<1x256xf32> to vector<8x256xf32>
    %190 = arith.mulf %188, %189 : vector<8x256xf32>
    %191 = vector.broadcast %170 : vector<1x256xf32> to vector<8x256xf32>
    %192 = arith.addf %190, %191 : vector<8x256xf32>
    %c0_75 = arith.constant 0 : index
    %c0_76 = arith.constant 0 : index
    %193 = vector.load %arg24[%c0_75, %c0_76] : memref<8x256xf32, #tpu.memory_space<vmem>>, vector<8x256xf32>
    tpu.vector_store %arg24[%c0_75, %c0_76], %192 {strides = array<i32>} : memref<8x256xf32, #tpu.memory_space<vmem>>, vector<8x256xf32>,
    %c1_i32 = arith.constant 1 : i32
    %194 = arith.cmpi eq, %arg1, %c1_i32 : i32
    %195 = arith.extui %194 : i1 to i32
    %c0_i32_77 = arith.constant 0 : i32
    %196 = arith.cmpi ne, %195, %c0_i32_77 : i32
    scf.if %196 {
      %c0_78 = arith.constant 0 : index
      %c0_79 = arith.constant 0 : index
      %197 = vector.load %arg19[%c0_78, %c0_79] : memref<1x256xf32, #tpu.memory_space<vmem>>, vector<1x256xf32>
      %c0_80 = arith.constant 0 : index
      %c0_81 = arith.constant 0 : index
      %198 = vector.load %arg20[%c0_80, %c0_81] : memref<1x256xf32, #tpu.memory_space<vmem>>, vector<1x256xf32>
      %cst_82 = arith.constant dense<0.000000e+00> : vector<8xf32>
      %199 = vector.multi_reduction <add>, %192, %cst_82 [1] : vector<8x256xf32> to vector<8xf32>
      %200 = vector.shape_cast %199 : vector<8xf32> to vector<8x1xf32>
      %cst_83 = arith.constant 2.560000e+02 : f32
      %201 = vector.broadcast %cst_83 : f32 to vector<8x1xf32>
      %202 = arith.divf %200, %201 : vector<8x1xf32>
      %203 = vector.broadcast %202 : vector<8x1xf32> to vector<8x256xf32>
      %204 = arith.subf %192, %203 : vector<8x256xf32>
      %205 = arith.mulf %204, %204 : vector<8x256xf32>
      %cst_84 = arith.constant dense<0.000000e+00> : vector<8xf32>
      %206 = vector.multi_reduction <add>, %205, %cst_84 [1] : vector<8x256xf32> to vector<8xf32>
      %207 = vector.shape_cast %206 : vector<8xf32> to vector<8x1xf32>
      %cst_85 = arith.constant 2.560000e+02 : f32
      %208 = vector.broadcast %cst_85 : f32 to vector<8x1xf32>
      %209 = arith.divf %207, %208 : vector<8x1xf32>
      %210 = vector.broadcast %202 : vector<8x1xf32> to vector<8x256xf32>
      %211 = arith.subf %192, %210 : vector<8x256xf32>
      %cst_86 = arith.constant 9.99999974E-6 : f32
      %212 = vector.broadcast %cst_86 : f32 to vector<8x1xf32>
      %213 = arith.addf %209, %212 : vector<8x1xf32>
      %214 = math.rsqrt %213 : vector<8x1xf32>
      %215 = vector.broadcast %214 : vector<8x1xf32> to vector<8x256xf32>
      %216 = arith.mulf %211, %215 : vector<8x256xf32>
      %217 = vector.broadcast %197 : vector<1x256xf32> to vector<8x256xf32>
      %218 = arith.mulf %216, %217 : vector<8x256xf32>
      %219 = vector.broadcast %198 : vector<1x256xf32> to vector<8x256xf32>
      %220 = arith.addf %218, %219 : vector<8x256xf32>
      %221 = arith.truncf %220 : vector<8x256xf32> to vector<8x256xbf16>
      %c0_87 = arith.constant 0 : index
      %c0_88 = arith.constant 0 : index
      %222 = vector.load %arg21[%c0_87, %c0_88] : memref<256x128xbf16, #tpu.memory_space<vmem>>, vector<256x128xbf16>
      %cst_89 = arith.constant dense<0.000000e+00> : vector<8x128xf32>
      %223 = tpu.matmul %221, %222, %cst_89 {dimension_numbers = #tpu.dot_dimension_numbers<[1], [0], [0], [1], [0, 0, 1, 1], [], []>} : vector<8x256xbf16>, vector<256x128xbf16>, vector<8x128xf32> -> vector<8x128xf32>
      %c0_90 = arith.constant 0 : index
      %c0_91 = arith.constant 0 : index
      %224 = vector.load %arg22[%c0_90, %c0_91] : memref<1x128xf32, #tpu.memory_space<vmem>>, vector<1x128xf32>
      %225 = vector.broadcast %224 : vector<1x128xf32> to vector<8x128xf32>
      %226 = arith.addf %223, %225 : vector<8x128xf32>
      %cst_92 = arith.constant dense<0xFF800000> : vector<8xf32>
      %227 = vector.multi_reduction <maximumf>, %226, %cst_92 [1] : vector<8x128xf32> to vector<8xf32>
      %228 = vector.shape_cast %227 : vector<8xf32> to vector<8x1xf32>
      %229 = vector.broadcast %228 : vector<8x1xf32> to vector<8x128xf32>
      %230 = arith.subf %226, %229 : vector<8x128xf32>
      %231 = math.exp %230 : vector<8x128xf32>
      %cst_93 = arith.constant dense<0.000000e+00> : vector<8xf32>
      %232 = vector.multi_reduction <add>, %231, %cst_93 [1] : vector<8x128xf32> to vector<8xf32>
      %233 = vector.shape_cast %232 : vector<8xf32> to vector<8x1xf32>
      %234 = math.log %233 : vector<8x1xf32>
      %235 = arith.addf %234, %228 : vector<8x1xf32>
      %236 = vector.broadcast %235 : vector<8x1xf32> to vector<8x128xf32>
      %237 = arith.subf %226, %236 : vector<8x128xf32>
      %c0_94 = arith.constant 0 : index
      %c0_95 = arith.constant 0 : index
      %c0_96 = arith.constant 0 : index
      %238 = vector.load %arg23[%c0_94, %c0_95, %c0_96] : memref<1x8x128xf32, #tpu.memory_space<vmem>>, vector<1x8x128xf32>
      %239 = vector.shape_cast %238 : vector<1x8x128xf32> to vector<8x128xf32>
      %240 = vector.shape_cast %237 : vector<8x128xf32> to vector<1x8x128xf32>
      tpu.vector_store %arg23[%c0_94, %c0_95, %c0_96], %240 {strides = array<i32>} : memref<1x8x128xf32, #tpu.memory_space<vmem>>, vector<1x8x128xf32>,
    } else {
    }
    return
  }
  func.func @transform_0(%arg0: i32, %arg1: i32) -> (i32, i32, i32) {
    %c0_i32 = arith.constant 0 : i32
    %c0_i32_0 = arith.constant 0 : i32
    %c0_i32_1 = arith.constant 0 : i32
    return %arg0, %c0_i32, %c0_i32_0 : i32, i32, i32
  }
  func.func @transform_1(%arg0: i32, %arg1: i32) -> (i32, i32, i32) {
    %c0_i32 = arith.constant 0 : i32
    %c0_i32_0 = arith.constant 0 : i32
    %c0_i32_1 = arith.constant 0 : i32
    return %arg0, %c0_i32, %c0_i32_0 : i32, i32, i32
  }
  func.func @transform_2(%arg0: i32, %arg1: i32) -> (i32, i32) {
    %c0_i32 = arith.constant 0 : i32
    %c0_i32_0 = arith.constant 0 : i32
    %c0_i32_1 = arith.constant 0 : i32
    return %c0_i32, %c0_i32_0 : i32, i32
  }
  func.func @transform_3(%arg0: i32, %arg1: i32) -> (i32, i32) {
    %c0_i32 = arith.constant 0 : i32
    %c0_i32_0 = arith.constant 0 : i32
    %c0_i32_1 = arith.constant 0 : i32
    return %c0_i32, %c0_i32_0 : i32, i32
  }
  func.func @transform_4(%arg0: i32, %arg1: i32) -> (i32, i32) {
    %c0_i32 = arith.constant 0 : i32
    %c0_i32_0 = arith.constant 0 : i32
    %c0_i32_1 = arith.constant 0 : i32
    return %c0_i32, %c0_i32_0 : i32, i32
  }
  func.func @transform_5(%arg0: i32, %arg1: i32) -> (i32, i32, i32) {
    %c0_i32 = arith.constant 0 : i32
    %c0_i32_0 = arith.constant 0 : i32
    %c0_i32_1 = arith.constant 0 : i32
    return %arg1, %c0_i32, %c0_i32_0 : i32, i32, i32
  }
  func.func @transform_6(%arg0: i32, %arg1: i32) -> (i32, i32, i32) {
    %c0_i32 = arith.constant 0 : i32
    %c0_i32_0 = arith.constant 0 : i32
    %c0_i32_1 = arith.constant 0 : i32
    return %arg1, %c0_i32, %c0_i32_0 : i32, i32, i32
  }
  func.func @transform_7(%arg0: i32, %arg1: i32) -> (i32, i32, i32) {
    %c0_i32 = arith.constant 0 : i32
    %c0_i32_0 = arith.constant 0 : i32
    %c0_i32_1 = arith.constant 0 : i32
    return %arg1, %c0_i32, %c0_i32_0 : i32, i32, i32
  }
  func.func @transform_8(%arg0: i32, %arg1: i32) -> (i32, i32, i32) {
    %c0_i32 = arith.constant 0 : i32
    %c0_i32_0 = arith.constant 0 : i32
    %c0_i32_1 = arith.constant 0 : i32
    return %arg1, %c0_i32, %c0_i32_0 : i32, i32, i32
  }
  func.func @transform_9(%arg0: i32, %arg1: i32) -> (i32, i32, i32) {
    %c0_i32 = arith.constant 0 : i32
    %c0_i32_0 = arith.constant 0 : i32
    %c0_i32_1 = arith.constant 0 : i32
    return %arg1, %c0_i32, %c0_i32_0 : i32, i32, i32
  }
  func.func @transform_10(%arg0: i32, %arg1: i32) -> (i32, i32, i32) {
    %c0_i32 = arith.constant 0 : i32
    %c0_i32_0 = arith.constant 0 : i32
    %c0_i32_1 = arith.constant 0 : i32
    return %arg1, %c0_i32, %c0_i32_0 : i32, i32, i32
  }
  func.func @transform_11(%arg0: i32, %arg1: i32) -> (i32, i32, i32) {
    %c0_i32 = arith.constant 0 : i32
    %c0_i32_0 = arith.constant 0 : i32
    %c0_i32_1 = arith.constant 0 : i32
    return %arg1, %c0_i32, %c0_i32_0 : i32, i32, i32
  }
  func.func @transform_12(%arg0: i32, %arg1: i32) -> (i32, i32, i32) {
    %c0_i32 = arith.constant 0 : i32
    %c0_i32_0 = arith.constant 0 : i32
    %c0_i32_1 = arith.constant 0 : i32
    return %arg1, %c0_i32, %c0_i32_0 : i32, i32, i32
  }
  func.func @transform_13(%arg0: i32, %arg1: i32) -> (i32, i32, i32) {
    %c0_i32 = arith.constant 0 : i32
    %c0_i32_0 = arith.constant 0 : i32
    %c0_i32_1 = arith.constant 0 : i32
    return %arg1, %c0_i32, %c0_i32_0 : i32, i32, i32
  }
  func.func @transform_14(%arg0: i32, %arg1: i32) -> (i32, i32, i32) {
    %c0_i32 = arith.constant 0 : i32
    %c0_i32_0 = arith.constant 0 : i32
    %c0_i32_1 = arith.constant 0 : i32
    return %arg1, %c0_i32, %c0_i32_0 : i32, i32, i32
  }
  func.func @transform_15(%arg0: i32, %arg1: i32) -> (i32, i32, i32) {
    %c0_i32 = arith.constant 0 : i32
    %c0_i32_0 = arith.constant 0 : i32
    %c0_i32_1 = arith.constant 0 : i32
    return %arg1, %c0_i32, %c0_i32_0 : i32, i32, i32
  }
  func.func @transform_16(%arg0: i32, %arg1: i32) -> (i32, i32, i32) {
    %c0_i32 = arith.constant 0 : i32
    %c0_i32_0 = arith.constant 0 : i32
    %c0_i32_1 = arith.constant 0 : i32
    return %arg1, %c0_i32, %c0_i32_0 : i32, i32, i32
  }
  func.func @transform_17(%arg0: i32, %arg1: i32) -> (i32, i32) {
    %c0_i32 = arith.constant 0 : i32
    %c0_i32_0 = arith.constant 0 : i32
    %c0_i32_1 = arith.constant 0 : i32
    return %c0_i32, %c0_i32_0 : i32, i32
  }
  func.func @transform_18(%arg0: i32, %arg1: i32) -> (i32, i32) {
    %c0_i32 = arith.constant 0 : i32
    %c0_i32_0 = arith.constant 0 : i32
    %c0_i32_1 = arith.constant 0 : i32
    return %c0_i32, %c0_i32_0 : i32, i32
  }
  func.func @transform_19(%arg0: i32, %arg1: i32) -> (i32, i32) {
    %c0_i32 = arith.constant 0 : i32
    %c0_i32_0 = arith.constant 0 : i32
    %c0_i32_1 = arith.constant 0 : i32
    return %c0_i32, %c0_i32_0 : i32, i32
  }
  func.func @transform_20(%arg0: i32, %arg1: i32) -> (i32, i32) {
    %c0_i32 = arith.constant 0 : i32
    %c0_i32_0 = arith.constant 0 : i32
    %c0_i32_1 = arith.constant 0 : i32
    return %c0_i32, %c0_i32_0 : i32, i32
  }
  func.func @transform_21(%arg0: i32, %arg1: i32) -> (i32, i32, i32) {
    %c0_i32 = arith.constant 0 : i32
    %c0_i32_0 = arith.constant 0 : i32
    %c0_i32_1 = arith.constant 0 : i32
    return %arg0, %c0_i32, %c0_i32_0 : i32, i32, i32
  }
}

</mosaic_0001>

<llo_original>
// kernel: encoder_crf_forward.1
$region0: #{encoder_crf_forward.1}
  #allocation0 [shape = 'u32[]', space=smem, size = 0x4, offset = 0x4, fixed_abs, tag = 'smem constant byte address 0x4 - core index']
  #allocation1 [shape = 'u32[144,128]{1,0:T(1,128)}', space=vmem, size = 0x12000, scoped, tag = 'internal scratch']
  #allocation2 [shape = 'f32[8,256]{1,0:T(8,128)}', space=vmem, size = 0x2000, scoped, tag = 'scratch operand']
  %s0 = inlined_call_operand.vmem [shape: f32[2,8,32], index: 0, kind: input, shape index: {}]
  %s1 = inlined_call_operand.vmem [shape: f32[2,1,8], index: 1, kind: input, shape index: {}]
  %s2 = inlined_call_operand.vmem [shape: f32[8,256], index: 2, kind: input, shape index: {}]
  %s3 = inlined_call_operand.hbm [shape: bf16[32,256], index: 3, kind: input, shape index: {}]
  %s4 = inlined_call_operand.vmem [shape: f32[1,256], index: 4, kind: input, shape index: {}]
  %s5 = inlined_call_operand.hbm [shape: bf16[2,256,768], index: 5, kind: input, shape index: {}]
  %s6 = inlined_call_operand.hbm [shape: f32[2,1,768], index: 6, kind: input, shape index: {}]
  %s7 = inlined_call_operand.vmem [shape: bf16[2,256,256], index: 7, kind: input, shape index: {}]
  %s8 = inlined_call_operand.hbm [shape: f32[2,1,256], index: 8, kind: input, shape index: {}]
  %s9 = inlined_call_operand.hbm [shape: f32[2,1,256], index: 9, kind: input, shape index: {}]
  %s10 = inlined_call_operand.hbm [shape: f32[2,1,256], index: 10, kind: input, shape index: {}]
  %s11 = inlined_call_operand.vmem [shape: bf16[2,256,64], index: 11, kind: input, shape index: {}]
  %s12 = inlined_call_operand.hbm [shape: f32[2,1,64], index: 12, kind: input, shape index: {}]
  %s13 = inlined_call_operand.hbm [shape: bf16[2,64,256], index: 13, kind: input, shape index: {}]
  %s14 = inlined_call_operand.hbm [shape: f32[2,1,256], index: 14, kind: input, shape index: {}]
  %s15 = inlined_call_operand.hbm [shape: f32[2,1,256], index: 15, kind: input, shape index: {}]
  %s16 = inlined_call_operand.hbm [shape: f32[2,1,256], index: 16, kind: input, shape index: {}]
  %s17 = inlined_call_operand.hbm [shape: f32[1,256], index: 17, kind: input, shape index: {}]
  %s18 = inlined_call_operand.hbm [shape: f32[1,256], index: 18, kind: input, shape index: {}]
  %s19 = inlined_call_operand.hbm [shape: bf16[256,128], index: 19, kind: input, shape index: {}]
  %s20 = inlined_call_operand.vmem [shape: f32[1,128], index: 20, kind: input, shape index: {}]
  %s21 = inlined_call_operand.vmem [shape: f32[2,8,128], index: 21, kind: output, shape index: {}]
  %s22 = sld [smem:[#allocation0]]
  $region181: #{encoder_crf_forward.1} parent=0
    _
  %s24 = ssub.s32 1, %s22
  %s25 = scalar_select 0, %s24, %s22
  $region1: #{encoder_crf_forward.1} parent=0
    #allocation3 [shape = 'u8[16384]{0}', space=vmem, size = 0x4000, scoped, tag = 'input window, operand 3, single buffered']
    #allocation4 [shape = 's32[2]{0}', space=sflag, size = 0x8, scoped, tag = 'scoped memory for encoder_crf_forward.1']
    #allocation5 [shape = 'u8[786432]{0}', space=vmem, size = 0xc0000, scoped, tag = 'input window, operand 5']
    #allocation6 [shape = 's32[2]{0}', space=sflag, size = 0x8, scoped, tag = 'scoped memory for encoder_crf_forward.1']
    #allocation7 [shape = 'u8[6144]{0}', space=vmem, size = 0x1800, scoped, tag = 'input window, operand 6']
    #allocation8 [shape = 'u8[2048]{0}', space=vmem, size = 0x800, scoped, tag = 'input window, operand 8']
    #allocation9 [shape = 's32[2]{0}', space=sflag, size = 0x8, scoped, tag = 'scoped memory for encoder_crf_forward.1']
    #allocation10 [shape = 'u8[2048]{0}', space=vmem, size = 0x800, scoped, tag = 'input window, operand 9']
    #allocation11 [shape = 'u8[2048]{0}', space=vmem, size = 0x800, scoped, tag = 'input window, operand 10']
    #allocation12 [shape = 's32[2]{0}', space=sflag, size = 0x8, scoped, tag = 'scoped memory for encoder_crf_forward.1']
    #allocation13 [shape = 'u8[1024]{0}', space=vmem, size = 0x400, scoped, tag = 'input window, operand 12']
    #allocation14 [shape = 'u8[65536]{0}', space=vmem, size = 0x10000, scoped, tag = 'input window, operand 13']
    #allocation15 [shape = 's32[2]{0}', space=sflag, size = 0x8, scoped, tag = 'scoped memory for encoder_crf_forward.1']
    #allocation16 [shape = 'u8[2048]{0}', space=vmem, size = 0x800, scoped, tag = 'input window, operand 14']
    #allocation17 [shape = 'u8[2048]{0}', space=vmem, size = 0x800, scoped, tag = 'input window, operand 15']
    #allocation18 [shape = 's32[2]{0}', space=sflag, size = 0x8, scoped, tag = 'scoped memory for encoder_crf_forward.1']
    #allocation19 [shape = 'u8[2048]{0}', space=vmem, size = 0x800, scoped, tag = 'input window, operand 16']
    #allocation20 [shape = 'u8[1024]{0}', space=vmem, size = 0x400, scoped, tag = 'input window, operand 17, single buffered']
    #allocation21 [shape = 's32[1]{0}', space=sflag, size = 0x4, scoped, tag = 'scoped memory for encoder_crf_forward.1']
    #allocation22 [shape = 'u8[1024]{0}', space=vmem, size = 0x400, scoped, tag = 'input window, operand 18, single buffered']
    #allocation23 [shape = 'u8[65536]{0}', space=vmem, size = 0x10000, scoped, tag = 'input window, operand 19, single buffered']
    #allocation24 [shape = 's32[1]{0}', space=sflag, size = 0x4, scoped, tag = 'scoped memory for encoder_crf_forward.1']
    %26 = vsyncpa [#allocation4], 0
    %27 = vsyncpa [#allocation6], 0
    %s28 = scalar_lea.sflag [#allocation6], 1
    %29 = vsyncpa %s28, 0
    %30 = vsyncpa [#allocation9], 0
    %s31 = scalar_lea.sflag [#allocation9], 1
    %32 = vsyncpa %s31, 0
    %33 = vsyncpa [#allocation12], 0
    %s34 = scalar_lea.sflag [#allocation12], 1
    %35 = vsyncpa %s34, 0
    %36 = vsyncpa [#allocation15], 0
    %s37 = scalar_lea.sflag [#allocation15], 1
    %38 = vsyncpa %s37, 0
    %39 = vsyncpa [#allocation18], 0
    %s40 = scalar_lea.sflag [#allocation18], 1
    %41 = vsyncpa %s40, 0
    %42 = vsyncpa [#allocation21], 0
    %43 = vsyncpa [#allocation24], 0
    loop: start=0, step=1, limit=6
    $region2: #{encoder_crf_forward.1} parent=1 // loop_pre_header
      _
    $region3: #{encoder_crf_forward.1} parent=1 // loop_header
      %s45 = sphi 0, %s49
      %p46 = scmp.ge.s32.totalorder %s45, 6
      %s52 = sphi 0, %s64
      %s53 = sphi 0, %s60
      %s54 = sphi 0, %s52
      %s55 = sphi 0, %s53
      %s56 = sphi 0, %s54
      %s57 = sphi 0, %s55
      %s67 = sphi 0, %s69
      %s70 = sphi 0, %s67
      %s71 = sphi 0, %s70
      %s87 = sphi 0, %s71
      %s93 = sphi 0, %s95
      %s96 = sphi 0, %s93
      %s97 = sphi 0, %s96
      %s113 = sphi 0, %s97
      %s117 = sphi 0, %s117
      %s119 = sphi 0, %s117
      %s120 = sphi 0, %s119
      %s134 = sphi 0, %s120
      %s138 = sphi 0, %s138
      %s140 = sphi 0, %s138
      %s141 = sphi 0, %s140
      %s155 = sphi 0, %s141
      %s159 = sphi 0, %s159
      %s161 = sphi 0, %s159
      %s162 = sphi 0, %s161
      %s176 = sphi 0, %s162
      %s182 = sphi 0, %s184
      %s185 = sphi 0, %s182
      %s186 = sphi 0, %s185
      %s202 = sphi 0, %s186
      %s208 = sphi 0, %s210
      %s211 = sphi 0, %s208
      %s212 = sphi 0, %s211
      %s228 = sphi 0, %s212
      %s234 = sphi 0, %s236
      %s237 = sphi 0, %s234
      %s238 = sphi 0, %s237
      %s254 = sphi 0, %s238
      %s260 = sphi 0, %s262
      %s263 = sphi 0, %s260
      %s264 = sphi 0, %s263
      %s280 = sphi 0, %s264
      %s286 = sphi 0, %s288
      %s289 = sphi 0, %s286
      %s290 = sphi 0, %s289
      %s306 = sphi 0, %s290
      %s312 = sphi 0, %s314
      %s315 = sphi 0, %s312
      %s316 = sphi 0, %s315
      %s332 = sphi 0, %s316
      %s338 = sphi 0, %s340
      %s341 = sphi 0, %s338
      %s342 = sphi 0, %s341
      %s358 = sphi 0, %s342
      %s364 = sphi 0, %s366
      %s367 = sphi 0, %s364
      %s368 = sphi 0, %s367
      %s384 = sphi 0, %s368
      %s390 = sphi 0, %s392
      %s393 = sphi 0, %s390
      %s394 = sphi 0, %s393
      %s410 = sphi 0, %s394
      %s416 = sphi 0, %s418
      %s419 = sphi 0, %s416
      %s420 = sphi 0, %s419
      %s436 = sphi 0, %s420
      %s442 = sphi 0, %s444
      %s445 = sphi 0, %s442
      %s446 = sphi 0, %s445
      %s462 = sphi 0, %s446
      %s468 = sphi 0, %s470
      %s471 = sphi 0, %s468
      %s472 = sphi 0, %s471
      %s488 = sphi 0, %s472
      %s492 = sphi 0, %s492
      %s494 = sphi 0, %s492
      %s495 = sphi 0, %s494
      %s509 = sphi 0, %s495
      %s513 = sphi 0, %s513
      %s515 = sphi 0, %s513
      %s516 = sphi 0, %s515
      %s530 = sphi 0, %s516
      %s534 = sphi 0, %s534
      %s536 = sphi 0, %s534
      %s537 = sphi 0, %s536
      %s551 = sphi 0, %s537
      %s555 = sphi 0, %s555
      %s557 = sphi 0, %s555
      %s558 = sphi 0, %s557
      %s572 = sphi 0, %s558
      %s578 = sphi 0, %s580
      %s581 = sphi 0, %s578
      %s582 = sphi 0, %s581
      %s598 = sphi 0, %s582
    $region4: #{encoder_crf_forward.1} parent=1 // loop_header_branch
      %48 = sbr.rel (%p46) target = $region8
    $region5: #{encoder_crf_forward.1} parent=1 // loop_body
      %s50 = ssub.s32 %s45, 1
      %s51 = ssub.s32 %s45, 2
      %s58 = sadd.s32 1, %s53
      %p59 = scmp.ge.s32.totalorder %s58, 2
      %s60 = scalar_select %p59, 0, %s58
      %s61 = sadd.s32 1, %s52
      %s62 = scalar_select %p59, %s61, %s52
      %p63 = scmp.ge.s32.totalorder %s62, 2
      %s64 = scalar_select %p63, 0, %s62
      %s65 = ssub.s32 %s52, %s64
      %p66 = scmp.eq.s32.totalorder %s65, 0
      %s68 = sadd.s32 %s67, 1
      %s69 = scalar_select %p66, %s67, %s68
      %p72 = pneg %p66
      %p73 = scmp.eq.s32.totalorder %s45, 3
      %p74 = por %p72, %p73
      %p75 = scmp.ne.s32.totalorder %s67, %s70
      %p76 = scmp.eq.s32.totalorder %s45, 0
      %p77 = por %p75, %p76
      %p78 = scmp.ne.s32.totalorder %s67, %s70
      %p79 = scmp.eq.s32.totalorder %s50, 3
      %p80 = por %p78, %p79
      %p81 = scmp.ne.s32.totalorder %s70, %s71
      %p82 = scmp.eq.s32.totalorder %s50, 0
      %p83 = por %p81, %p82
      %p84 = scmp.ne.s32.totalorder %s70, %s71
      %p85 = scmp.eq.s32.totalorder %s51, 3
      %p86 = por %p84, %p85
      %p88 = scmp.ne.s32.totalorder %s71, %s87
      %p89 = scmp.eq.s32.totalorder %s51, 0
      %p90 = por %p88, %p89
      %s91 = ssub.s32 %s52, %s64
      %p92 = scmp.eq.s32.totalorder %s91, 0
      %s94 = sadd.s32 %s93, 1
      %s95 = scalar_select %p92, %s93, %s94
      %p98 = pneg %p92
      %p99 = scmp.eq.s32.totalorder %s45, 3
      %p100 = por %p98, %p99
      %p101 = scmp.ne.s32.totalorder %s93, %s96
      %p102 = scmp.eq.s32.totalorder %s45, 0
      %p103 = por %p101, %p102
      %p104 = scmp.ne.s32.totalorder %s93, %s96
      %p105 = scmp.eq.s32.totalorder %s50, 3
      %p106 = por %p104, %p105
      %p107 = scmp.ne.s32.totalorder %s96, %s97
      %p108 = scmp.eq.s32.totalorder %s50, 0
      %p109 = por %p107, %p108
      %p110 = scmp.ne.s32.totalorder %s96, %s97
      %p111 = scmp.eq.s32.totalorder %s51, 3
      %p112 = por %p110, %p111
      %p114 = scmp.ne.s32.totalorder %s97, %s113
      %p115 = scmp.eq.s32.totalorder %s51, 0
      %p116 = por %p114, %p115
      %s118 = sadd.s32 %s117, 1
      %p121 = scmp.eq.s32.totalorder %s45, 3
      %p122 = scmp.ne.s32.totalorder %s117, %s119
      %p123 = scmp.eq.s32.totalorder %s45, 0
      %p124 = por %p122, %p123
      %p125 = scmp.ne.s32.totalorder %s117, %s119
      %p126 = scmp.eq.s32.totalorder %s50, 3
      %p127 = por %p125, %p126
      %p128 = scmp.ne.s32.totalorder %s119, %s120
      %p129 = scmp.eq.s32.totalorder %s50, 0
      %p130 = por %p128, %p129
      %p131 = scmp.ne.s32.totalorder %s119, %s120
      %p132 = scmp.eq.s32.totalorder %s51, 3
      %p133 = por %p131, %p132
      %p135 = scmp.ne.s32.totalorder %s120, %s134
      %p136 = scmp.eq.s32.totalorder %s51, 0
      %p137 = por %p135, %p136
      %s139 = sadd.s32 %s138, 1
      %p142 = scmp.eq.s32.totalorder %s45, 3
      %p143 = scmp.ne.s32.totalorder %s138, %s140
      %p144 = scmp.eq.s32.totalorder %s45, 0
      %p145 = por %p143, %p144
      %p146 = scmp.ne.s32.totalorder %s138, %s140
      %p147 = scmp.eq.s32.totalorder %s50, 3
      %p148 = por %p146, %p147
      %p149 = scmp.ne.s32.totalorder %s140, %s141
      %p150 = scmp.eq.s32.totalorder %s50, 0
      %p151 = por %p149, %p150
      %p152 = scmp.ne.s32.totalorder %s140, %s141
      %p153 = scmp.eq.s32.totalorder %s51, 3
      %p154 = por %p152, %p153
      %p156 = scmp.ne.s32.totalorder %s141, %s155
      %p157 = scmp.eq.s32.totalorder %s51, 0
      %p158 = por %p156, %p157
      %s160 = sadd.s32 %s159, 1
      %p163 = scmp.eq.s32.totalorder %s45, 3
      %p164 = scmp.ne.s32.totalorder %s159, %s161
      %p165 = scmp.eq.s32.totalorder %s45, 0
      %p166 = por %p164, %p165
      %p167 = scmp.ne.s32.totalorder %s159, %s161
      %p168 = scmp.eq.s32.totalorder %s50, 3
      %p169 = por %p167, %p168
      %p170 = scmp.ne.s32.totalorder %s161, %s162
      %p171 = scmp.eq.s32.totalorder %s50, 0
      %p172 = por %p170, %p171
      %p173 = scmp.ne.s32.totalorder %s161, %s162
      %p174 = scmp.eq.s32.totalorder %s51, 3
      %p175 = por %p173, %p174
      %p177 = scmp.ne.s32.totalorder %s162, %s176
      %p178 = scmp.eq.s32.totalorder %s51, 0
      %p179 = por %p177, %p178
      %s180 = ssub.s32 %s53, %s60
      %p181 = scmp.eq.s32.totalorder %s180, 0
      %s183 = sadd.s32 %s182, 1
      %s184 = scalar_select %p181, %s182, %s183
      %p187 = pneg %p181
      %p188 = scmp.eq.s32.totalorder %s45, 3
      %p189 = por %p187, %p188
      %p190 = scmp.ne.s32.totalorder %s182, %s185
      %p191 = scmp.eq.s32.totalorder %s45, 0
      %p192 = por %p190, %p191
      %p193 = scmp.ne.s32.totalorder %s182, %s185
      %p194 = scmp.eq.s32.totalorder %s50, 3
      %p195 = por %p193, %p194
      %p196 = scmp.ne.s32.totalorder %s185, %s186
      %p197 = scmp.eq.s32.totalorder %s50, 0
      %p198 = por %p196, %p197
      %p199 = scmp.ne.s32.totalorder %s185, %s186
      %p200 = scmp.eq.s32.totalorder %s51, 3
      %p201 = por %p199, %p200
      %p203 = scmp.ne.s32.totalorder %s186, %s202
      %p204 = scmp.eq.s32.totalorder %s51, 0
      %p205 = por %p203, %p204
      %s206 = ssub.s32 %s53, %s60
      %p207 = scmp.eq.s32.totalorder %s206, 0
      %s209 = sadd.s32 %s208, 1
      %s210 = scalar_select %p207, %s208, %s209
      %p213 = pneg %p207
      %p214 = scmp.eq.s32.totalorder %s45, 3
      %p215 = por %p213, %p214
      %p216 = scmp.ne.s32.totalorder %s208, %s211
      %p217 = scmp.eq.s32.totalorder %s45, 0
      %p218 = por %p216, %p217
      %p219 = scmp.ne.s32.totalorder %s208, %s211
      %p220 = scmp.eq.s32.totalorder %s50, 3
      %p221 = por %p219, %p220
      %p222 = scmp.ne.s32.totalorder %s211, %s212
      %p223 = scmp.eq.s32.totalorder %s50, 0
      %p224 = por %p222, %p223
      %p225 = scmp.ne.s32.totalorder %s211, %s212
      %p226 = scmp.eq.s32.totalorder %s51, 3
      %p227 = por %p225, %p226
      %p229 = scmp.ne.s32.totalorder %s212, %s228
      %p230 = scmp.eq.s32.totalorder %s51, 0
      %p231 = por %p229, %p230
      %s232 = ssub.s32 %s53, %s60
      %p233 = scmp.eq.s32.totalorder %s232, 0
      %s235 = sadd.s32 %s234, 1
      %s236 = scalar_select %p233, %s234, %s235
      %p239 = pneg %p233
      %p240 = scmp.eq.s32.totalorder %s45, 3
      %p241 = por %p239, %p240
      %p242 = scmp.ne.s32.totalorder %s234, %s237
      %p243 = scmp.eq.s32.totalorder %s45, 0
      %p244 = por %p242, %p243
      %p245 = scmp.ne.s32.totalorder %s234, %s237
      %p246 = scmp.eq.s32.totalorder %s50, 3
      %p247 = por %p245, %p246
      %p248 = scmp.ne.s32.totalorder %s237, %s238
      %p249 = scmp.eq.s32.totalorder %s50, 0
      %p250 = por %p248, %p249
      %p251 = scmp.ne.s32.totalorder %s237, %s238
      %p252 = scmp.eq.s32.totalorder %s51, 3
      %p253 = por %p251, %p252
      %p255 = scmp.ne.s32.totalorder %s238, %s254
      %p256 = scmp.eq.s32.totalorder %s51, 0
      %p257 = por %p255, %p256
      %s258 = ssub.s32 %s53, %s60
      %p259 = scmp.eq.s32.totalorder %s258, 0
      %s261 = sadd.s32 %s260, 1
      %s262 = scalar_select %p259, %s260, %s261
      %p265 = pneg %p259
      %p266 = scmp.eq.s32.totalorder %s45, 3
      %p267 = por %p265, %p266
      %p268 = scmp.ne.s32.totalorder %s260, %s263
      %p269 = scmp.eq.s32.totalorder %s45, 0
      %p270 = por %p268, %p269
      %p271 = scmp.ne.s32.totalorder %s260, %s263
      %p272 = scmp.eq.s32.totalorder %s50, 3
      %p273 = por %p271, %p272
      %p274 = scmp.ne.s32.totalorder %s263, %s264
      %p275 = scmp.eq.s32.totalorder %s50, 0
      %p276 = por %p274, %p275
      %p277 = scmp.ne.s32.totalorder %s263, %s264
      %p278 = scmp.eq.s32.totalorder %s51, 3
      %p279 = por %p277, %p278
      %p281 = scmp.ne.s32.totalorder %s264, %s280
      %p282 = scmp.eq.s32.totalorder %s51, 0
      %p283 = por %p281, %p282
      %s284 = ssub.s32 %s53, %s60
      %p285 = scmp.eq.s32.totalorder %s284, 0
      %s287 = sadd.s32 %s286, 1
      %s288 = scalar_select %p285, %s286, %s287
      %p291 = pneg %p285
      %p292 = scmp.eq.s32.totalorder %s45, 3
      %p293 = por %p291, %p292
      %p294 = scmp.ne.s32.totalorder %s286, %s289
      %p295 = scmp.eq.s32.totalorder %s45, 0
      %p296 = por %p294, %p295
      %p297 = scmp.ne.s32.totalorder %s286, %s289
      %p298 = scmp.eq.s32.totalorder %s50, 3
      %p299 = por %p297, %p298
      %p300 = scmp.ne.s32.totalorder %s289, %s290
      %p301 = scmp.eq.s32.totalorder %s50, 0
      %p302 = por %p300, %p301
      %p303 = scmp.ne.s32.totalorder %s289, %s290
      %p304 = scmp.eq.s32.totalorder %s51, 3
      %p305 = por %p303, %p304
      %p307 = scmp.ne.s32.totalorder %s290, %s306
      %p308 = scmp.eq.s32.totalorder %s51, 0
      %p309 = por %p307, %p308
      %s310 = ssub.s32 %s53, %s60
      %p311 = scmp.eq.s32.totalorder %s310, 0
      %s313 = sadd.s32 %s312, 1
      %s314 = scalar_select %p311, %s312, %s313
      %p317 = pneg %p311
      %p318 = scmp.eq.s32.totalorder %s45, 3
      %p319 = por %p317, %p318
      %p320 = scmp.ne.s32.totalorder %s312, %s315
      %p321 = scmp.eq.s32.totalorder %s45, 0
      %p322 = por %p320, %p321
      %p323 = scmp.ne.s32.totalorder %s312, %s315
      %p324 = scmp.eq.s32.totalorder %s50, 3
      %p325 = por %p323, %p324
      %p326 = scmp.ne.s32.totalorder %s315, %s316
      %p327 = scmp.eq.s32.totalorder %s50, 0
      %p328 = por %p326, %p327
      %p329 = scmp.ne.s32.totalorder %s315, %s316
      %p330 = scmp.eq.s32.totalorder %s51, 3
      %p331 = por %p329, %p330
      %p333 = scmp.ne.s32.totalorder %s316, %s332
      %p334 = scmp.eq.s32.totalorder %s51, 0
      %p335 = por %p333, %p334
      %s336 = ssub.s32 %s53, %s60
      %p337 = scmp.eq.s32.totalorder %s336, 0
      %s339 = sadd.s32 %s338, 1
      %s340 = scalar_select %p337, %s338, %s339
      %p343 = pneg %p337
      %p344 = scmp.eq.s32.totalorder %s45, 3
      %p345 = por %p343, %p344
      %p346 = scmp.ne.s32.totalorder %s338, %s341
      %p347 = scmp.eq.s32.totalorder %s45, 0
      %p348 = por %p346, %p347
      %p349 = scmp.ne.s32.totalorder %s338, %s341
      %p350 = scmp.eq.s32.totalorder %s50, 3
      %p351 = por %p349, %p350
      %p352 = scmp.ne.s32.totalorder %s341, %s342
      %p353 = scmp.eq.s32.totalorder %s50, 0
      %p354 = por %p352, %p353
      %p355 = scmp.ne.s32.totalorder %s341, %s342
      %p356 = scmp.eq.s32.totalorder %s51, 3
      %p357 = por %p355, %p356
      %p359 = scmp.ne.s32.totalorder %s342, %s358
      %p360 = scmp.eq.s32.totalorder %s51, 0
      %p361 = por %p359, %p360
      %s362 = ssub.s32 %s53, %s60
      %p363 = scmp.eq.s32.totalorder %s362, 0
      %s365 = sadd.s32 %s364, 1
      %s366 = scalar_select %p363, %s364, %s365
      %p369 = pneg %p363
      %p370 = scmp.eq.s32.totalorder %s45, 3
      %p371 = por %p369, %p370
      %p372 = scmp.ne.s32.totalorder %s364, %s367
      %p373 = scmp.eq.s32.totalorder %s45, 0
      %p374 = por %p372, %p373
      %p375 = scmp.ne.s32.totalorder %s364, %s367
      %p376 = scmp.eq.s32.totalorder %s50, 3
      %p377 = por %p375, %p376
      %p378 = scmp.ne.s32.totalorder %s367, %s368
      %p379 = scmp.eq.s32.totalorder %s50, 0
      %p380 = por %p378, %p379
      %p381 = scmp.ne.s32.totalorder %s367, %s368
      %p382 = scmp.eq.s32.totalorder %s51, 3
      %p383 = por %p381, %p382
      %p385 = scmp.ne.s32.totalorder %s368, %s384
      %p386 = scmp.eq.s32.totalorder %s51, 0
      %p387 = por %p385, %p386
      %s388 = ssub.s32 %s53, %s60
      %p389 = scmp.eq.s32.totalorder %s388, 0
      %s391 = sadd.s32 %s390, 1
      %s392 = scalar_select %p389, %s390, %s391
      %p395 = pneg %p389
      %p396 = scmp.eq.s32.totalorder %s45, 3
      %p397 = por %p395, %p396
      %p398 = scmp.ne.s32.totalorder %s390, %s393
      %p399 = scmp.eq.s32.totalorder %s45, 0
      %p400 = por %p398, %p399
      %p401 = scmp.ne.s32.totalorder %s390, %s393
      %p402 = scmp.eq.s32.totalorder %s50, 3
      %p403 = por %p401, %p402
      %p404 = scmp.ne.s32.totalorder %s393, %s394
      %p405 = scmp.eq.s32.totalorder %s50, 0
      %p406 = por %p404, %p405
      %p407 = scmp.ne.s32.totalorder %s393, %s394
      %p408 = scmp.eq.s32.totalorder %s51, 3
      %p409 = por %p407, %p408
      %p411 = scmp.ne.s32.totalorder %s394, %s410
      %p412 = scmp.eq.s32.totalorder %s51, 0
      %p413 = por %p411, %p412
      %s414 = ssub.s32 %s53, %s60
      %p415 = scmp.eq.s32.totalorder %s414, 0
      %s417 = sadd.s32 %s416, 1
      %s418 = scalar_select %p415, %s416, %s417
      %p421 = pneg %p415
      %p422 = scmp.eq.s32.totalorder %s45, 3
      %p423 = por %p421, %p422
      %p424 = scmp.ne.s32.totalorder %s416, %s419
      %p425 = scmp.eq.s32.totalorder %s45, 0
      %p426 = por %p424, %p425
      %p427 = scmp.ne.s32.totalorder %s416, %s419
      %p428 = scmp.eq.s32.totalorder %s50, 3
      %p429 = por %p427, %p428
      %p430 = scmp.ne.s32.totalorder %s419, %s420
      %p431 = scmp.eq.s32.totalorder %s50, 0
      %p432 = por %p430, %p431
      %p433 = scmp.ne.s32.totalorder %s419, %s420
      %p434 = scmp.eq.s32.totalorder %s51, 3
      %p435 = por %p433, %p434
      %p437 = scmp.ne.s32.totalorder %s420, %s436
      %p438 = scmp.eq.s32.totalorder %s51, 0
      %p439 = por %p437, %p438
      %s440 = ssub.s32 %s53, %s60
      %p441 = scmp.eq.s32.totalorder %s440, 0
      %s443 = sadd.s32 %s442, 1
      %s444 = scalar_select %p441, %s442, %s443
      %p447 = pneg %p441
      %p448 = scmp.eq.s32.totalorder %s45, 3
      %p449 = por %p447, %p448
      %p450 = scmp.ne.s32.totalorder %s442, %s445
      %p451 = scmp.eq.s32.totalorder %s45, 0
      %p452 = por %p450, %p451
      %p453 = scmp.ne.s32.totalorder %s442, %s445
      %p454 = scmp.eq.s32.totalorder %s50, 3
      %p455 = por %p453, %p454
      %p456 = scmp.ne.s32.totalorder %s445, %s446
      %p457 = scmp.eq.s32.totalorder %s50, 0
      %p458 = por %p456, %p457
      %p459 = scmp.ne.s32.totalorder %s445, %s446
      %p460 = scmp.eq.s32.totalorder %s51, 3
      %p461 = por %p459, %p460
      %p463 = scmp.ne.s32.totalorder %s446, %s462
      %p464 = scmp.eq.s32.totalorder %s51, 0
      %p465 = por %p463, %p464
      %s466 = ssub.s32 %s53, %s60
      %p467 = scmp.eq.s32.totalorder %s466, 0
      %s469 = sadd.s32 %s468, 1
      %s470 = scalar_select %p467, %s468, %s469
      %p473 = pneg %p467
      %p474 = scmp.eq.s32.totalorder %s45, 3
      %p475 = por %p473, %p474
      %p476 = scmp.ne.s32.totalorder %s468, %s471
      %p477 = scmp.eq.s32.totalorder %s45, 0
      %p478 = por %p476, %p477
      %p479 = scmp.ne.s32.totalorder %s468, %s471
      %p480 = scmp.eq.s32.totalorder %s50, 3
      %p481 = por %p479, %p480
      %p482 = scmp.ne.s32.totalorder %s471, %s472
      %p483 = scmp.eq.s32.totalorder %s50, 0
      %p484 = por %p482, %p483
      %p485 = scmp.ne.s32.totalorder %s471, %s472
      %p486 = scmp.eq.s32.totalorder %s51, 3
      %p487 = por %p485, %p486
      %p489 = scmp.ne.s32.totalorder %s472, %s488
      %p490 = scmp.eq.s32.totalorder %s51, 0
      %p491 = por %p489, %p490
      %s493 = sadd.s32 %s492, 1
      %p496 = scmp.eq.s32.totalorder %s45, 3
      %p497 = scmp.ne.s32.totalorder %s492, %s494
      %p498 = scmp.eq.s32.totalorder %s45, 0
      %p499 = por %p497, %p498
      %p500 = scmp.ne.s32.totalorder %s492, %s494
      %p501 = scmp.eq.s32.totalorder %s50, 3
      %p502 = por %p500, %p501
      %p503 = scmp.ne.s32.totalorder %s494, %s495
      %p504 = scmp.eq.s32.totalorder %s50, 0
      %p505 = por %p503, %p504
      %p506 = scmp.ne.s32.totalorder %s494, %s495
      %p507 = scmp.eq.s32.totalorder %s51, 3
      %p508 = por %p506, %p507
      %p510 = scmp.ne.s32.totalorder %s495, %s509
      %p511 = scmp.eq.s32.totalorder %s51, 0
      %p512 = por %p510, %p511
      %s514 = sadd.s32 %s513, 1
      %p517 = scmp.eq.s32.totalorder %s45, 3
      %p518 = scmp.ne.s32.totalorder %s513, %s515
      %p519 = scmp.eq.s32.totalorder %s45, 0
      %p520 = por %p518, %p519
      %p521 = scmp.ne.s32.totalorder %s513, %s515
      %p522 = scmp.eq.s32.totalorder %s50, 3
      %p523 = por %p521, %p522
      %p524 = scmp.ne.s32.totalorder %s515, %s516
      %p525 = scmp.eq.s32.totalorder %s50, 0
      %p526 = por %p524, %p525
      %p527 = scmp.ne.s32.totalorder %s515, %s516
      %p528 = scmp.eq.s32.totalorder %s51, 3
      %p529 = por %p527, %p528
      %p531 = scmp.ne.s32.totalorder %s516, %s530
      %p532 = scmp.eq.s32.totalorder %s51, 0
      %p533 = por %p531, %p532
      %s535 = sadd.s32 %s534, 1
      %p538 = scmp.eq.s32.totalorder %s45, 3
      %p539 = scmp.ne.s32.totalorder %s534, %s536
      %p540 = scmp.eq.s32.totalorder %s45, 0
      %p541 = por %p539, %p540
      %p542 = scmp.ne.s32.totalorder %s534, %s536
      %p543 = scmp.eq.s32.totalorder %s50, 3
      %p544 = por %p542, %p543
      %p545 = scmp.ne.s32.totalorder %s536, %s537
      %p546 = scmp.eq.s32.totalorder %s50, 0
      %p547 = por %p545, %p546
      %p548 = scmp.ne.s32.totalorder %s536, %s537
      %p549 = scmp.eq.s32.totalorder %s51, 3
      %p550 = por %p548, %p549
      %p552 = scmp.ne.s32.totalorder %s537, %s551
      %p553 = scmp.eq.s32.totalorder %s51, 0
      %p554 = por %p552, %p553
      %s556 = sadd.s32 %s555, 1
      %p559 = scmp.eq.s32.totalorder %s45, 3
      %p560 = scmp.ne.s32.totalorder %s555, %s557
      %p561 = scmp.eq.s32.totalorder %s45, 0
      %p562 = por %p560, %p561
      %p563 = scmp.ne.s32.totalorder %s555, %s557
      %p564 = scmp.eq.s32.totalorder %s50, 3
      %p565 = por %p563, %p564
      %p566 = scmp.ne.s32.totalorder %s557, %s558
      %p567 = scmp.eq.s32.totalorder %s50, 0
      %p568 = por %p566, %p567
      %p569 = scmp.ne.s32.totalorder %s557, %s558
      %p570 = scmp.eq.s32.totalorder %s51, 3
      %p571 = por %p569, %p570
      %p573 = scmp.ne.s32.totalorder %s558, %s572
      %p574 = scmp.eq.s32.totalorder %s51, 0
      %p575 = por %p573, %p574
      %s576 = ssub.s32 %s52, %s64
      %p577 = scmp.eq.s32.totalorder %s576, 0
      %s579 = sadd.s32 %s578, 1
      %s580 = scalar_select %p577, %s578, %s579
      %p583 = pneg %p577
      %p584 = scmp.eq.s32.totalorder %s45, 3
      %p585 = por %p583, %p584
      %p586 = scmp.ne.s32.totalorder %s578, %s581
      %p587 = scmp.eq.s32.totalorder %s45, 0
      %p588 = por %p586, %p587
      %p589 = scmp.ne.s32.totalorder %s578, %s581
      %p590 = scmp.eq.s32.totalorder %s50, 3
      %p591 = por %p589, %p590
      %p592 = scmp.ne.s32.totalorder %s581, %s582
      %p593 = scmp.eq.s32.totalorder %s50, 0
      %p594 = por %p592, %p593
      %p595 = scmp.ne.s32.totalorder %s581, %s582
      %p596 = scmp.eq.s32.totalorder %s51, 3
      %p597 = por %p595, %p596
      %p599 = scmp.ne.s32.totalorder %s582, %s598
      %p600 = scmp.eq.s32.totalorder %s51, 0
      %p601 = por %p599, %p600
      %p602 = scmp.le.s32.totalorder 1, %s45
      %p603 = scmp.lt.s32.totalorder %s45, 5
      %p604 = pnand %p602, %p603
      %p605 = pneg %p604
      // Predicated region
      $region9: #{encoder_crf_forward.1} parent=5 // pred_check
        _
      $region10: #{encoder_crf_forward.1} parent=5 // pred_check_branch
        %607 = sbr.rel (%p604) target = $region12
      $region11: #{encoder_crf_forward.1} parent=5 // pred_region
        %s608 = ssub.s32 %s45, 1
        // Predicated region
        $region13: #{encoder_crf_forward.1} parent=11 // pred_check
          %p609 = pneg %p130
        $region14: #{encoder_crf_forward.1} parent=11 // pred_check_branch
          %611 = sbr.rel (%p609) target = $region16
        $region15: #{encoder_crf_forward.1} parent=11 // pred_region
          _
        $region16: #{encoder_crf_forward.1} parent=11 // pred_fallthru
          _
        // Predicated region
        $region17: #{encoder_crf_forward.1} parent=11 // pred_check
          %p612 = pneg %p151
        $region18: #{encoder_crf_forward.1} parent=11 // pred_check_branch
          %614 = sbr.rel (%p612) target = $region20
        $region19: #{encoder_crf_forward.1} parent=11 // pred_region
          %s616 = ssub.s32 512, 512
          %617 = vsyncadd [#allocation4], %s616
          %s618 = sshll.u32 [#allocation3], 4
          %s619 = int_to_ptr.vmem [resolvable:$true] %s618
          %624 = dma.hbm_to_vmem [thread:$0]  %s3, 512, %s619, [#allocation4], 128, 128, 8
        $region20: #{encoder_crf_forward.1} parent=11 // pred_fallthru
          _
        // Predicated region
        $region21: #{encoder_crf_forward.1} parent=11 // pred_check
          %p625 = pneg %p172
        $region22: #{encoder_crf_forward.1} parent=11 // pred_check_branch
          %627 = sbr.rel (%p625) target = $region24
        $region23: #{encoder_crf_forward.1} parent=11 // pred_region
          _
        $region24: #{encoder_crf_forward.1} parent=11 // pred_fallthru
          _
        // Predicated region
        $region25: #{encoder_crf_forward.1} parent=11 // pred_check
          %p628 = pneg %p505
        $region26: #{encoder_crf_forward.1} parent=11 // pred_check_branch
          %630 = sbr.rel (%p628) target = $region28
        $region27: #{encoder_crf_forward.1} parent=11 // pred_region
          %s632 = ssub.s32 32, 32
          %633 = vsyncadd [#allocation21], %s632
          %s635 = sshll.u32 [#allocation20], 4
          %s636 = int_to_ptr.vmem [resolvable:$true] %s635
          %638 = dma.hbm_to_vmem [thread:$0]  %s17, 32, %s636, [#allocation21]
        $region28: #{encoder_crf_forward.1} parent=11 // pred_fallthru
          _
        // Predicated region
        $region29: #{encoder_crf_forward.1} parent=11 // pred_check
          %p639 = pneg %p526
        $region30: #{encoder_crf_forward.1} parent=11 // pred_check_branch
          %641 = sbr.rel (%p639) target = $region32
        $region31: #{encoder_crf_forward.1} parent=11 // pred_region
          %s643 = ssub.s32 32, 32
          %644 = vsyncadd [#allocation21], %s643
          %s646 = sshll.u32 [#allocation22], 4
          %s647 = int_to_ptr.vmem [resolvable:$true] %s646
          %649 = dma.hbm_to_vmem [thread:$0]  %s18, 32, %s647, [#allocation21]
        $region32: #{encoder_crf_forward.1} parent=11 // pred_fallthru
          _
        // Predicated region
        $region33: #{encoder_crf_forward.1} parent=11 // pred_check
          %p650 = pneg %p547
        $region34: #{encoder_crf_forward.1} parent=11 // pred_check_branch
          %652 = sbr.rel (%p650) target = $region36
        $region35: #{encoder_crf_forward.1} parent=11 // pred_region
          %s654 = ssub.s32 2048, 2048
          %655 = vsyncadd [#allocation24], %s654
          %s656 = sshll.u32 [#allocation23], 4
          %s657 = int_to_ptr.vmem [resolvable:$true] %s656
          %662 = dma.hbm_to_vmem [thread:$0]  %s19, 2048, %s657, [#allocation24], 64, 64, 4
        $region36: #{encoder_crf_forward.1} parent=11 // pred_fallthru
          _
        // Predicated region
        $region37: #{encoder_crf_forward.1} parent=11 // pred_check
          %p663 = pneg %p568
        $region38: #{encoder_crf_forward.1} parent=11 // pred_check_branch
          %665 = sbr.rel (%p663) target = $region40
        $region39: #{encoder_crf_forward.1} parent=11 // pred_region
          _
        $region40: #{encoder_crf_forward.1} parent=11 // pred_fallthru
          _
      $region12: #{encoder_crf_forward.1} parent=5 // pred_fallthru
        _
      %p666 = scmp.lt.s32.totalorder %s45, 4
      // Predicated region
      $region41: #{encoder_crf_forward.1} parent=5 // pred_check
        %p667 = pneg %p666
      $region42: #{encoder_crf_forward.1} parent=5 // pred_check_branch
        %669 = sbr.rel (%p667) target = $region44
      $region43: #{encoder_crf_forward.1} parent=5 // pred_region
        // Predicated region
        $region45: #{encoder_crf_forward.1} parent=43 // pred_check
          %p670 = pneg %p77
        $region46: #{encoder_crf_forward.1} parent=43 // pred_check_branch
          %672 = sbr.rel (%p670) target = $region48
        $region47: #{encoder_crf_forward.1} parent=43 // pred_region
          %p673 = scmp.lt.s32.totalorder %s52, 1
          %s674 = scalar_select %p673, %s52, 1
          %s675 = smul.addr %s674, 8
          %s676 = scalar_lea.vmem %s0, %s675
        $region48: #{encoder_crf_forward.1} parent=43 // pred_fallthru
          _
        // Predicated region
        $region49: #{encoder_crf_forward.1} parent=43 // pred_check
          %p677 = pneg %p103
        $region50: #{encoder_crf_forward.1} parent=43 // pred_check_branch
          %679 = sbr.rel (%p677) target = $region52
        $region51: #{encoder_crf_forward.1} parent=43 // pred_region
          %p680 = scmp.lt.s32.totalorder %s52, 1
          %s681 = scalar_select %p680, %s52, 1
          %s682 = scalar_lea.vmem %s1, %s681
        $region52: #{encoder_crf_forward.1} parent=43 // pred_fallthru
          _
        // Predicated region
        $region53: #{encoder_crf_forward.1} parent=43 // pred_check
          %p683 = pneg %p192
        $region54: #{encoder_crf_forward.1} parent=43 // pred_check_branch
          %685 = sbr.rel (%p683) target = $region56
        $region55: #{encoder_crf_forward.1} parent=43 // pred_region
          %s686 = sand.u32 %s45, 1
          %s687 = scalar_lea.sflag [#allocation6], %s686
          %s688 = sand.u32 %s182, 1
          %s689 = smul.addr %s688, 768
          %s690 = scalar_lea.vmem [#allocation5], %s689
          %s692 = ssub.s32 12288, 12288
          %693 = vsyncadd %s687, %s692
          %s694 = smul.addr %s53, 192
          %s695 = smul.addr %s694, 64
          %s696 = scalar_lea.hbm %s5, %s695
          %s697 = sshll.u32 %s690, 4
          %s698 = int_to_ptr.vmem [resolvable:$true] %s697
          %703 = dma.hbm_to_vmem [thread:$0]  %s696, 12288, %s698, %s687, 384, 384, 24
        $region56: #{encoder_crf_forward.1} parent=43 // pred_fallthru
          _
        // Predicated region
        $region57: #{encoder_crf_forward.1} parent=43 // pred_check
          %p704 = pneg %p218
        $region58: #{encoder_crf_forward.1} parent=43 // pred_check_branch
          %706 = sbr.rel (%p704) target = $region60
        $region59: #{encoder_crf_forward.1} parent=43 // pred_region
          %s707 = sand.u32 %s45, 1
          %s708 = scalar_lea.sflag [#allocation6], %s707
          %s709 = sand.u32 %s208, 1
          %s710 = smul.addr %s709, 6
          %s711 = scalar_lea.vmem [#allocation7], %s710
          %s713 = ssub.s32 96, 96
          %714 = vsyncadd %s708, %s713
          %s715 = smul.addr %s53, 6
          %s716 = smul.addr %s715, 16
          %s717 = scalar_lea.hbm %s6, %s716
          %s719 = sshll.u32 %s711, 4
          %s720 = int_to_ptr.vmem [resolvable:$true] %s719
          %722 = dma.hbm_to_vmem [thread:$0]  %s717, 96, %s720, %s708
        $region60: #{encoder_crf_forward.1} parent=43 // pred_fallthru
          _
        // Predicated region
        $region61: #{encoder_crf_forward.1} parent=43 // pred_check
          %p723 = pneg %p244
        $region62: #{encoder_crf_forward.1} parent=43 // pred_check_branch
          %725 = sbr.rel (%p723) target = $region64
        $region63: #{encoder_crf_forward.1} parent=43 // pred_region
          %p726 = scmp.lt.s32.totalorder %s53, 1
          %s727 = scalar_select %p726, %s53, 1
          %s728 = smul.addr %s727, 64
          %s729 = smul.addr %s728, 4
          %s730 = scalar_lea.vmem %s7, %s729
        $region64: #{encoder_crf_forward.1} parent=43 // pred_fallthru
          _
        // Predicated region
        $region65: #{encoder_crf_forward.1} parent=43 // pred_check
          %p731 = pneg %p270
        $region66: #{encoder_crf_forward.1} parent=43 // pred_check_branch
          %733 = sbr.rel (%p731) target = $region68
        $region67: #{encoder_crf_forward.1} parent=43 // pred_region
          %s734 = sand.u32 %s45, 1
          %s735 = scalar_lea.sflag [#allocation9], %s734
          %s736 = sand.u32 %s260, 1
          %s737 = smul.addr %s736, 2
          %s738 = scalar_lea.vmem [#allocation8], %s737
          %s740 = ssub.s32 32, 32
          %741 = vsyncadd %s735, %s740
          %s742 = smul.addr %s53, 2
          %s743 = smul.addr %s742, 16
          %s744 = scalar_lea.hbm %s8, %s743
          %s746 = sshll.u32 %s738, 4
          %s747 = int_to_ptr.vmem [resolvable:$true] %s746
          %749 = dma.hbm_to_vmem [thread:$0]  %s744, 32, %s747, %s735
        $region68: #{encoder_crf_forward.1} parent=43 // pred_fallthru
          _
        // Predicated region
        $region69: #{encoder_crf_forward.1} parent=43 // pred_check
          %p750 = pneg %p296
        $region70: #{encoder_crf_forward.1} parent=43 // pred_check_branch
          %752 = sbr.rel (%p750) target = $region72
        $region71: #{encoder_crf_forward.1} parent=43 // pred_region
          %s753 = sand.u32 %s45, 1
          %s754 = scalar_lea.sflag [#allocation9], %s753
          %s755 = sand.u32 %s286, 1
          %s756 = smul.addr %s755, 2
          %s757 = scalar_lea.vmem [#allocation10], %s756
          %s759 = ssub.s32 32, 32
          %760 = vsyncadd %s754, %s759
          %s761 = smul.addr %s53, 2
          %s762 = smul.addr %s761, 16
          %s763 = scalar_lea.hbm %s9, %s762
          %s765 = sshll.u32 %s757, 4
          %s766 = int_to_ptr.vmem [resolvable:$true] %s765
          %768 = dma.hbm_to_vmem [thread:$0]  %s763, 32, %s766, %s754
        $region72: #{encoder_crf_forward.1} parent=43 // pred_fallthru
          _
        // Predicated region
        $region73: #{encoder_crf_forward.1} parent=43 // pred_check
          %p769 = pneg %p322
        $region74: #{encoder_crf_forward.1} parent=43 // pred_check_branch
          %771 = sbr.rel (%p769) target = $region76
        $region75: #{encoder_crf_forward.1} parent=43 // pred_region
          %s772 = sand.u32 %s45, 1
          %s773 = scalar_lea.sflag [#allocation12], %s772
          %s774 = sand.u32 %s312, 1
          %s775 = smul.addr %s774, 2
          %s776 = scalar_lea.vmem [#allocation11], %s775
          %s778 = ssub.s32 32, 32
          %779 = vsyncadd %s773, %s778
          %s780 = smul.addr %s53, 2
          %s781 = smul.addr %s780, 16
          %s782 = scalar_lea.hbm %s10, %s781
          %s784 = sshll.u32 %s776, 4
          %s785 = int_to_ptr.vmem [resolvable:$true] %s784
          %787 = dma.hbm_to_vmem [thread:$0]  %s782, 32, %s785, %s773
        $region76: #{encoder_crf_forward.1} parent=43 // pred_fallthru
          _
        // Predicated region
        $region77: #{encoder_crf_forward.1} parent=43 // pred_check
          %p788 = pneg %p348
        $region78: #{encoder_crf_forward.1} parent=43 // pred_check_branch
          %790 = sbr.rel (%p788) target = $region80
        $region79: #{encoder_crf_forward.1} parent=43 // pred_region
          %p791 = scmp.lt.s32.totalorder %s53, 1
          %s792 = scalar_select %p791, %s53, 1
          %s793 = smul.addr %s792, 32
          %s794 = smul.addr %s793, 4
          %s795 = scalar_lea.vmem %s11, %s794
        $region80: #{encoder_crf_forward.1} parent=43 // pred_fallthru
          _
        // Predicated region
        $region81: #{encoder_crf_forward.1} parent=43 // pred_check
          %p796 = pneg %p374
        $region82: #{encoder_crf_forward.1} parent=43 // pred_check_branch
          %798 = sbr.rel (%p796) target = $region84
        $region83: #{encoder_crf_forward.1} parent=43 // pred_region
          %s799 = sand.u32 %s45, 1
          %s800 = scalar_lea.sflag [#allocation12], %s799
          %s801 = sand.u32 %s364, 1
          %s802 = scalar_lea.vmem [#allocation13], %s801
          %s804 = ssub.s32 16, 16
          %805 = vsyncadd %s800, %s804
          %s806 = smul.addr %s53, 16
          %s807 = scalar_lea.hbm %s12, %s806
          %s809 = sshll.u32 %s802, 4
          %s810 = int_to_ptr.vmem [resolvable:$true] %s809
          %812 = dma.hbm_to_vmem [thread:$0]  %s807, 16, %s810, %s800
        $region84: #{encoder_crf_forward.1} parent=43 // pred_fallthru
          _
        // Predicated region
        $region85: #{encoder_crf_forward.1} parent=43 // pred_check
          %p813 = pneg %p400
        $region86: #{encoder_crf_forward.1} parent=43 // pred_check_branch
          %815 = sbr.rel (%p813) target = $region88
        $region87: #{encoder_crf_forward.1} parent=43 // pred_region
          %s816 = sand.u32 %s45, 1
          %s817 = scalar_lea.sflag [#allocation15], %s816
          %s818 = sand.u32 %s390, 1
          %s819 = smul.addr %s818, 64
          %s820 = scalar_lea.vmem [#allocation14], %s819
          %s822 = ssub.s32 1024, 1024
          %823 = vsyncadd %s817, %s822
          %s824 = smul.addr %s53, 16
          %s825 = smul.addr %s824, 64
          %s826 = scalar_lea.hbm %s13, %s825
          %s827 = sshll.u32 %s820, 4
          %s828 = int_to_ptr.vmem [resolvable:$true] %s827
          %833 = dma.hbm_to_vmem [thread:$0]  %s826, 1024, %s828, %s817, 128, 128, 8
        $region88: #{encoder_crf_forward.1} parent=43 // pred_fallthru
          _
        // Predicated region
        $region89: #{encoder_crf_forward.1} parent=43 // pred_check
          %p834 = pneg %p426
        $region90: #{encoder_crf_forward.1} parent=43 // pred_check_branch
          %836 = sbr.rel (%p834) target = $region92
        $region91: #{encoder_crf_forward.1} parent=43 // pred_region
          %s837 = sand.u32 %s45, 1
          %s838 = scalar_lea.sflag [#allocation15], %s837
          %s839 = sand.u32 %s416, 1
          %s840 = smul.addr %s839, 2
          %s841 = scalar_lea.vmem [#allocation16], %s840
          %s843 = ssub.s32 32, 32
          %844 = vsyncadd %s838, %s843
          %s845 = smul.addr %s53, 2
          %s846 = smul.addr %s845, 16
          %s847 = scalar_lea.hbm %s14, %s846
          %s849 = sshll.u32 %s841, 4
          %s850 = int_to_ptr.vmem [resolvable:$true] %s849
          %852 = dma.hbm_to_vmem [thread:$0]  %s847, 32, %s850, %s838
        $region92: #{encoder_crf_forward.1} parent=43 // pred_fallthru
          _
        // Predicated region
        $region93: #{encoder_crf_forward.1} parent=43 // pred_check
          %p853 = pneg %p452
        $region94: #{encoder_crf_forward.1} parent=43 // pred_check_branch
          %855 = sbr.rel (%p853) target = $region96
        $region95: #{encoder_crf_forward.1} parent=43 // pred_region
          %s856 = sand.u32 %s45, 1
          %s857 = scalar_lea.sflag [#allocation18], %s856
          %s858 = sand.u32 %s442, 1
          %s859 = smul.addr %s858, 2
          %s860 = scalar_lea.vmem [#allocation17], %s859
          %s862 = ssub.s32 32, 32
          %863 = vsyncadd %s857, %s862
          %s864 = smul.addr %s53, 2
          %s865 = smul.addr %s864, 16
          %s866 = scalar_lea.hbm %s15, %s865
          %s868 = sshll.u32 %s860, 4
          %s869 = int_to_ptr.vmem [resolvable:$true] %s868
          %871 = dma.hbm_to_vmem [thread:$0]  %s866, 32, %s869, %s857
        $region96: #{encoder_crf_forward.1} parent=43 // pred_fallthru
          _
        // Predicated region
        $region97: #{encoder_crf_forward.1} parent=43 // pred_check
          %p872 = pneg %p478
        $region98: #{encoder_crf_forward.1} parent=43 // pred_check_branch
          %874 = sbr.rel (%p872) target = $region100
        $region99: #{encoder_crf_forward.1} parent=43 // pred_region
          %s875 = sand.u32 %s45, 1
          %s876 = scalar_lea.sflag [#allocation18], %s875
          %s877 = sand.u32 %s468, 1
          %s878 = smul.addr %s877, 2
          %s879 = scalar_lea.vmem [#allocation19], %s878
          %s881 = ssub.s32 32, 32
          %882 = vsyncadd %s876, %s881
          %s883 = smul.addr %s53, 2
          %s884 = smul.addr %s883, 16
          %s885 = scalar_lea.hbm %s16, %s884
          %s887 = sshll.u32 %s879, 4
          %s888 = int_to_ptr.vmem [resolvable:$true] %s887
          %890 = dma.hbm_to_vmem [thread:$0]  %s885, 32, %s888, %s876
        $region100: #{encoder_crf_forward.1} parent=43 // pred_fallthru
          _
      $region44: #{encoder_crf_forward.1} parent=5 // pred_fallthru
        _
      %p891 = scmp.le.s32.totalorder 1, %s45
      %p892 = scmp.lt.s32.totalorder %s45, 5
      %p893 = pnand %p891, %p892
      %p894 = pneg %p893
      // Predicated region
      $region101: #{encoder_crf_forward.1} parent=5 // pred_check
        _
      $region102: #{encoder_crf_forward.1} parent=5 // pred_check_branch
        %896 = sbr.rel (%p893) target = $region104
      $region103: #{encoder_crf_forward.1} parent=5 // pred_region
        %s897 = ssub.s32 %s45, 1
        // Predicated region
        $region105: #{encoder_crf_forward.1} parent=103 // pred_check
          %p898 = pneg %p151
        $region106: #{encoder_crf_forward.1} parent=103 // pred_check_branch
          %900 = sbr.rel (%p898) target = $region108
        $region107: #{encoder_crf_forward.1} parent=103 // pred_region
          %901 = dma.done [#allocation4], 512
        $region108: #{encoder_crf_forward.1} parent=103 // pred_fallthru
          _
        %s902 = sand.u32 %s50, 1
        %s903 = scalar_lea.sflag [#allocation6], %s902
        %s904 = sand.u32 %s185, 1
        %s905 = smul.addr %s904, 768
        %s906 = scalar_lea.vmem [#allocation5], %s905
        // Predicated region
        $region109: #{encoder_crf_forward.1} parent=103 // pred_check
          %p907 = pneg %p198
        $region110: #{encoder_crf_forward.1} parent=103 // pred_check_branch
          %909 = sbr.rel (%p907) target = $region112
        $region111: #{encoder_crf_forward.1} parent=103 // pred_region
          %910 = dma.done %s903, 12288
        $region112: #{encoder_crf_forward.1} parent=103 // pred_fallthru
          _
        %s911 = sand.u32 %s50, 1
        %s912 = scalar_lea.sflag [#allocation6], %s911
        %s913 = sand.u32 %s211, 1
        %s914 = smul.addr %s913, 6
        %s915 = scalar_lea.vmem [#allocation7], %s914
        // Predicated region
        $region113: #{encoder_crf_forward.1} parent=103 // pred_check
          %p916 = pneg %p224
        $region114: #{encoder_crf_forward.1} parent=103 // pred_check_branch
          %918 = sbr.rel (%p916) target = $region116
        $region115: #{encoder_crf_forward.1} parent=103 // pred_region
          %919 = dma.done %s912, 96
        $region116: #{encoder_crf_forward.1} parent=103 // pred_fallthru
          _
        %s920 = sand.u32 %s50, 1
        %s921 = scalar_lea.sflag [#allocation9], %s920
        %s922 = sand.u32 %s263, 1
        %s923 = smul.addr %s922, 2
        %s924 = scalar_lea.vmem [#allocation8], %s923
        // Predicated region
        $region117: #{encoder_crf_forward.1} parent=103 // pred_check
          %p925 = pneg %p276
        $region118: #{encoder_crf_forward.1} parent=103 // pred_check_branch
          %927 = sbr.rel (%p925) target = $region120
        $region119: #{encoder_crf_forward.1} parent=103 // pred_region
          %928 = dma.done %s921, 32
        $region120: #{encoder_crf_forward.1} parent=103 // pred_fallthru
          _
        %s929 = sand.u32 %s50, 1
        %s930 = scalar_lea.sflag [#allocation9], %s929
        %s931 = sand.u32 %s289, 1
        %s932 = smul.addr %s931, 2
        %s933 = scalar_lea.vmem [#allocation10], %s932
        // Predicated region
        $region121: #{encoder_crf_forward.1} parent=103 // pred_check
          %p934 = pneg %p302
        $region122: #{encoder_crf_forward.1} parent=103 // pred_check_branch
          %936 = sbr.rel (%p934) target = $region124
        $region123: #{encoder_crf_forward.1} parent=103 // pred_region
          %937 = dma.done %s930, 32
        $region124: #{encoder_crf_forward.1} parent=103 // pred_fallthru
          _
        %s938 = sand.u32 %s50, 1
        %s939 = scalar_lea.sflag [#allocation12], %s938
        %s940 = sand.u32 %s315, 1
        %s941 = smul.addr %s940, 2
        %s942 = scalar_lea.vmem [#allocation11], %s941
        // Predicated region
        $region125: #{encoder_crf_forward.1} parent=103 // pred_check
          %p943 = pneg %p328
        $region126: #{encoder_crf_forward.1} parent=103 // pred_check_branch
          %945 = sbr.rel (%p943) target = $region128
        $region127: #{encoder_crf_forward.1} parent=103 // pred_region
          %946 = dma.done %s939, 32
        $region128: #{encoder_crf_forward.1} parent=103 // pred_fallthru
          _
        %s947 = sand.u32 %s50, 1
        %s948 = scalar_lea.sflag [#allocation12], %s947
        %s949 = sand.u32 %s367, 1
        %s950 = scalar_lea.vmem [#allocation13], %s949
        // Predicated region
        $region129: #{encoder_crf_forward.1} parent=103 // pred_check
          %p951 = pneg %p380
        $region130: #{encoder_crf_forward.1} parent=103 // pred_check_branch
          %953 = sbr.rel (%p951) target = $region132
        $region131: #{encoder_crf_forward.1} parent=103 // pred_region
          %954 = dma.done %s948, 16
        $region132: #{encoder_crf_forward.1} parent=103 // pred_fallthru
          _
        %s955 = sand.u32 %s50, 1
        %s956 = scalar_lea.sflag [#allocation15], %s955
        %s957 = sand.u32 %s393, 1
        %s958 = smul.addr %s957, 64
        %s959 = scalar_lea.vmem [#allocation14], %s958
        // Predicated region
        $region133: #{encoder_crf_forward.1} parent=103 // pred_check
          %p960 = pneg %p406
        $region134: #{encoder_crf_forward.1} parent=103 // pred_check_branch
          %962 = sbr.rel (%p960) target = $region136
        $region135: #{encoder_crf_forward.1} parent=103 // pred_region
          %963 = dma.done %s956, 1024
        $region136: #{encoder_crf_forward.1} parent=103 // pred_fallthru
          _
        %s964 = sand.u32 %s50, 1
        %s965 = scalar_lea.sflag [#allocation15], %s964
        %s966 = sand.u32 %s419, 1
        %s967 = smul.addr %s966, 2
        %s968 = scalar_lea.vmem [#allocation16], %s967
        // Predicated region
        $region137: #{encoder_crf_forward.1} parent=103 // pred_check
          %p969 = pneg %p432
        $region138: #{encoder_crf_forward.1} parent=103 // pred_check_branch
          %971 = sbr.rel (%p969) target = $region140
        $region139: #{encoder_crf_forward.1} parent=103 // pred_region
          %972 = dma.done %s965, 32
        $region140: #{encoder_crf_forward.1} parent=103 // pred_fallthru
          _
        %s973 = sand.u32 %s50, 1
        %s974 = scalar_lea.sflag [#allocation18], %s973
        %s975 = sand.u32 %s445, 1
        %s976 = smul.addr %s975, 2
        %s977 = scalar_lea.vmem [#allocation17], %s976
        // Predicated region
        $region141: #{encoder_crf_forward.1} parent=103 // pred_check
          %p978 = pneg %p458
        $region142: #{encoder_crf_forward.1} parent=103 // pred_check_branch
          %980 = sbr.rel (%p978) target = $region144
        $region143: #{encoder_crf_forward.1} parent=103 // pred_region
          %981 = dma.done %s974, 32
        $region144: #{encoder_crf_forward.1} parent=103 // pred_fallthru
          _
        %s982 = sand.u32 %s50, 1
        %s983 = scalar_lea.sflag [#allocation18], %s982
        %s984 = sand.u32 %s471, 1
        %s985 = smul.addr %s984, 2
        %s986 = scalar_lea.vmem [#allocation19], %s985
        // Predicated region
        $region145: #{encoder_crf_forward.1} parent=103 // pred_check
          %p987 = pneg %p484
        $region146: #{encoder_crf_forward.1} parent=103 // pred_check_branch
          %989 = sbr.rel (%p987) target = $region148
        $region147: #{encoder_crf_forward.1} parent=103 // pred_region
          %990 = dma.done %s983, 32
        $region148: #{encoder_crf_forward.1} parent=103 // pred_fallthru
          _
        // Predicated region
        $region149: #{encoder_crf_forward.1} parent=103 // pred_check
          %p991 = pneg %p505
        $region150: #{encoder_crf_forward.1} parent=103 // pred_check_branch
          %993 = sbr.rel (%p991) target = $region152
        $region151: #{encoder_crf_forward.1} parent=103 // pred_region
          %994 = dma.done [#allocation21], 32
        $region152: #{encoder_crf_forward.1} parent=103 // pred_fallthru
          _
        // Predicated region
        $region153: #{encoder_crf_forward.1} parent=103 // pred_check
          %p995 = pneg %p526
        $region154: #{encoder_crf_forward.1} parent=103 // pred_check_branch
          %997 = sbr.rel (%p995) target = $region156
        $region155: #{encoder_crf_forward.1} parent=103 // pred_region
          %998 = dma.done [#allocation21], 32
        $region156: #{encoder_crf_forward.1} parent=103 // pred_fallthru
          _
        // Predicated region
        $region157: #{encoder_crf_forward.1} parent=103 // pred_check
          %p999 = pneg %p547
        $region158: #{encoder_crf_forward.1} parent=103 // pred_check_branch
          %1001 = sbr.rel (%p999) target = $region160
        $region159: #{encoder_crf_forward.1} parent=103 // pred_region
          %1002 = dma.done [#allocation24], 2048
        $region160: #{encoder_crf_forward.1} parent=103 // pred_fallthru
          _
        %p1003 = scmp.lt.s32.totalorder %s54, 1
        %s1004 = scalar_select %p1003, %s54, 1
        %s1005 = smul.addr %s1004, 8
        %s1006 = scalar_lea.vmem %s0, %s1005
        %p1007 = pneg %p83
        %p1008 = pneg %p80
        %p1009 = scmp.lt.s32.totalorder %s54, 1
        %s1010 = scalar_select %p1009, %s54, 1
        %s1011 = scalar_lea.vmem %s1, %s1010
        %p1012 = pneg %p109
        %p1013 = pneg %p106
        %p1014 = pneg %p130
        %p1015 = pneg %p127
        %p1016 = pneg %p151
        %p1017 = pneg %p148
        %p1018 = pneg %p172
        %p1019 = pneg %p169
        %s1020 = sand.u32 %s50, 1
        %s1021 = scalar_lea.sflag [#allocation6], %s1020
        %s1022 = sand.u32 %s185, 1
        %s1023 = smul.addr %s1022, 768
        %s1024 = scalar_lea.vmem [#allocation5], %s1023
        %p1025 = pneg %p198
        %p1026 = pneg %p195
        %s1027 = sand.u32 %s50, 1
        %s1028 = scalar_lea.sflag [#allocation6], %s1027
        %s1029 = sand.u32 %s211, 1
        %s1030 = smul.addr %s1029, 6
        %s1031 = scalar_lea.vmem [#allocation7], %s1030
        %p1032 = pneg %p224
        %p1033 = pneg %p221
        %p1034 = scmp.lt.s32.totalorder %s55, 1
        %s1035 = scalar_select %p1034, %s55, 1
        %s1036 = smul.addr %s1035, 64
        %s1037 = smul.addr %s1036, 4
        %s1038 = scalar_lea.vmem %s7, %s1037
        %p1039 = pneg %p250
        %p1040 = pneg %p247
        %s1041 = sand.u32 %s50, 1
        %s1042 = scalar_lea.sflag [#allocation9], %s1041
        %s1043 = sand.u32 %s263, 1
        %s1044 = smul.addr %s1043, 2
        %s1045 = scalar_lea.vmem [#allocation8], %s1044
        %p1046 = pneg %p276
        %p1047 = pneg %p273
        %s1048 = sand.u32 %s50, 1
        %s1049 = scalar_lea.sflag [#allocation9], %s1048
        %s1050 = sand.u32 %s289, 1
        %s1051 = smul.addr %s1050, 2
        %s1052 = scalar_lea.vmem [#allocation10], %s1051
        %p1053 = pneg %p302
        %p1054 = pneg %p299
        %s1055 = sand.u32 %s50, 1
        %s1056 = scalar_lea.sflag [#allocation12], %s1055
        %s1057 = sand.u32 %s315, 1
        %s1058 = smul.addr %s1057, 2
        %s1059 = scalar_lea.vmem [#allocation11], %s1058
        %p1060 = pneg %p328
        %p1061 = pneg %p325
        %p1062 = scmp.lt.s32.totalorder %s55, 1
        %s1063 = scalar_select %p1062, %s55, 1
        %s1064 = smul.addr %s1063, 32
        %s1065 = smul.addr %s1064, 4
        %s1066 = scalar_lea.vmem %s11, %s1065
        %p1067 = pneg %p354
        %p1068 = pneg %p351
        %s1069 = sand.u32 %s50, 1
        %s1070 = scalar_lea.sflag [#allocation12], %s1069
        %s1071 = sand.u32 %s367, 1
        %s1072 = scalar_lea.vmem [#allocation13], %s1071
        %p1073 = pneg %p380
        %p1074 = pneg %p377
        %s1075 = sand.u32 %s50, 1
        %s1076 = scalar_lea.sflag [#allocation15], %s1075
        %s1077 = sand.u32 %s393, 1
        %s1078 = smul.addr %s1077, 64
        %s1079 = scalar_lea.vmem [#allocation14], %s1078
        %p1080 = pneg %p406
        %p1081 = pneg %p403
        %s1082 = sand.u32 %s50, 1
        %s1083 = scalar_lea.sflag [#allocation15], %s1082
        %s1084 = sand.u32 %s419, 1
        %s1085 = smul.addr %s1084, 2
        %s1086 = scalar_lea.vmem [#allocation16], %s1085
        %p1087 = pneg %p432
        %p1088 = pneg %p429
        %s1089 = sand.u32 %s50, 1
        %s1090 = scalar_lea.sflag [#allocation18], %s1089
        %s1091 = sand.u32 %s445, 1
        %s1092 = smul.addr %s1091, 2
        %s1093 = scalar_lea.vmem [#allocation17], %s1092
        %p1094 = pneg %p458
        %p1095 = pneg %p455
        %s1096 = sand.u32 %s50, 1
        %s1097 = scalar_lea.sflag [#allocation18], %s1096
        %s1098 = sand.u32 %s471, 1
        %s1099 = smul.addr %s1098, 2
        %s1100 = scalar_lea.vmem [#allocation19], %s1099
        %p1101 = pneg %p484
        %p1102 = pneg %p481
        %p1103 = pneg %p505
        %p1104 = pneg %p502
        %p1105 = pneg %p526
        %p1106 = pneg %p523
        %p1107 = pneg %p547
        %p1108 = pneg %p544
        %p1109 = pneg %p568
        %p1110 = pneg %p565
        %p1111 = pneg %p594
        %p1112 = pneg %p591
        %p1113 = scmp.lt.s32.totalorder %s54, 1
        %s1114 = scalar_select %p1113, %s54, 1
        %s1115 = smul.addr %s1114, 8
        %s1116 = scalar_lea.vmem %s21, %s1115
        %p1117 = scmp.lt.s32.totalorder %s54, 1
        %s1118 = scalar_select %p1117, %s54, 1
        %s1119 = smul.addr %s1118, 8
        %s1120 = scalar_lea.vmem %s0, %s1119
        %p1121 = scmp.lt.s32.totalorder %s54, 1
        %s1122 = scalar_select %p1121, %s54, 1
        %s1123 = scalar_lea.vmem %s1, %s1122
        %p1124 = scmp.lt.s32.totalorder %s55, 1
        %s1125 = scalar_select %p1124, %s55, 1
        %s1126 = smul.addr %s1125, 64
        %s1127 = smul.addr %s1126, 4
        %s1128 = scalar_lea.vmem %s7, %s1127
        %p1129 = scmp.lt.s32.totalorder %s55, 1
        %s1130 = scalar_select %p1129, %s55, 1
        %s1131 = smul.addr %s1130, 32
        %s1132 = smul.addr %s1131, 4
        %s1133 = scalar_lea.vmem %s11, %s1132
        %p1134 = scmp.lt.s32.totalorder %s54, 1
        %s1135 = scalar_select %p1134, %s54, 1
        %s1136 = smul.addr %s1135, 8
        %s1137 = scalar_lea.vmem %s21, %s1136
        %p1139 = scmp.eq.s32.totalorder %s55, 0
        // Predicated region
        $region161: #{encoder_crf_forward.1} parent=103 // pred_check
          %p1140 = pneg %p1139
        $region162: #{encoder_crf_forward.1} parent=103 // pred_check_branch
          %1142 = sbr.rel (%p1140) target = $region164
        $region163: #{encoder_crf_forward.1} parent=103 // pred_region
          %v1143 = vld [vmem:[%s1120] sm:$0xff]
          %v1144 = vpack.c.bf16 %v1143, %v1143
          %v1145 = vld [vmem:[#allocation3] sm:$0xff]
          %v1146 = vld [vmem:[#allocation3 + $0x8] sm:$0xff]
          %v1147 = vld [vmem:[#allocation3 + $0x10] sm:$0xff]
          %v1148 = vld [vmem:[#allocation3 + $0x18] sm:$0xff]
          %v1149 = vld [vmem:[%s4] sm:$0x3]
          %v1151 = vlaneseq
          %v1152 = vshrl.u32 %v1151, 7
          %v1153 = vsub.s32 0, %v1152
          %v1154 = vrot.slane %v1149, %v1153
          %v1155 = vlaneseq
          %v1156 = vshrl.u32 %v1155, 7
          %v1157 = vsub.s32 1, %v1156
          %v1158 = vrot.slane %v1149, %v1157
          %v1165 = vunpack.c.l.b16 %v1145
          %v1166 = vunpack.c.h.b16 %v1145
          %v1167 = vunpack.c.l.b16 %v1146
          %v1168 = vunpack.c.h.b16 %v1146
          %v1169 = vunpack.c.l.b16 %v1147
          %v1170 = vunpack.c.h.b16 %v1147
          %v1171 = vunpack.c.l.b16 %v1148
          %v1172 = vunpack.c.h.b16 %v1148
          %v1173 = vpack.c.b16 %v1167, %v1165
          %v1174 = vpack.c.b16 %v1168, %v1166
          %v1175 = vpack.c.b16 %v1171, %v1169
          %v1176 = vpack.c.b16 %v1172, %v1170
          %vm1181 = vcmask 261120
          %v1183 = vsel %vm1181, %v1144, 0
          %1185 = vmatprep.subr.bf16.mxu0 0
          %1186 = vmatpush1.bf16.msra.mxu0 0
          %1187 = vmatprep.subr.bf16.mxu0 0
          %1188 = vmatpush1.bf16.msra.mxu0 0
          %1189 = vmatprep.subr.bf16.mxu0 0
          %1190 = vmatpush1.bf16.msra.mxu0 0
          %1191 = vmatprep.subr.bf16.mxu0 0
          %1192 = vmatpush1.bf16.msra.mxu0 0
          %1193 = vmatprep.subr.bf16.mxu0 0
          %1194 = vmatpush1.bf16.msra.mxu0 0
          %1195 = vmatprep.subr.bf16.mxu0 0
          %1196 = vmatpush1.bf16.msra.mxu0 0
          %1197 = vmatprep.subr.bf16.mxu0 %v1176
          %1198 = vmatpush1.bf16.msra.mxu0 %v1175
          %1199 = vmatprep.subr.bf16.mxu0 %v1174
          %1200 = vmatpush1.bf16.msra.mxu0 %v1173
          %1201 = vmatprep.subr.bf16.mxu0 0
          %1202 = vmatpush2.bf16.msra.mxu0 0
          %1203 = vmatprep.subr.bf16.mxu0 0
          %1204 = vmatpush2.bf16.msra.mxu0 0
          %1205 = vmatprep.subr.bf16.mxu0 0
          %1206 = vmatpush2.bf16.msra.mxu0 0
          %1207 = vmatprep.subr.bf16.mxu0 0
          %1208 = vmatpush2.bf16.msra.mxu0 0
          %1209 = vmatprep.subr.bf16.mxu0 0
          %1210 = vmatpush2.bf16.msra.mxu0 0
          %1211 = vmatprep.subr.bf16.mxu0 0
          %1212 = vmatpush2.bf16.msra.mxu0 0
          %1213 = vmatprep.subr.bf16.mxu0 0
          %1214 = vmatpush2.bf16.msra.mxu0 0
          %1215 = vmatprep.subr.bf16.mxu0 0
          %1216 = vmatpush2.bf16.msra.mxu0 0
          %1217 = vmatprep.mubr.bf16.mxu0 0
          %1218 = vmatmul.mubr.bf16.gmra.mxu0 %v1183
          %v1219 = vpop.f32.mrf.mxu0
          %v1220 = vadd.f32 %v1154, %v1219
          %v1221 = vpop.f32.mrf.mxu0
          %v1222 = vadd.f32 %v1158, %v1221
          %v1223 = vpop.f32.mrf.mxu0
          %v1224 = vpop.f32.mrf.mxu0
          %1225 = vdwg.mxu0
          %v1226 = vmul.f32 %v1220, 16.0
          %v1227 = vmul.f32 %v1222, 16.0
          %v1228 = vld [vmem:[%s2] sm:$0xff]
          %v1229 = vld [vmem:[%s2 + $0x8] sm:$0xff]
          %v1230 = vadd.f32 %v1226, %v1228
          %v1231 = vadd.f32 %v1227, %v1229
          %1232 = vst [vmem:[#allocation2] sm:$0xff] %v1230
          %1233 = vst [vmem:[#allocation2 + $0x8] sm:$0xff] %v1231
        $region164: #{encoder_crf_forward.1} parent=103 // pred_fallthru
          _
        %v1234 = vld [vmem:[#allocation2] sm:$0xff]
        %v1235 = vld [vmem:[#allocation2 + $0x8] sm:$0xff]
        %v1236 = vld [vmem:[%s1123] sm:$0x1]
        %v1237 = vpack.c.bf16 %v1234, %v1234
        %v1238 = vpack.c.bf16 %v1235, %v1235
        %v1239 = vld [vmem:[%s906] sm:$0xff]
        %v1240 = vld [vmem:[%s906 + $0x8] sm:$0xff]
        %v1241 = vld [vmem:[%s906 + $0x10] sm:$0xff]
        %v1242 = vld [vmem:[%s906 + $0x18] sm:$0xff]
        %v1243 = vld [vmem:[%s906 + $0x20] sm:$0xff]
        %v1244 = vld [vmem:[%s906 + $0x28] sm:$0xff]
        %v1245 = vld [vmem:[%s906 + $0x30] sm:$0xff]
        %v1246 = vld [vmem:[%s906 + $0x38] sm:$0xff]
        %v1247 = vld [vmem:[%s906 + $0x40] sm:$0xff]
        %v1248 = vld [vmem:[%s906 + $0x48] sm:$0xff]
        %v1249 = vld [vmem:[%s906 + $0x50] sm:$0xff]
        %v1250 = vld [vmem:[%s906 + $0x58] sm:$0xff]
        %v1251 = vld [vmem:[%s906 + $0x60] sm:$0xff]
        %v1252 = vld [vmem:[%s906 + $0x68] sm:$0xff]
        %v1253 = vld [vmem:[%s906 + $0x70] sm:$0xff]
        %v1254 = vld [vmem:[%s906 + $0x78] sm:$0xff]
        %v1255 = vld [vmem:[%s906 + $0x80] sm:$0xff]
        %v1256 = vld [vmem:[%s906 + $0x88] sm:$0xff]
        %v1257 = vld [vmem:[%s906 + $0x90] sm:$0xff]
        %v1258 = vld [vmem:[%s906 + $0x98] sm:$0xff]
        %v1259 = vld [vmem:[%s906 + $0xa0] sm:$0xff]
        %v1260 = vld [vmem:[%s906 + $0xa8] sm:$0xff]
        %v1261 = vld [vmem:[%s906 + $0xb0] sm:$0xff]
        %v1262 = vld [vmem:[%s906 + $0xb8] sm:$0xff]
        %v1263 = vld [vmem:[%s906 + $0xc0] sm:$0xff]
        %v1264 = vld [vmem:[%s906 + $0xc8] sm:$0xff]
        %v1265 = vld [vmem:[%s906 + $0xd0] sm:$0xff]
        %v1266 = vld [vmem:[%s906 + $0xd8] sm:$0xff]
        %v1267 = vld [vmem:[%s906 + $0xe0] sm:$0xff]
        %v1268 = vld [vmem:[%s906 + $0xe8] sm:$0xff]
        %v1269 = vld [vmem:[%s906 + $0xf0] sm:$0xff]
        %v1270 = vld [vmem:[%s906 + $0xf8] sm:$0xff]
        %v1271 = vld [vmem:[%s906 + $0x100] sm:$0xff]
        %v1272 = vld [vmem:[%s906 + $0x108] sm:$0xff]
        %v1273 = vld [vmem:[%s906 + $0x110] sm:$0xff]
        %v1274 = vld [vmem:[%s906 + $0x118] sm:$0xff]
        %v1275 = vld [vmem:[%s906 + $0x120] sm:$0xff]
        %v1276 = vld [vmem:[%s906 + $0x128] sm:$0xff]
        %v1277 = vld [vmem:[%s906 + $0x130] sm:$0xff]
        %v1278 = vld [vmem:[%s906 + $0x138] sm:$0xff]
        %v1279 = vld [vmem:[%s906 + $0x140] sm:$0xff]
        %v1280 = vld [vmem:[%s906 + $0x148] sm:$0xff]
        %v1281 = vld [vmem:[%s906 + $0x150] sm:$0xff]
        %v1282 = vld [vmem:[%s906 + $0x158] sm:$0xff]
        %v1283 = vld [vmem:[%s906 + $0x160] sm:$0xff]
        %v1284 = vld [vmem:[%s906 + $0x168] sm:$0xff]
        %v1285 = vld [vmem:[%s906 + $0x170] sm:$0xff]
        %v1286 = vld [vmem:[%s906 + $0x178] sm:$0xff]
        %v1287 = vld [vmem:[%s906 + $0x180] sm:$0xff]
        %v1288 = vld [vmem:[%s906 + $0x188] sm:$0xff]
        %v1289 = vld [vmem:[%s906 + $0x190] sm:$0xff]
        %v1290 = vld [vmem:[%s906 + $0x198] sm:$0xff]
        %v1291 = vld [vmem:[%s906 + $0x1a0] sm:$0xff]
        %v1292 = vld [vmem:[%s906 + $0x1a8] sm:$0xff]
        %v1293 = vld [vmem:[%s906 + $0x1b0] sm:$0xff]
        %v1294 = vld [vmem:[%s906 + $0x1b8] sm:$0xff]
        %v1295 = vld [vmem:[%s906 + $0x1c0] sm:$0xff]
        %v1296 = vld [vmem:[%s906 + $0x1c8] sm:$0xff]
        %v1297 = vld [vmem:[%s906 + $0x1d0] sm:$0xff]
        %v1298 = vld [vmem:[%s906 + $0x1d8] sm:$0xff]
        %v1299 = vld [vmem:[%s906 + $0x1e0] sm:$0xff]
        %v1300 = vld [vmem:[%s906 + $0x1e8] sm:$0xff]
        %v1301 = vld [vmem:[%s906 + $0x1f0] sm:$0xff]
        %v1302 = vld [vmem:[%s906 + $0x1f8] sm:$0xff]
        %v1303 = vld [vmem:[%s906 + $0x200] sm:$0xff]
        %v1304 = vld [vmem:[%s906 + $0x208] sm:$0xff]
        %v1305 = vld [vmem:[%s906 + $0x210] sm:$0xff]
        %v1306 = vld [vmem:[%s906 + $0x218] sm:$0xff]
        %v1307 = vld [vmem:[%s906 + $0x220] sm:$0xff]
        %v1308 = vld [vmem:[%s906 + $0x228] sm:$0xff]
        %v1309 = vld [vmem:[%s906 + $0x230] sm:$0xff]
        %v1310 = vld [vmem:[%s906 + $0x238] sm:$0xff]
        %v1311 = vld [vmem:[%s906 + $0x240] sm:$0xff]
        %v1312 = vld [vmem:[%s906 + $0x248] sm:$0xff]
        %v1313 = vld [vmem:[%s906 + $0x250] sm:$0xff]
        %v1314 = vld [vmem:[%s906 + $0x258] sm:$0xff]
        %v1315 = vld [vmem:[%s906 + $0x260] sm:$0xff]
        %v1316 = vld [vmem:[%s906 + $0x268] sm:$0xff]
        %v1317 = vld [vmem:[%s906 + $0x270] sm:$0xff]
        %v1318 = vld [vmem:[%s906 + $0x278] sm:$0xff]
        %v1319 = vld [vmem:[%s906 + $0x280] sm:$0xff]
        %v1320 = vld [vmem:[%s906 + $0x288] sm:$0xff]
        %v1321 = vld [vmem:[%s906 + $0x290] sm:$0xff]
        %v1322 = vld [vmem:[%s906 + $0x298] sm:$0xff]
        %v1323 = vld [vmem:[%s906 + $0x2a0] sm:$0xff]
        %v1324 = vld [vmem:[%s906 + $0x2a8] sm:$0xff]
        %v1325 = vld [vmem:[%s906 + $0x2b0] sm:$0xff]
        %v1326 = vld [vmem:[%s906 + $0x2b8] sm:$0xff]
        %v1327 = vld [vmem:[%s906 + $0x2c0] sm:$0xff]
        %v1328 = vld [vmem:[%s906 + $0x2c8] sm:$0xff]
        %v1329 = vld [vmem:[%s906 + $0x2d0] sm:$0xff]
        %v1330 = vld [vmem:[%s906 + $0x2d8] sm:$0xff]
        %v1331 = vld [vmem:[%s906 + $0x2e0] sm:$0xff]
        %v1332 = vld [vmem:[%s906 + $0x2e8] sm:$0xff]
        %v1333 = vld [vmem:[%s906 + $0x2f0] sm:$0xff]
        %v1334 = vld [vmem:[%s906 + $0x2f8] sm:$0xff]
        %v1335 = vld [vmem:[%s915] sm:$0x3f]
        %v1337 = vlaneseq
        %v1338 = vshrl.u32 %v1337, 7
        %v1339 = vsub.s32 0, %v1338
        %v1340 = vrot.slane %v1335, %v1339
        %v1341 = vlaneseq
        %v1342 = vshrl.u32 %v1341, 7
        %v1343 = vsub.s32 1, %v1342
        %v1344 = vrot.slane %v1335, %v1343
        %v1345 = vlaneseq
        %v1346 = vshrl.u32 %v1345, 7
        %v1347 = vsub.s32 2, %v1346
        %v1348 = vrot.slane %v1335, %v1347
        %v1349 = vlaneseq
        %v1350 = vshrl.u32 %v1349, 7
        %v1351 = vsub.s32 3, %v1350
        %v1352 = vrot.slane %v1335, %v1351
        %v1353 = vlaneseq
        %v1354 = vshrl.u32 %v1353, 7
        %v1355 = vsub.s32 4, %v1354
        %v1356 = vrot.slane %v1335, %v1355
        %v1357 = vlaneseq
        %v1358 = vshrl.u32 %v1357, 7
        %v1359 = vsub.s32 5, %v1358
        %v1360 = vrot.slane %v1335, %v1359
        %v1463 = vunpack.c.l.b16 %v1239
        %v1464 = vunpack.c.h.b16 %v1239
        %v1465 = vunpack.c.l.b16 %v1240
        %v1466 = vunpack.c.h.b16 %v1240
        %v1467 = vunpack.c.l.b16 %v1241
        %v1468 = vunpack.c.h.b16 %v1241
        %v1469 = vunpack.c.l.b16 %v1242
        %v1470 = vunpack.c.h.b16 %v1242
        %v1471 = vunpack.c.l.b16 %v1243
        %v1472 = vunpack.c.h.b16 %v1243
        %v1473 = vunpack.c.l.b16 %v1244
        %v1474 = vunpack.c.h.b16 %v1244
        %v1475 = vunpack.c.l.b16 %v1245
        %v1476 = vunpack.c.h.b16 %v1245
        %v1477 = vunpack.c.l.b16 %v1246
        %v1478 = vunpack.c.h.b16 %v1246
        %v1479 = vunpack.c.l.b16 %v1247
        %v1480 = vunpack.c.h.b16 %v1247
        %v1481 = vunpack.c.l.b16 %v1248
        %v1482 = vunpack.c.h.b16 %v1248
        %v1483 = vunpack.c.l.b16 %v1249
        %v1484 = vunpack.c.h.b16 %v1249
        %v1485 = vunpack.c.l.b16 %v1250
        %v1486 = vunpack.c.h.b16 %v1250
        %v1487 = vunpack.c.l.b16 %v1251
        %v1488 = vunpack.c.h.b16 %v1251
        %v1489 = vunpack.c.l.b16 %v1252
        %v1490 = vunpack.c.h.b16 %v1252
        %v1491 = vunpack.c.l.b16 %v1253
        %v1492 = vunpack.c.h.b16 %v1253
        %v1493 = vunpack.c.l.b16 %v1254
        %v1494 = vunpack.c.h.b16 %v1254
        %v1495 = vunpack.c.l.b16 %v1255
        %v1496 = vunpack.c.h.b16 %v1255
        %v1497 = vunpack.c.l.b16 %v1256
        %v1498 = vunpack.c.h.b16 %v1256
        %v1499 = vunpack.c.l.b16 %v1257
        %v1500 = vunpack.c.h.b16 %v1257
        %v1501 = vunpack.c.l.b16 %v1258
        %v1502 = vunpack.c.h.b16 %v1258
        %v1503 = vunpack.c.l.b16 %v1259
        %v1504 = vunpack.c.h.b16 %v1259
        %v1505 = vunpack.c.l.b16 %v1260
        %v1506 = vunpack.c.h.b16 %v1260
        %v1507 = vunpack.c.l.b16 %v1261
        %v1508 = vunpack.c.h.b16 %v1261
        %v1509 = vunpack.c.l.b16 %v1262
        %v1510 = vunpack.c.h.b16 %v1262
        %v1511 = vunpack.c.l.b16 %v1263
        %v1512 = vunpack.c.h.b16 %v1263
        %v1513 = vunpack.c.l.b16 %v1264
        %v1514 = vunpack.c.h.b16 %v1264
        %v1515 = vunpack.c.l.b16 %v1265
        %v1516 = vunpack.c.h.b16 %v1265
        %v1517 = vunpack.c.l.b16 %v1266
        %v1518 = vunpack.c.h.b16 %v1266
        %v1519 = vunpack.c.l.b16 %v1267
        %v1520 = vunpack.c.h.b16 %v1267
        %v1521 = vunpack.c.l.b16 %v1268
        %v1522 = vunpack.c.h.b16 %v1268
        %v1523 = vunpack.c.l.b16 %v1269
        %v1524 = vunpack.c.h.b16 %v1269
        %v1525 = vunpack.c.l.b16 %v1270
        %v1526 = vunpack.c.h.b16 %v1270
        %v1527 = vunpack.c.l.b16 %v1271
        %v1528 = vunpack.c.h.b16 %v1271
        %v1529 = vunpack.c.l.b16 %v1272
        %v1530 = vunpack.c.h.b16 %v1272
        %v1531 = vunpack.c.l.b16 %v1273
        %v1532 = vunpack.c.h.b16 %v1273
        %v1533 = vunpack.c.l.b16 %v1274
        %v1534 = vunpack.c.h.b16 %v1274
        %v1535 = vunpack.c.l.b16 %v1275
        %v1536 = vunpack.c.h.b16 %v1275
        %v1537 = vunpack.c.l.b16 %v1276
        %v1538 = vunpack.c.h.b16 %v1276
        %v1539 = vunpack.c.l.b16 %v1277
        %v1540 = vunpack.c.h.b16 %v1277
        %v1541 = vunpack.c.l.b16 %v1278
        %v1542 = vunpack.c.h.b16 %v1278
        %v1543 = vunpack.c.l.b16 %v1279
        %v1544 = vunpack.c.h.b16 %v1279
        %v1545 = vunpack.c.l.b16 %v1280
        %v1546 = vunpack.c.h.b16 %v1280
        %v1547 = vunpack.c.l.b16 %v1281
        %v1548 = vunpack.c.h.b16 %v1281
        %v1549 = vunpack.c.l.b16 %v1282
        %v1550 = vunpack.c.h.b16 %v1282
        %v1551 = vunpack.c.l.b16 %v1283
        %v1552 = vunpack.c.h.b16 %v1283
        %v1553 = vunpack.c.l.b16 %v1284
        %v1554 = vunpack.c.h.b16 %v1284
        %v1555 = vunpack.c.l.b16 %v1285
        %v1556 = vunpack.c.h.b16 %v1285
        %v1557 = vunpack.c.l.b16 %v1286
        %v1558 = vunpack.c.h.b16 %v1286
        %v1559 = vunpack.c.l.b16 %v1287
        %v1560 = vunpack.c.h.b16 %v1287
        %v1561 = vunpack.c.l.b16 %v1288
        %v1562 = vunpack.c.h.b16 %v1288
        %v1563 = vunpack.c.l.b16 %v1289
        %v1564 = vunpack.c.h.b16 %v1289
        %v1565 = vunpack.c.l.b16 %v1290
        %v1566 = vunpack.c.h.b16 %v1290
        %v1567 = vunpack.c.l.b16 %v1291
        %v1568 = vunpack.c.h.b16 %v1291
        %v1569 = vunpack.c.l.b16 %v1292
        %v1570 = vunpack.c.h.b16 %v1292
        %v1571 = vunpack.c.l.b16 %v1293
        %v1572 = vunpack.c.h.b16 %v1293
        %v1573 = vunpack.c.l.b16 %v1294
        %v1574 = vunpack.c.h.b16 %v1294
        %v1575 = vunpack.c.l.b16 %v1295
        %v1576 = vunpack.c.h.b16 %v1295
        %v1577 = vunpack.c.l.b16 %v1296
        %v1578 = vunpack.c.h.b16 %v1296
        %v1579 = vunpack.c.l.b16 %v1297
        %v1580 = vunpack.c.h.b16 %v1297
        %v1581 = vunpack.c.l.b16 %v1298
        %v1582 = vunpack.c.h.b16 %v1298
        %v1583 = vunpack.c.l.b16 %v1299
        %v1584 = vunpack.c.h.b16 %v1299
        %v1585 = vunpack.c.l.b16 %v1300
        %v1586 = vunpack.c.h.b16 %v1300
        %v1587 = vunpack.c.l.b16 %v1301
        %v1588 = vunpack.c.h.b16 %v1301
        %v1589 = vunpack.c.l.b16 %v1302
        %v1590 = vunpack.c.h.b16 %v1302
        %v1591 = vunpack.c.l.b16 %v1303
        %v1592 = vunpack.c.h.b16 %v1303
        %v1593 = vunpack.c.l.b16 %v1304
        %v1594 = vunpack.c.h.b16 %v1304
        %v1595 = vunpack.c.l.b16 %v1305
        %v1596 = vunpack.c.h.b16 %v1305
        %v1597 = vunpack.c.l.b16 %v1306
        %v1598 = vunpack.c.h.b16 %v1306
        %v1599 = vunpack.c.l.b16 %v1307
        %v1600 = vunpack.c.h.b16 %v1307
        %v1601 = vunpack.c.l.b16 %v1308
        %v1602 = vunpack.c.h.b16 %v1308
        %v1603 = vunpack.c.l.b16 %v1309
        %v1604 = vunpack.c.h.b16 %v1309
        %v1605 = vunpack.c.l.b16 %v1310
        %v1606 = vunpack.c.h.b16 %v1310
        %v1607 = vunpack.c.l.b16 %v1311
        %v1608 = vunpack.c.h.b16 %v1311
        %v1609 = vunpack.c.l.b16 %v1312
        %v1610 = vunpack.c.h.b16 %v1312
        %v1611 = vunpack.c.l.b16 %v1313
        %v1612 = vunpack.c.h.b16 %v1313
        %v1613 = vunpack.c.l.b16 %v1314
        %v1614 = vunpack.c.h.b16 %v1314
        %v1615 = vunpack.c.l.b16 %v1315
        %v1616 = vunpack.c.h.b16 %v1315
        %v1617 = vunpack.c.l.b16 %v1316
        %v1618 = vunpack.c.h.b16 %v1316
        %v1619 = vunpack.c.l.b16 %v1317
        %v1620 = vunpack.c.h.b16 %v1317
        %v1621 = vunpack.c.l.b16 %v1318
        %v1622 = vunpack.c.h.b16 %v1318
        %v1623 = vunpack.c.l.b16 %v1319
        %v1624 = vunpack.c.h.b16 %v1319
        %v1625 = vunpack.c.l.b16 %v1320
        %v1626 = vunpack.c.h.b16 %v1320
        %v1627 = vunpack.c.l.b16 %v1321
        %v1628 = vunpack.c.h.b16 %v1321
        %v1629 = vunpack.c.l.b16 %v1322
        %v1630 = vunpack.c.h.b16 %v1322
        %v1631 = vunpack.c.l.b16 %v1323
        %v1632 = vunpack.c.h.b16 %v1323
        %v1633 = vunpack.c.l.b16 %v1324
        %v1634 = vunpack.c.h.b16 %v1324
        %v1635 = vunpack.c.l.b16 %v1325
        %v1636 = vunpack.c.h.b16 %v1325
        %v1637 = vunpack.c.l.b16 %v1326
        %v1638 = vunpack.c.h.b16 %v1326
        %v1639 = vunpack.c.l.b16 %v1327
        %v1640 = vunpack.c.h.b16 %v1327
        %v1641 = vunpack.c.l.b16 %v1328
        %v1642 = vunpack.c.h.b16 %v1328
        %v1643 = vunpack.c.l.b16 %v1329
        %v1644 = vunpack.c.h.b16 %v1329
        %v1645 = vunpack.c.l.b16 %v1330
        %v1646 = vunpack.c.h.b16 %v1330
        %v1647 = vunpack.c.l.b16 %v1331
        %v1648 = vunpack.c.h.b16 %v1331
        %v1649 = vunpack.c.l.b16 %v1332
        %v1650 = vunpack.c.h.b16 %v1332
        %v1651 = vunpack.c.l.b16 %v1333
        %v1652 = vunpack.c.h.b16 %v1333
        %v1653 = vunpack.c.l.b16 %v1334
        %v1654 = vunpack.c.h.b16 %v1334
        %v1655 = vpack.c.b16 %v1469, %v1463
        %v1656 = vpack.c.b16 %v1470, %v1464
        %v1657 = vpack.c.b16 %v1471, %v1465
        %v1658 = vpack.c.b16 %v1472, %v1466
        %v1659 = vpack.c.b16 %v1473, %v1467
        %v1660 = vpack.c.b16 %v1474, %v1468
        %v1661 = vpack.c.b16 %v1481, %v1475
        %v1662 = vpack.c.b16 %v1482, %v1476
        %v1663 = vpack.c.b16 %v1483, %v1477
        %v1664 = vpack.c.b16 %v1484, %v1478
        %v1665 = vpack.c.b16 %v1485, %v1479
        %v1666 = vpack.c.b16 %v1486, %v1480
        %v1667 = vpack.c.b16 %v1493, %v1487
        %v1668 = vpack.c.b16 %v1494, %v1488
        %v1669 = vpack.c.b16 %v1495, %v1489
        %v1670 = vpack.c.b16 %v1496, %v1490
        %v1671 = vpack.c.b16 %v1497, %v1491
        %v1672 = vpack.c.b16 %v1498, %v1492
        %v1673 = vpack.c.b16 %v1505, %v1499
        %v1674 = vpack.c.b16 %v1506, %v1500
        %v1675 = vpack.c.b16 %v1507, %v1501
        %v1676 = vpack.c.b16 %v1508, %v1502
        %v1677 = vpack.c.b16 %v1509, %v1503
        %v1678 = vpack.c.b16 %v1510, %v1504
        %v1679 = vpack.c.b16 %v1517, %v1511
        %v1680 = vpack.c.b16 %v1518, %v1512
        %v1681 = vpack.c.b16 %v1519, %v1513
        %v1682 = vpack.c.b16 %v1520, %v1514
        %v1683 = vpack.c.b16 %v1521, %v1515
        %v1684 = vpack.c.b16 %v1522, %v1516
        %v1685 = vpack.c.b16 %v1529, %v1523
        %v1686 = vpack.c.b16 %v1530, %v1524
        %v1687 = vpack.c.b16 %v1531, %v1525
        %v1688 = vpack.c.b16 %v1532, %v1526
        %v1689 = vpack.c.b16 %v1533, %v1527
        %v1690 = vpack.c.b16 %v1534, %v1528
        %v1691 = vpack.c.b16 %v1541, %v1535
        %v1692 = vpack.c.b16 %v1542, %v1536
        %v1693 = vpack.c.b16 %v1543, %v1537
        %v1694 = vpack.c.b16 %v1544, %v1538
        %v1695 = vpack.c.b16 %v1545, %v1539
        %v1696 = vpack.c.b16 %v1546, %v1540
        %v1697 = vpack.c.b16 %v1553, %v1547
        %v1698 = vpack.c.b16 %v1554, %v1548
        %v1699 = vpack.c.b16 %v1555, %v1549
        %v1700 = vpack.c.b16 %v1556, %v1550
        %v1701 = vpack.c.b16 %v1557, %v1551
        %v1702 = vpack.c.b16 %v1558, %v1552
        %v1703 = vpack.c.b16 %v1565, %v1559
        %v1704 = vpack.c.b16 %v1566, %v1560
        %v1705 = vpack.c.b16 %v1567, %v1561
        %v1706 = vpack.c.b16 %v1568, %v1562
        %v1707 = vpack.c.b16 %v1569, %v1563
        %v1708 = vpack.c.b16 %v1570, %v1564
        %v1709 = vpack.c.b16 %v1577, %v1571
        %v1710 = vpack.c.b16 %v1578, %v1572
        %v1711 = vpack.c.b16 %v1579, %v1573
        %v1712 = vpack.c.b16 %v1580, %v1574
        %v1713 = vpack.c.b16 %v1581, %v1575
        %v1714 = vpack.c.b16 %v1582, %v1576
        %v1715 = vpack.c.b16 %v1589, %v1583
        %v1716 = vpack.c.b16 %v1590, %v1584
        %v1717 = vpack.c.b16 %v1591, %v1585
        %v1718 = vpack.c.b16 %v1592, %v1586
        %v1719 = vpack.c.b16 %v1593, %v1587
        %v1720 = vpack.c.b16 %v1594, %v1588
        %v1721 = vpack.c.b16 %v1601, %v1595
        %v1722 = vpack.c.b16 %v1602, %v1596
        %v1723 = vpack.c.b16 %v1603, %v1597
        %v1724 = vpack.c.b16 %v1604, %v1598
        %v1725 = vpack.c.b16 %v1605, %v1599
        %v1726 = vpack.c.b16 %v1606, %v1600
        %v1727 = vpack.c.b16 %v1613, %v1607
        %v1728 = vpack.c.b16 %v1614, %v1608
        %v1729 = vpack.c.b16 %v1615, %v1609
        %v1730 = vpack.c.b16 %v1616, %v1610
        %v1731 = vpack.c.b16 %v1617, %v1611
        %v1732 = vpack.c.b16 %v1618, %v1612
        %v1733 = vpack.c.b16 %v1625, %v1619
        %v1734 = vpack.c.b16 %v1626, %v1620
        %v1735 = vpack.c.b16 %v1627, %v1621
        %v1736 = vpack.c.b16 %v1628, %v1622
        %v1737 = vpack.c.b16 %v1629, %v1623
        %v1738 = vpack.c.b16 %v1630, %v1624
        %v1739 = vpack.c.b16 %v1637, %v1631
        %v1740 = vpack.c.b16 %v1638, %v1632
        %v1741 = vpack.c.b16 %v1639, %v1633
        %v1742 = vpack.c.b16 %v1640, %v1634
        %v1743 = vpack.c.b16 %v1641, %v1635
        %v1744 = vpack.c.b16 %v1642, %v1636
        %v1745 = vpack.c.b16 %v1649, %v1643
        %v1746 = vpack.c.b16 %v1650, %v1644
        %v1747 = vpack.c.b16 %v1651, %v1645
        %v1748 = vpack.c.b16 %v1652, %v1646
        %v1749 = vpack.c.b16 %v1653, %v1647
        %v1750 = vpack.c.b16 %v1654, %v1648
        %1847 = vmatprep.subr.bf16.mxu0 %v1698
        %1848 = vmatpush1.bf16.msra.mxu0 %v1697
        %1849 = vmatprep.subr.bf16.mxu0 %v1692
        %1850 = vmatpush1.bf16.msra.mxu0 %v1691
        %1851 = vmatprep.subr.bf16.mxu0 %v1686
        %1852 = vmatpush1.bf16.msra.mxu0 %v1685
        %1853 = vmatprep.subr.bf16.mxu0 %v1680
        %1854 = vmatpush1.bf16.msra.mxu0 %v1679
        %1855 = vmatprep.subr.bf16.mxu0 %v1674
        %1856 = vmatpush1.bf16.msra.mxu0 %v1673
        %1857 = vmatprep.subr.bf16.mxu0 %v1668
        %1858 = vmatpush1.bf16.msra.mxu0 %v1667
        %1859 = vmatprep.subr.bf16.mxu0 %v1662
        %1860 = vmatpush1.bf16.msra.mxu0 %v1661
        %1861 = vmatprep.subr.bf16.mxu0 %v1656
        %1862 = vmatpush1.bf16.msra.mxu0 %v1655
        %1863 = vmatprep.subr.bf16.mxu0 %v1746
        %1864 = vmatpush2.bf16.msra.mxu0 %v1745
        %1865 = vmatprep.subr.bf16.mxu0 %v1740
        %1866 = vmatpush2.bf16.msra.mxu0 %v1739
        %1867 = vmatprep.subr.bf16.mxu0 %v1734
        %1868 = vmatpush2.bf16.msra.mxu0 %v1733
        %1869 = vmatprep.subr.bf16.mxu0 %v1728
        %1870 = vmatpush2.bf16.msra.mxu0 %v1727
        %1871 = vmatprep.subr.bf16.mxu0 %v1722
        %1872 = vmatpush2.bf16.msra.mxu0 %v1721
        %1873 = vmatprep.subr.bf16.mxu0 %v1716
        %1874 = vmatpush2.bf16.msra.mxu0 %v1715
        %1875 = vmatprep.subr.bf16.mxu0 %v1710
        %1876 = vmatpush2.bf16.msra.mxu0 %v1709
        %1877 = vmatprep.subr.bf16.mxu0 %v1704
        %1878 = vmatpush2.bf16.msra.mxu0 %v1703
        %1879 = vmatprep.mubr.bf16.mxu0 %v1238
        %1880 = vmatmul.mubr.bf16.gmra.mxu0 %v1237
        %v1881 = vpop.f32.mrf.mxu0
        %v1882 = vadd.f32 %v1340, %v1881
        %v1883 = vpop.f32.mrf.mxu0
        %v1884 = vadd.f32 %v1344, %v1883
        %v1885 = vpop.f32.mrf.mxu0
        %v1886 = vpop.f32.mrf.mxu0
        %1887 = vdwg.mxu0
        %1888 = vmatprep.subr.bf16.mxu0 %v1700
        %1889 = vmatpush1.bf16.msra.mxu0 %v1699
        %1890 = vmatprep.subr.bf16.mxu0 %v1694
        %1891 = vmatpush1.bf16.msra.mxu0 %v1693
        %1892 = vmatprep.subr.bf16.mxu0 %v1688
        %1893 = vmatpush1.bf16.msra.mxu0 %v1687
        %1894 = vmatprep.subr.bf16.mxu0 %v1682
        %1895 = vmatpush1.bf16.msra.mxu0 %v1681
        %1896 = vmatprep.subr.bf16.mxu0 %v1676
        %1897 = vmatpush1.bf16.msra.mxu0 %v1675
        %1898 = vmatprep.subr.bf16.mxu0 %v1670
        %1899 = vmatpush1.bf16.msra.mxu0 %v1669
        %1900 = vmatprep.subr.bf16.mxu0 %v1664
        %1901 = vmatpush1.bf16.msra.mxu0 %v1663
        %1902 = vmatprep.subr.bf16.mxu0 %v1658
        %1903 = vmatpush1.bf16.msra.mxu0 %v1657
        %1904 = vmatprep.subr.bf16.mxu0 %v1748
        %1905 = vmatpush2.bf16.msra.mxu0 %v1747
        %1906 = vmatprep.subr.bf16.mxu0 %v1742
        %1907 = vmatpush2.bf16.msra.mxu0 %v1741
        %1908 = vmatprep.subr.bf16.mxu0 %v1736
        %1909 = vmatpush2.bf16.msra.mxu0 %v1735
        %1910 = vmatprep.subr.bf16.mxu0 %v1730
        %1911 = vmatpush2.bf16.msra.mxu0 %v1729
        %1912 = vmatprep.subr.bf16.mxu0 %v1724
        %1913 = vmatpush2.bf16.msra.mxu0 %v1723
        %1914 = vmatprep.subr.bf16.mxu0 %v1718
        %1915 = vmatpush2.bf16.msra.mxu0 %v1717
        %1916 = vmatprep.subr.bf16.mxu0 %v1712
        %1917 = vmatpush2.bf16.msra.mxu0 %v1711
        %1918 = vmatprep.subr.bf16.mxu0 %v1706
        %1919 = vmatpush2.bf16.msra.mxu0 %v1705
        %1920 = vmatprep.mubr.bf16.mxu0 %v1238
        %1921 = vmatmul.mubr.bf16.gmra.mxu0 %v1237
        %v1922 = vpop.f32.mrf.mxu0
        %v1923 = vadd.f32 %v1348, %v1922
        %v1924 = vpop.f32.mrf.mxu0
        %v1925 = vadd.f32 %v1352, %v1924
        %v1926 = vpop.f32.mrf.mxu0
        %v1927 = vpop.f32.mrf.mxu0
        %1928 = vdwg.mxu0
        %1929 = vmatprep.subr.bf16.mxu0 %v1702
        %1930 = vmatpush1.bf16.msra.mxu0 %v1701
        %1931 = vmatprep.subr.bf16.mxu0 %v1696
        %1932 = vmatpush1.bf16.msra.mxu0 %v1695
        %1933 = vmatprep.subr.bf16.mxu0 %v1690
        %1934 = vmatpush1.bf16.msra.mxu0 %v1689
        %1935 = vmatprep.subr.bf16.mxu0 %v1684
        %1936 = vmatpush1.bf16.msra.mxu0 %v1683
        %1937 = vmatprep.subr.bf16.mxu0 %v1678
        %1938 = vmatpush1.bf16.msra.mxu0 %v1677
        %1939 = vmatprep.subr.bf16.mxu0 %v1672
        %1940 = vmatpush1.bf16.msra.mxu0 %v1671
        %1941 = vmatprep.subr.bf16.mxu0 %v1666
        %1942 = vmatpush1.bf16.msra.mxu0 %v1665
        %1943 = vmatprep.subr.bf16.mxu0 %v1660
        %1944 = vmatpush1.bf16.msra.mxu0 %v1659
        %1945 = vmatprep.subr.bf16.mxu0 %v1750
        %1946 = vmatpush2.bf16.msra.mxu0 %v1749
        %1947 = vmatprep.subr.bf16.mxu0 %v1744
        %1948 = vmatpush2.bf16.msra.mxu0 %v1743
        %1949 = vmatprep.subr.bf16.mxu0 %v1738
        %1950 = vmatpush2.bf16.msra.mxu0 %v1737
        %1951 = vmatprep.subr.bf16.mxu0 %v1732
        %1952 = vmatpush2.bf16.msra.mxu0 %v1731
        %1953 = vmatprep.subr.bf16.mxu0 %v1726
        %1954 = vmatpush2.bf16.msra.mxu0 %v1725
        %1955 = vmatprep.subr.bf16.mxu0 %v1720
        %1956 = vmatpush2.bf16.msra.mxu0 %v1719
        %1957 = vmatprep.subr.bf16.mxu0 %v1714
        %1958 = vmatpush2.bf16.msra.mxu0 %v1713
        %1959 = vmatprep.subr.bf16.mxu0 %v1708
        %1960 = vmatpush2.bf16.msra.mxu0 %v1707
        %1961 = vmatprep.mubr.bf16.mxu0 %v1238
        %1962 = vmatmul.mubr.bf16.gmra.mxu0 %v1237
        %v1963 = vpop.f32.mrf.mxu0
        %v1964 = vadd.f32 %v1356, %v1963
        %v1965 = vpop.f32.mrf.mxu0
        %v1966 = vadd.f32 %v1360, %v1965
        %v1967 = vpop.f32.mrf.mxu0
        %v1968 = vpop.f32.mrf.mxu0
        %1969 = vdwg.mxu0
        %v1970 = vld [vmem:[%s1128] sm:$0xff]
        %v1971 = vld [vmem:[%s1128 + $0x8] sm:$0xff]
        %v1972 = vld [vmem:[%s1128 + $0x10] sm:$0xff]
        %v1973 = vld [vmem:[%s1128 + $0x18] sm:$0xff]
        %v1974 = vld [vmem:[%s1128 + $0x20] sm:$0xff]
        %v1975 = vld [vmem:[%s1128 + $0x28] sm:$0xff]
        %v1976 = vld [vmem:[%s1128 + $0x30] sm:$0xff]
        %v1977 = vld [vmem:[%s1128 + $0x38] sm:$0xff]
        %v1978 = vld [vmem:[%s1128 + $0x40] sm:$0xff]
        %v1979 = vld [vmem:[%s1128 + $0x48] sm:$0xff]
        %v1980 = vld [vmem:[%s1128 + $0x50] sm:$0xff]
        %v1981 = vld [vmem:[%s1128 + $0x58] sm:$0xff]
        %v1982 = vld [vmem:[%s1128 + $0x60] sm:$0xff]
        %v1983 = vld [vmem:[%s1128 + $0x68] sm:$0xff]
        %v1984 = vld [vmem:[%s1128 + $0x70] sm:$0xff]
        %v1985 = vld [vmem:[%s1128 + $0x78] sm:$0xff]
        %v1986 = vld [vmem:[%s1128 + $0x80] sm:$0xff]
        %v1987 = vld [vmem:[%s1128 + $0x88] sm:$0xff]
        %v1988 = vld [vmem:[%s1128 + $0x90] sm:$0xff]
        %v1989 = vld [vmem:[%s1128 + $0x98] sm:$0xff]
        %v1990 = vld [vmem:[%s1128 + $0xa0] sm:$0xff]
        %v1991 = vld [vmem:[%s1128 + $0xa8] sm:$0xff]
        %v1992 = vld [vmem:[%s1128 + $0xb0] sm:$0xff]
        %v1993 = vld [vmem:[%s1128 + $0xb8] sm:$0xff]
        %v1994 = vld [vmem:[%s1128 + $0xc0] sm:$0xff]
        %v1995 = vld [vmem:[%s1128 + $0xc8] sm:$0xff]
        %v1996 = vld [vmem:[%s1128 + $0xd0] sm:$0xff]
        %v1997 = vld [vmem:[%s1128 + $0xd8] sm:$0xff]
        %v1998 = vld [vmem:[%s1128 + $0xe0] sm:$0xff]
        %v1999 = vld [vmem:[%s1128 + $0xe8] sm:$0xff]
        %v2000 = vld [vmem:[%s1128 + $0xf0] sm:$0xff]
        %v2001 = vld [vmem:[%s1128 + $0xf8] sm:$0xff]
        %v2002 = vpack.c.bf16 %v1882, %v1882
        %v2003 = vpack.c.bf16 %v1923, %v1923
        %v2004 = vpack.c.bf16 %v1964, %v1964
        %v2006 = vlaneseq
        %v2007 = vshrl.u32 %v2006, 7
        %v2008 = vsub.s32 0, %v2007
        %v2009 = vrot.slane %v1236, %v2008
        %vm2011 = vcmask 523264
        %v2013 = vsel %vm2011, %v2002, 0
        %v2016 = vsel %vm2011, %v2003, 0
        %2018 = vmatprep.subr.bf16.mxu0 0
        %2019 = vmatpush1.bf16.xpose.msra.mxu0 0
        %2020 = vmatprep.subr.bf16.mxu0 0
        %2021 = vmatpush1.bf16.xpose.msra.mxu0 0
        %2022 = vmatprep.subr.bf16.mxu0 0
        %2023 = vmatpush1.bf16.xpose.msra.mxu0 0
        %2024 = vmatprep.subr.bf16.mxu0 0
        %2025 = vmatpush1.bf16.xpose.msra.mxu0 0
        %2026 = vmatprep.subr.bf16.mxu0 0
        %2027 = vmatpush1.bf16.xpose.msra.mxu0 0
        %2028 = vmatprep.subr.bf16.mxu0 0
        %2029 = vmatpush1.bf16.xpose.msra.mxu0 0
        %2030 = vmatprep.subr.bf16.mxu0 0
        %2031 = vmatpush1.bf16.xpose.msra.mxu0 0
        %2032 = vmatprep.subr.bf16.mxu0 0
        %2033 = vmatpush1.bf16.xpose.msra.mxu0 %v2016
        %2034 = vmatprep.subr.bf16.mxu0 0
        %2035 = vmatpush2.bf16.xpose.msra.mxu0 0
        %2036 = vmatprep.subr.bf16.mxu0 0
        %2037 = vmatpush2.bf16.xpose.msra.mxu0 0
        %2038 = vmatprep.subr.bf16.mxu0 0
        %2039 = vmatpush2.bf16.xpose.msra.mxu0 0
        %2040 = vmatprep.subr.bf16.mxu0 0
        %2041 = vmatpush2.bf16.xpose.msra.mxu0 0
        %2042 = vmatprep.subr.bf16.mxu0 0
        %2043 = vmatpush2.bf16.xpose.msra.mxu0 0
        %2044 = vmatprep.subr.bf16.mxu0 0
        %2045 = vmatpush2.bf16.xpose.msra.mxu0 0
        %2046 = vmatprep.subr.bf16.mxu0 0
        %2047 = vmatpush2.bf16.xpose.msra.mxu0 0
        %2048 = vmatprep.subr.bf16.mxu0 0
        %2049 = vmatpush2.bf16.xpose.msra.mxu0 0
        %2050 = vmatprep.mubr.bf16.mxu0 0
        %2051 = vmatmul.mubr.bf16.gmra.mxu0 %v2013
        %v2052 = vpop.f32.mrf.mxu0
        %v2053 = vadd.f32 %v2009, %v2052
        %v2054 = vpop.f32.mrf.mxu0
        %v2055 = vpop.f32.mrf.mxu0
        %v2056 = vpop.f32.mrf.mxu0
        %2057 = vdwg.mxu0
        %vm2058 = vcmask 64512
        %v2059 = vsel %vm2058, %v2053, -inf
        %2060 = vmax.xlane.f32.xlu0 %v2059
        %v2061 = vpop.xlane.xlu0 %2060
        %v2062 = vsub.f32 %v2053, %v2061
        %v2063 = vmul.f32 %v2062, 1.442695
        %v2064 = vpow.pop %v2063
        %v2065 = vsel %vm2058, %v2064, 0.0
        %2066 = vadd.xlane.f32.xlu0 %v2065
        %v2067 = vpop.xlane.xlu0 %2066
        %v2068 = vrcp.pop %v2067
        %v2069 = vmul.f32 %v2064, %v2068
        %v2070 = vpack.c.bf16 %v2069, %v2069
        %v2072 = vsel %vm2058, %v2070, 0
        %vm2074 = vcmask 1043456
        %v2076 = vsel %vm2074, %v2004, 0
        %2078 = vmatprep.subr.bf16.mxu0 0
        %2079 = vmatpush1.bf16.msra.mxu0 0
        %2080 = vmatprep.subr.bf16.mxu0 0
        %2081 = vmatpush1.bf16.msra.mxu0 0
        %2082 = vmatprep.subr.bf16.mxu0 0
        %2083 = vmatpush1.bf16.msra.mxu0 0
        %2084 = vmatprep.subr.bf16.mxu0 0
        %2085 = vmatpush1.bf16.msra.mxu0 0
        %2086 = vmatprep.subr.bf16.mxu0 0
        %2087 = vmatpush1.bf16.msra.mxu0 0
        %2088 = vmatprep.subr.bf16.mxu0 0
        %2089 = vmatpush1.bf16.msra.mxu0 0
        %2090 = vmatprep.subr.bf16.mxu0 0
        %2091 = vmatpush1.bf16.msra.mxu0 0
        %2092 = vmatprep.subr.bf16.mxu0 0
        %2093 = vmatpush1.bf16.msra.mxu0 %v2076
        %2094 = vmatprep.subr.bf16.mxu0 0
        %2095 = vmatpush2.bf16.msra.mxu0 0
        %2096 = vmatprep.subr.bf16.mxu0 0
        %2097 = vmatpush2.bf16.msra.mxu0 0
        %2098 = vmatprep.subr.bf16.mxu0 0
        %2099 = vmatpush2.bf16.msra.mxu0 0
        %2100 = vmatprep.subr.bf16.mxu0 0
        %2101 = vmatpush2.bf16.msra.mxu0 0
        %2102 = vmatprep.subr.bf16.mxu0 0
        %2103 = vmatpush2.bf16.msra.mxu0 0
        %2104 = vmatprep.subr.bf16.mxu0 0
        %2105 = vmatpush2.bf16.msra.mxu0 0
        %2106 = vmatprep.subr.bf16.mxu0 0
        %2107 = vmatpush2.bf16.msra.mxu0 0
        %2108 = vmatprep.subr.bf16.mxu0 0
        %2109 = vmatpush2.bf16.msra.mxu0 0
        %2110 = vmatprep.mubr.bf16.mxu0 0
        %2111 = vmatmul.mubr.bf16.gmra.mxu0 %v2072
        %v2112 = vpop.f32.mrf.mxu0
        %v2113 = vadd.f32 0.0, %v2112
        %v2114 = vpop.f32.mrf.mxu0
        %v2115 = vpop.f32.mrf.mxu0
        %v2116 = vpop.f32.mrf.mxu0
        %2117 = vdwg.mxu0
        %v2118 = vpack.c.bf16 %v2113, %v2113
        %2120 = vrot.lane.b32.xlu0 %v2002, 64
        %v2121 = vpop.permute.xlu0 %2120
        %2123 = vrot.lane.b32.xlu0 %v2003, 64
        %v2124 = vpop.permute.xlu0 %2123
        %v2126 = vsel %vm2011, %v2121, 0
        %v2129 = vsel %vm2011, %v2124, 0
        %2131 = vmatprep.subr.bf16.mxu0 0
        %2132 = vmatpush1.bf16.xpose.msra.mxu0 0
        %2133 = vmatprep.subr.bf16.mxu0 0
        %2134 = vmatpush1.bf16.xpose.msra.mxu0 0
        %2135 = vmatprep.subr.bf16.mxu0 0
        %2136 = vmatpush1.bf16.xpose.msra.mxu0 0
        %2137 = vmatprep.subr.bf16.mxu0 0
        %2138 = vmatpush1.bf16.xpose.msra.mxu0 0
        %2139 = vmatprep.subr.bf16.mxu0 0
        %2140 = vmatpush1.bf16.xpose.msra.mxu0 0
        %2141 = vmatprep.subr.bf16.mxu0 0
        %2142 = vmatpush1.bf16.xpose.msra.mxu0 0
        %2143 = vmatprep.subr.bf16.mxu0 0
        %2144 = vmatpush1.bf16.xpose.msra.mxu0 0
        %2145 = vmatprep.subr.bf16.mxu0 0
        %2146 = vmatpush1.bf16.xpose.msra.mxu0 %v2129
        %2147 = vmatprep.subr.bf16.mxu0 0
        %2148 = vmatpush2.bf16.xpose.msra.mxu0 0
        %2149 = vmatprep.subr.bf16.mxu0 0
        %2150 = vmatpush2.bf16.xpose.msra.mxu0 0
        %2151 = vmatprep.subr.bf16.mxu0 0
        %2152 = vmatpush2.bf16.xpose.msra.mxu0 0
        %2153 = vmatprep.subr.bf16.mxu0 0
        %2154 = vmatpush2.bf16.xpose.msra.mxu0 0
        %2155 = vmatprep.subr.bf16.mxu0 0
        %2156 = vmatpush2.bf16.xpose.msra.mxu0 0
        %2157 = vmatprep.subr.bf16.mxu0 0
        %2158 = vmatpush2.bf16.xpose.msra.mxu0 0
        %2159 = vmatprep.subr.bf16.mxu0 0
        %2160 = vmatpush2.bf16.xpose.msra.mxu0 0
        %2161 = vmatprep.subr.bf16.mxu0 0
        %2162 = vmatpush2.bf16.xpose.msra.mxu0 0
        %2163 = vmatprep.mubr.bf16.mxu0 0
        %2164 = vmatmul.mubr.bf16.gmra.mxu0 %v2126
        %v2165 = vpop.f32.mrf.mxu0
        %v2166 = vadd.f32 %v2009, %v2165
        %v2167 = vpop.f32.mrf.mxu0
        %v2168 = vpop.f32.mrf.mxu0
        %v2169 = vpop.f32.mrf.mxu0
        %2170 = vdwg.mxu0
        %v2171 = vsel %vm2058, %v2166, -inf
        %2172 = vmax.xlane.f32.xlu0 %v2171
        %v2173 = vpop.xlane.xlu0 %2172
        %v2174 = vsub.f32 %v2166, %v2173
        %v2175 = vmul.f32 %v2174, 1.442695
        %v2176 = vpow.pop %v2175
        %v2177 = vsel %vm2058, %v2176, 0.0
        %2178 = vadd.xlane.f32.xlu0 %v2177
        %v2179 = vpop.xlane.xlu0 %2178
        %v2180 = vrcp.pop %v2179
        %v2181 = vmul.f32 %v2176, %v2180
        %v2182 = vpack.c.bf16 %v2181, %v2181
        %2184 = vrot.lane.b32.xlu0 %v2004, 64
        %v2185 = vpop.permute.xlu0 %2184
        %v2187 = vsel %vm2058, %v2182, 0
        %v2190 = vsel %vm2074, %v2185, 0
        %2192 = vmatprep.subr.bf16.mxu0 0
        %2193 = vmatpush1.bf16.msra.mxu0 0
        %2194 = vmatprep.subr.bf16.mxu0 0
        %2195 = vmatpush1.bf16.msra.mxu0 0
        %2196 = vmatprep.subr.bf16.mxu0 0
        %2197 = vmatpush1.bf16.msra.mxu0 0
        %2198 = vmatprep.subr.bf16.mxu0 0
        %2199 = vmatpush1.bf16.msra.mxu0 0
        %2200 = vmatprep.subr.bf16.mxu0 0
        %2201 = vmatpush1.bf16.msra.mxu0 0
        %2202 = vmatprep.subr.bf16.mxu0 0
        %2203 = vmatpush1.bf16.msra.mxu0 0
        %2204 = vmatprep.subr.bf16.mxu0 0
        %2205 = vmatpush1.bf16.msra.mxu0 0
        %2206 = vmatprep.subr.bf16.mxu0 0
        %2207 = vmatpush1.bf16.msra.mxu0 %v2190
        %2208 = vmatprep.subr.bf16.mxu0 0
        %2209 = vmatpush2.bf16.msra.mxu0 0
        %2210 = vmatprep.subr.bf16.mxu0 0
        %2211 = vmatpush2.bf16.msra.mxu0 0
        %2212 = vmatprep.subr.bf16.mxu0 0
        %2213 = vmatpush2.bf16.msra.mxu0 0
        %2214 = vmatprep.subr.bf16.mxu0 0
        %2215 = vmatpush2.bf16.msra.mxu0 0
        %2216 = vmatprep.subr.bf16.mxu0 0
        %2217 = vmatpush2.bf16.msra.mxu0 0
        %2218 = vmatprep.subr.bf16.mxu0 0
        %2219 = vmatpush2.bf16.msra.mxu0 0
        %2220 = vmatprep.subr.bf16.mxu0 0
        %2221 = vmatpush2.bf16.msra.mxu0 0
        %2222 = vmatprep.subr.bf16.mxu0 0
        %2223 = vmatpush2.bf16.msra.mxu0 0
        %2224 = vmatprep.mubr.bf16.mxu0 0
        %2225 = vmatmul.mubr.bf16.gmra.mxu0 %v2187
        %v2226 = vpop.f32.mrf.mxu0
        %v2227 = vadd.f32 0.0, %v2226
        %v2228 = vpop.f32.mrf.mxu0
        %v2229 = vpop.f32.mrf.mxu0
        %v2230 = vpop.f32.mrf.mxu0
        %2231 = vdwg.mxu0
        %v2232 = vpack.c.bf16 %v2227, %v2227
        %v2241 = vunpack.c.l.b16 %v1978
        %v2242 = vunpack.c.h.b16 %v1978
        %v2243 = vunpack.c.l.b16 %v1979
        %v2244 = vunpack.c.h.b16 %v1979
        %v2245 = vunpack.c.l.b16 %v1980
        %v2246 = vunpack.c.h.b16 %v1980
        %v2247 = vunpack.c.l.b16 %v1981
        %v2248 = vunpack.c.h.b16 %v1981
        %v2249 = vunpack.c.l.b16 %v1982
        %v2250 = vunpack.c.h.b16 %v1982
        %v2251 = vunpack.c.l.b16 %v1983
        %v2252 = vunpack.c.h.b16 %v1983
        %v2253 = vunpack.c.l.b16 %v1984
        %v2254 = vunpack.c.h.b16 %v1984
        %v2255 = vunpack.c.l.b16 %v1985
        %v2256 = vunpack.c.h.b16 %v1985
        %v2257 = vpack.c.b16 %v2243, %v2241
        %v2258 = vpack.c.b16 %v2244, %v2242
        %v2259 = vpack.c.b16 %v2247, %v2245
        %v2260 = vpack.c.b16 %v2248, %v2246
        %v2261 = vpack.c.b16 %v2251, %v2249
        %v2262 = vpack.c.b16 %v2252, %v2250
        %v2263 = vpack.c.b16 %v2255, %v2253
        %v2264 = vpack.c.b16 %v2256, %v2254
        %v2274 = vsel %vm2011, %v2232, 0
        %2276 = vmatprep.subr.bf16.mxu0 0
        %2277 = vmatpush1.bf16.msra.mxu0 0
        %2278 = vmatprep.subr.bf16.mxu0 0
        %2279 = vmatpush1.bf16.msra.mxu0 0
        %2280 = vmatprep.subr.bf16.mxu0 0
        %2281 = vmatpush1.bf16.msra.mxu0 0
        %2282 = vmatprep.subr.bf16.mxu0 0
        %2283 = vmatpush1.bf16.msra.mxu0 0
        %2284 = vmatprep.subr.bf16.mxu0 %v2264
        %2285 = vmatpush1.bf16.msra.mxu0 %v2263
        %2286 = vmatprep.subr.bf16.mxu0 %v2262
        %2287 = vmatpush1.bf16.msra.mxu0 %v2261
        %2288 = vmatprep.subr.bf16.mxu0 %v2260
        %2289 = vmatpush1.bf16.msra.mxu0 %v2259
        %2290 = vmatprep.subr.bf16.mxu0 %v2258
        %2291 = vmatpush1.bf16.msra.mxu0 %v2257
        %2292 = vmatprep.subr.bf16.mxu0 0
        %2293 = vmatpush2.bf16.msra.mxu0 0
        %2294 = vmatprep.subr.bf16.mxu0 0
        %2295 = vmatpush2.bf16.msra.mxu0 0
        %2296 = vmatprep.subr.bf16.mxu0 0
        %2297 = vmatpush2.bf16.msra.mxu0 0
        %2298 = vmatprep.subr.bf16.mxu0 0
        %2299 = vmatpush2.bf16.msra.mxu0 0
        %2300 = vmatprep.subr.bf16.mxu0 0
        %2301 = vmatpush2.bf16.msra.mxu0 0
        %2302 = vmatprep.subr.bf16.mxu0 0
        %2303 = vmatpush2.bf16.msra.mxu0 0
        %2304 = vmatprep.subr.bf16.mxu0 0
        %2305 = vmatpush2.bf16.msra.mxu0 0
        %2306 = vmatprep.subr.bf16.mxu0 0
        %2307 = vmatpush2.bf16.msra.mxu0 0
        %2308 = vmatprep.mubr.bf16.mxu0 0
        %2309 = vmatmul.mubr.bf16.gmra.mxu0 %v2274
        %v2310 = vpop.f32.mrf.mxu0
        %v2311 = vadd.f32 0.0, %v2310
        %v2312 = vpop.f32.mrf.mxu0
        %v2313 = vadd.f32 0.0, %v2312
        %v2314 = vpop.f32.mrf.mxu0
        %v2315 = vpop.f32.mrf.mxu0
        %2316 = vdwg.mxu0
        %v2325 = vunpack.c.l.b16 %v1970
        %v2326 = vunpack.c.h.b16 %v1970
        %v2327 = vunpack.c.l.b16 %v1971
        %v2328 = vunpack.c.h.b16 %v1971
        %v2329 = vunpack.c.l.b16 %v1972
        %v2330 = vunpack.c.h.b16 %v1972
        %v2331 = vunpack.c.l.b16 %v1973
        %v2332 = vunpack.c.h.b16 %v1973
        %v2333 = vunpack.c.l.b16 %v1974
        %v2334 = vunpack.c.h.b16 %v1974
        %v2335 = vunpack.c.l.b16 %v1975
        %v2336 = vunpack.c.h.b16 %v1975
        %v2337 = vunpack.c.l.b16 %v1976
        %v2338 = vunpack.c.h.b16 %v1976
        %v2339 = vunpack.c.l.b16 %v1977
        %v2340 = vunpack.c.h.b16 %v1977
        %v2341 = vpack.c.b16 %v2327, %v2325
        %v2342 = vpack.c.b16 %v2328, %v2326
        %v2343 = vpack.c.b16 %v2331, %v2329
        %v2344 = vpack.c.b16 %v2332, %v2330
        %v2345 = vpack.c.b16 %v2335, %v2333
        %v2346 = vpack.c.b16 %v2336, %v2334
        %v2347 = vpack.c.b16 %v2339, %v2337
        %v2348 = vpack.c.b16 %v2340, %v2338
        %v2358 = vsel %vm2011, %v2118, 0
        %2360 = vmatprep.subr.bf16.mxu0 0
        %2361 = vmatpush1.bf16.msra.mxu0 0
        %2362 = vmatprep.subr.bf16.mxu0 0
        %2363 = vmatpush1.bf16.msra.mxu0 0
        %2364 = vmatprep.subr.bf16.mxu0 0
        %2365 = vmatpush1.bf16.msra.mxu0 0
        %2366 = vmatprep.subr.bf16.mxu0 0
        %2367 = vmatpush1.bf16.msra.mxu0 0
        %2368 = vmatprep.subr.bf16.mxu0 %v2348
        %2369 = vmatpush1.bf16.msra.mxu0 %v2347
        %2370 = vmatprep.subr.bf16.mxu0 %v2346
        %2371 = vmatpush1.bf16.msra.mxu0 %v2345
        %2372 = vmatprep.subr.bf16.mxu0 %v2344
        %2373 = vmatpush1.bf16.msra.mxu0 %v2343
        %2374 = vmatprep.subr.bf16.mxu0 %v2342
        %2375 = vmatpush1.bf16.msra.mxu0 %v2341
        %2376 = vmatprep.subr.bf16.mxu0 0
        %2377 = vmatpush2.bf16.msra.mxu0 0
        %2378 = vmatprep.subr.bf16.mxu0 0
        %2379 = vmatpush2.bf16.msra.mxu0 0
        %2380 = vmatprep.subr.bf16.mxu0 0
        %2381 = vmatpush2.bf16.msra.mxu0 0
        %2382 = vmatprep.subr.bf16.mxu0 0
        %2383 = vmatpush2.bf16.msra.mxu0 0
        %2384 = vmatprep.subr.bf16.mxu0 0
        %2385 = vmatpush2.bf16.msra.mxu0 0
        %2386 = vmatprep.subr.bf16.mxu0 0
        %2387 = vmatpush2.bf16.msra.mxu0 0
        %2388 = vmatprep.subr.bf16.mxu0 0
        %2389 = vmatpush2.bf16.msra.mxu0 0
        %2390 = vmatprep.subr.bf16.mxu0 0
        %2391 = vmatpush2.bf16.msra.mxu0 0
        %2392 = vmatprep.mubr.bf16.mxu0 0
        %2393 = vmatmul.mubr.bf16.gmra.mxu0 %v2358
        %v2394 = vpop.f32.mrf.mxu0
        %v2395 = vadd.f32 %v2311, %v2394
        %v2396 = vpop.f32.mrf.mxu0
        %v2397 = vadd.f32 %v2313, %v2396
        %v2398 = vpop.f32.mrf.mxu0
        %v2399 = vpop.f32.mrf.mxu0
        %2400 = vdwg.mxu0
        %v2401 = vpack.c.bf16 %v1884, %v1884
        %v2402 = vpack.c.bf16 %v1925, %v1925
        %v2403 = vpack.c.bf16 %v1966, %v1966
        %v2405 = vsel %vm2011, %v2401, 0
        %v2408 = vsel %vm2011, %v2402, 0
        %2410 = vmatprep.subr.bf16.mxu0 0
        %2411 = vmatpush1.bf16.xpose.msra.mxu0 0
        %2412 = vmatprep.subr.bf16.mxu0 0
        %2413 = vmatpush1.bf16.xpose.msra.mxu0 0
        %2414 = vmatprep.subr.bf16.mxu0 0
        %2415 = vmatpush1.bf16.xpose.msra.mxu0 0
        %2416 = vmatprep.subr.bf16.mxu0 0
        %2417 = vmatpush1.bf16.xpose.msra.mxu0 0
        %2418 = vmatprep.subr.bf16.mxu0 0
        %2419 = vmatpush1.bf16.xpose.msra.mxu0 0
        %2420 = vmatprep.subr.bf16.mxu0 0
        %2421 = vmatpush1.bf16.xpose.msra.mxu0 0
        %2422 = vmatprep.subr.bf16.mxu0 0
        %2423 = vmatpush1.bf16.xpose.msra.mxu0 0
        %2424 = vmatprep.subr.bf16.mxu0 0
        %2425 = vmatpush1.bf16.xpose.msra.mxu0 %v2408
        %2426 = vmatprep.subr.bf16.mxu0 0
        %2427 = vmatpush2.bf16.xpose.msra.mxu0 0
        %2428 = vmatprep.subr.bf16.mxu0 0
        %2429 = vmatpush2.bf16.xpose.msra.mxu0 0
        %2430 = vmatprep.subr.bf16.mxu0 0
        %2431 = vmatpush2.bf16.xpose.msra.mxu0 0
        %2432 = vmatprep.subr.bf16.mxu0 0
        %2433 = vmatpush2.bf16.xpose.msra.mxu0 0
        %2434 = vmatprep.subr.bf16.mxu0 0
        %2435 = vmatpush2.bf16.xpose.msra.mxu0 0
        %2436 = vmatprep.subr.bf16.mxu0 0
        %2437 = vmatpush2.bf16.xpose.msra.mxu0 0
        %2438 = vmatprep.subr.bf16.mxu0 0
        %2439 = vmatpush2.bf16.xpose.msra.mxu0 0
        %2440 = vmatprep.subr.bf16.mxu0 0
        %2441 = vmatpush2.bf16.xpose.msra.mxu0 0
        %2442 = vmatprep.mubr.bf16.mxu0 0
        %2443 = vmatmul.mubr.bf16.gmra.mxu0 %v2405
        %v2444 = vpop.f32.mrf.mxu0
        %v2445 = vadd.f32 %v2009, %v2444
        %v2446 = vpop.f32.mrf.mxu0
        %v2447 = vpop.f32.mrf.mxu0
        %v2448 = vpop.f32.mrf.mxu0
        %2449 = vdwg.mxu0
        %v2450 = vsel %vm2058, %v2445, -inf
        %2451 = vmax.xlane.f32.xlu0 %v2450
        %v2452 = vpop.xlane.xlu0 %2451
        %v2453 = vsub.f32 %v2445, %v2452
        %v2454 = vmul.f32 %v2453, 1.442695
        %v2455 = vpow.pop %v2454
        %v2456 = vsel %vm2058, %v2455, 0.0
        %2457 = vadd.xlane.f32.xlu0 %v2456
        %v2458 = vpop.xlane.xlu0 %2457
        %v2459 = vrcp.pop %v2458
        %v2460 = vmul.f32 %v2455, %v2459
        %v2461 = vpack.c.bf16 %v2460, %v2460
        %v2463 = vsel %vm2058, %v2461, 0
        %v2466 = vsel %vm2074, %v2403, 0
        %2468 = vmatprep.subr.bf16.mxu0 0
        %2469 = vmatpush1.bf16.msra.mxu0 0
        %2470 = vmatprep.subr.bf16.mxu0 0
        %2471 = vmatpush1.bf16.msra.mxu0 0
        %2472 = vmatprep.subr.bf16.mxu0 0
        %2473 = vmatpush1.bf16.msra.mxu0 0
        %2474 = vmatprep.subr.bf16.mxu0 0
        %2475 = vmatpush1.bf16.msra.mxu0 0
        %2476 = vmatprep.subr.bf16.mxu0 0
        %2477 = vmatpush1.bf16.msra.mxu0 0
        %2478 = vmatprep.subr.bf16.mxu0 0
        %2479 = vmatpush1.bf16.msra.mxu0 0
        %2480 = vmatprep.subr.bf16.mxu0 0
        %2481 = vmatpush1.bf16.msra.mxu0 0
        %2482 = vmatprep.subr.bf16.mxu0 0
        %2483 = vmatpush1.bf16.msra.mxu0 %v2466
        %2484 = vmatprep.subr.bf16.mxu0 0
        %2485 = vmatpush2.bf16.msra.mxu0 0
        %2486 = vmatprep.subr.bf16.mxu0 0
        %2487 = vmatpush2.bf16.msra.mxu0 0
        %2488 = vmatprep.subr.bf16.mxu0 0
        %2489 = vmatpush2.bf16.msra.mxu0 0
        %2490 = vmatprep.subr.bf16.mxu0 0
        %2491 = vmatpush2.bf16.msra.mxu0 0
        %2492 = vmatprep.subr.bf16.mxu0 0
        %2493 = vmatpush2.bf16.msra.mxu0 0
        %2494 = vmatprep.subr.bf16.mxu0 0
        %2495 = vmatpush2.bf16.msra.mxu0 0
        %2496 = vmatprep.subr.bf16.mxu0 0
        %2497 = vmatpush2.bf16.msra.mxu0 0
        %2498 = vmatprep.subr.bf16.mxu0 0
        %2499 = vmatpush2.bf16.msra.mxu0 0
        %2500 = vmatprep.mubr.bf16.mxu0 0
        %2501 = vmatmul.mubr.bf16.gmra.mxu0 %v2463
        %v2502 = vpop.f32.mrf.mxu0
        %v2503 = vadd.f32 0.0, %v2502
        %v2504 = vpop.f32.mrf.mxu0
        %v2505 = vpop.f32.mrf.mxu0
        %v2506 = vpop.f32.mrf.mxu0
        %2507 = vdwg.mxu0
        %v2508 = vpack.c.bf16 %v2503, %v2503
        %v2517 = vunpack.c.l.b16 %v1986
        %v2518 = vunpack.c.h.b16 %v1986
        %v2519 = vunpack.c.l.b16 %v1987
        %v2520 = vunpack.c.h.b16 %v1987
        %v2521 = vunpack.c.l.b16 %v1988
        %v2522 = vunpack.c.h.b16 %v1988
        %v2523 = vunpack.c.l.b16 %v1989
        %v2524 = vunpack.c.h.b16 %v1989
        %v2525 = vunpack.c.l.b16 %v1990
        %v2526 = vunpack.c.h.b16 %v1990
        %v2527 = vunpack.c.l.b16 %v1991
        %v2528 = vunpack.c.h.b16 %v1991
        %v2529 = vunpack.c.l.b16 %v1992
        %v2530 = vunpack.c.h.b16 %v1992
        %v2531 = vunpack.c.l.b16 %v1993
        %v2532 = vunpack.c.h.b16 %v1993
        %v2533 = vpack.c.b16 %v2519, %v2517
        %v2534 = vpack.c.b16 %v2520, %v2518
        %v2535 = vpack.c.b16 %v2523, %v2521
        %v2536 = vpack.c.b16 %v2524, %v2522
        %v2537 = vpack.c.b16 %v2527, %v2525
        %v2538 = vpack.c.b16 %v2528, %v2526
        %v2539 = vpack.c.b16 %v2531, %v2529
        %v2540 = vpack.c.b16 %v2532, %v2530
        %v2550 = vsel %vm2011, %v2508, 0
        %2552 = vmatprep.subr.bf16.mxu0 0
        %2553 = vmatpush1.bf16.msra.mxu0 0
        %2554 = vmatprep.subr.bf16.mxu0 0
        %2555 = vmatpush1.bf16.msra.mxu0 0
        %2556 = vmatprep.subr.bf16.mxu0 0
        %2557 = vmatpush1.bf16.msra.mxu0 0
        %2558 = vmatprep.subr.bf16.mxu0 0
        %2559 = vmatpush1.bf16.msra.mxu0 0
        %2560 = vmatprep.subr.bf16.mxu0 %v2540
        %2561 = vmatpush1.bf16.msra.mxu0 %v2539
        %2562 = vmatprep.subr.bf16.mxu0 %v2538
        %2563 = vmatpush1.bf16.msra.mxu0 %v2537
        %2564 = vmatprep.subr.bf16.mxu0 %v2536
        %2565 = vmatpush1.bf16.msra.mxu0 %v2535
        %2566 = vmatprep.subr.bf16.mxu0 %v2534
        %2567 = vmatpush1.bf16.msra.mxu0 %v2533
        %2568 = vmatprep.subr.bf16.mxu0 0
        %2569 = vmatpush2.bf16.msra.mxu0 0
        %2570 = vmatprep.subr.bf16.mxu0 0
        %2571 = vmatpush2.bf16.msra.mxu0 0
        %2572 = vmatprep.subr.bf16.mxu0 0
        %2573 = vmatpush2.bf16.msra.mxu0 0
        %2574 = vmatprep.subr.bf16.mxu0 0
        %2575 = vmatpush2.bf16.msra.mxu0 0
        %2576 = vmatprep.subr.bf16.mxu0 0
        %2577 = vmatpush2.bf16.msra.mxu0 0
        %2578 = vmatprep.subr.bf16.mxu0 0
        %2579 = vmatpush2.bf16.msra.mxu0 0
        %2580 = vmatprep.subr.bf16.mxu0 0
        %2581 = vmatpush2.bf16.msra.mxu0 0
        %2582 = vmatprep.subr.bf16.mxu0 0
        %2583 = vmatpush2.bf16.msra.mxu0 0
        %2584 = vmatprep.mubr.bf16.mxu0 0
        %2585 = vmatmul.mubr.bf16.gmra.mxu0 %v2550
        %v2586 = vpop.f32.mrf.mxu0
        %v2587 = vadd.f32 0.0, %v2586
        %v2588 = vpop.f32.mrf.mxu0
        %v2589 = vadd.f32 0.0, %v2588
        %v2590 = vpop.f32.mrf.mxu0
        %v2591 = vpop.f32.mrf.mxu0
        %2592 = vdwg.mxu0
        %v2593 = vadd.f32 %v2395, %v2587
        %v2594 = vadd.f32 %v2397, %v2589
        %2596 = vrot.lane.b32.xlu0 %v2401, 64
        %v2597 = vpop.permute.xlu0 %2596
        %2599 = vrot.lane.b32.xlu0 %v2402, 64
        %v2600 = vpop.permute.xlu0 %2599
        %v2602 = vsel %vm2011, %v2597, 0
        %v2605 = vsel %vm2011, %v2600, 0
        %2607 = vmatprep.subr.bf16.mxu0 0
        %2608 = vmatpush1.bf16.xpose.msra.mxu0 0
        %2609 = vmatprep.subr.bf16.mxu0 0
        %2610 = vmatpush1.bf16.xpose.msra.mxu0 0
        %2611 = vmatprep.subr.bf16.mxu0 0
        %2612 = vmatpush1.bf16.xpose.msra.mxu0 0
        %2613 = vmatprep.subr.bf16.mxu0 0
        %2614 = vmatpush1.bf16.xpose.msra.mxu0 0
        %2615 = vmatprep.subr.bf16.mxu0 0
        %2616 = vmatpush1.bf16.xpose.msra.mxu0 0
        %2617 = vmatprep.subr.bf16.mxu0 0
        %2618 = vmatpush1.bf16.xpose.msra.mxu0 0
        %2619 = vmatprep.subr.bf16.mxu0 0
        %2620 = vmatpush1.bf16.xpose.msra.mxu0 0
        %2621 = vmatprep.subr.bf16.mxu0 0
        %2622 = vmatpush1.bf16.xpose.msra.mxu0 %v2605
        %2623 = vmatprep.subr.bf16.mxu0 0
        %2624 = vmatpush2.bf16.xpose.msra.mxu0 0
        %2625 = vmatprep.subr.bf16.mxu0 0
        %2626 = vmatpush2.bf16.xpose.msra.mxu0 0
        %2627 = vmatprep.subr.bf16.mxu0 0
        %2628 = vmatpush2.bf16.xpose.msra.mxu0 0
        %2629 = vmatprep.subr.bf16.mxu0 0
        %2630 = vmatpush2.bf16.xpose.msra.mxu0 0
        %2631 = vmatprep.subr.bf16.mxu0 0
        %2632 = vmatpush2.bf16.xpose.msra.mxu0 0
        %2633 = vmatprep.subr.bf16.mxu0 0
        %2634 = vmatpush2.bf16.xpose.msra.mxu0 0
        %2635 = vmatprep.subr.bf16.mxu0 0
        %2636 = vmatpush2.bf16.xpose.msra.mxu0 0
        %2637 = vmatprep.subr.bf16.mxu0 0
        %2638 = vmatpush2.bf16.xpose.msra.mxu0 0
        %2639 = vmatprep.mubr.bf16.mxu0 0
        %2640 = vmatmul.mubr.bf16.gmra.mxu0 %v2602
        %v2641 = vpop.f32.mrf.mxu0
        %v2642 = vadd.f32 %v2009, %v2641
        %v2643 = vpop.f32.mrf.mxu0
        %v2644 = vpop.f32.mrf.mxu0
        %v2645 = vpop.f32.mrf.mxu0
        %2646 = vdwg.mxu0
        %v2647 = vsel %vm2058, %v2642, -inf
        %2648 = vmax.xlane.f32.xlu0 %v2647
        %v2649 = vpop.xlane.xlu0 %2648
        %v2650 = vsub.f32 %v2642, %v2649
        %v2651 = vmul.f32 %v2650, 1.442695
        %v2652 = vpow.pop %v2651
        %v2653 = vsel %vm2058, %v2652, 0.0
        %2654 = vadd.xlane.f32.xlu0 %v2653
        %v2655 = vpop.xlane.xlu0 %2654
        %v2656 = vrcp.pop %v2655
        %v2657 = vmul.f32 %v2652, %v2656
        %v2658 = vpack.c.bf16 %v2657, %v2657
        %2660 = vrot.lane.b32.xlu0 %v2403, 64
        %v2661 = vpop.permute.xlu0 %2660
        %v2663 = vsel %vm2058, %v2658, 0
        %v2666 = vsel %vm2074, %v2661, 0
        %2668 = vmatprep.subr.bf16.mxu0 0
        %2669 = vmatpush1.bf16.msra.mxu0 0
        %2670 = vmatprep.subr.bf16.mxu0 0
        %2671 = vmatpush1.bf16.msra.mxu0 0
        %2672 = vmatprep.subr.bf16.mxu0 0
        %2673 = vmatpush1.bf16.msra.mxu0 0
        %2674 = vmatprep.subr.bf16.mxu0 0
        %2675 = vmatpush1.bf16.msra.mxu0 0
        %2676 = vmatprep.subr.bf16.mxu0 0
        %2677 = vmatpush1.bf16.msra.mxu0 0
        %2678 = vmatprep.subr.bf16.mxu0 0
        %2679 = vmatpush1.bf16.msra.mxu0 0
        %2680 = vmatprep.subr.bf16.mxu0 0
        %2681 = vmatpush1.bf16.msra.mxu0 0
        %2682 = vmatprep.subr.bf16.mxu0 0
        %2683 = vmatpush1.bf16.msra.mxu0 %v2666
        %2684 = vmatprep.subr.bf16.mxu0 0
        %2685 = vmatpush2.bf16.msra.mxu0 0
        %2686 = vmatprep.subr.bf16.mxu0 0
        %2687 = vmatpush2.bf16.msra.mxu0 0
        %2688 = vmatprep.subr.bf16.mxu0 0
        %2689 = vmatpush2.bf16.msra.mxu0 0
        %2690 = vmatprep.subr.bf16.mxu0 0
        %2691 = vmatpush2.bf16.msra.mxu0 0
        %2692 = vmatprep.subr.bf16.mxu0 0
        %2693 = vmatpush2.bf16.msra.mxu0 0
        %2694 = vmatprep.subr.bf16.mxu0 0
        %2695 = vmatpush2.bf16.msra.mxu0 0
        %2696 = vmatprep.subr.bf16.mxu0 0
        %2697 = vmatpush2.bf16.msra.mxu0 0
        %2698 = vmatprep.subr.bf16.mxu0 0
        %2699 = vmatpush2.bf16.msra.mxu0 0
        %2700 = vmatprep.mubr.bf16.mxu0 0
        %2701 = vmatmul.mubr.bf16.gmra.mxu0 %v2663
        %v2702 = vpop.f32.mrf.mxu0
        %v2703 = vadd.f32 0.0, %v2702
        %v2704 = vpop.f32.mrf.mxu0
        %v2705 = vpop.f32.mrf.mxu0
        %v2706 = vpop.f32.mrf.mxu0
        %2707 = vdwg.mxu0
        %v2708 = vpack.c.bf16 %v2703, %v2703
        %v2717 = vunpack.c.l.b16 %v1994
        %v2718 = vunpack.c.h.b16 %v1994
        %v2719 = vunpack.c.l.b16 %v1995
        %v2720 = vunpack.c.h.b16 %v1995
        %v2721 = vunpack.c.l.b16 %v1996
        %v2722 = vunpack.c.h.b16 %v1996
        %v2723 = vunpack.c.l.b16 %v1997
        %v2724 = vunpack.c.h.b16 %v1997
        %v2725 = vunpack.c.l.b16 %v1998
        %v2726 = vunpack.c.h.b16 %v1998
        %v2727 = vunpack.c.l.b16 %v1999
        %v2728 = vunpack.c.h.b16 %v1999
        %v2729 = vunpack.c.l.b16 %v2000
        %v2730 = vunpack.c.h.b16 %v2000
        %v2731 = vunpack.c.l.b16 %v2001
        %v2732 = vunpack.c.h.b16 %v2001
        %v2733 = vpack.c.b16 %v2719, %v2717
        %v2734 = vpack.c.b16 %v2720, %v2718
        %v2735 = vpack.c.b16 %v2723, %v2721
        %v2736 = vpack.c.b16 %v2724, %v2722
        %v2737 = vpack.c.b16 %v2727, %v2725
        %v2738 = vpack.c.b16 %v2728, %v2726
        %v2739 = vpack.c.b16 %v2731, %v2729
        %v2740 = vpack.c.b16 %v2732, %v2730
        %v2750 = vsel %vm2011, %v2708, 0
        %2752 = vmatprep.subr.bf16.mxu0 0
        %2753 = vmatpush1.bf16.msra.mxu0 0
        %2754 = vmatprep.subr.bf16.mxu0 0
        %2755 = vmatpush1.bf16.msra.mxu0 0
        %2756 = vmatprep.subr.bf16.mxu0 0
        %2757 = vmatpush1.bf16.msra.mxu0 0
        %2758 = vmatprep.subr.bf16.mxu0 0
        %2759 = vmatpush1.bf16.msra.mxu0 0
        %2760 = vmatprep.subr.bf16.mxu0 %v2740
        %2761 = vmatpush1.bf16.msra.mxu0 %v2739
        %2762 = vmatprep.subr.bf16.mxu0 %v2738
        %2763 = vmatpush1.bf16.msra.mxu0 %v2737
        %2764 = vmatprep.subr.bf16.mxu0 %v2736
        %2765 = vmatpush1.bf16.msra.mxu0 %v2735
        %2766 = vmatprep.subr.bf16.mxu0 %v2734
        %2767 = vmatpush1.bf16.msra.mxu0 %v2733
        %2768 = vmatprep.subr.bf16.mxu0 0
        %2769 = vmatpush2.bf16.msra.mxu0 0
        %2770 = vmatprep.subr.bf16.mxu0 0
        %2771 = vmatpush2.bf16.msra.mxu0 0
        %2772 = vmatprep.subr.bf16.mxu0 0
        %2773 = vmatpush2.bf16.msra.mxu0 0
        %2774 = vmatprep.subr.bf16.mxu0 0
        %2775 = vmatpush2.bf16.msra.mxu0 0
        %2776 = vmatprep.subr.bf16.mxu0 0
        %2777 = vmatpush2.bf16.msra.mxu0 0
        %2778 = vmatprep.subr.bf16.mxu0 0
        %2779 = vmatpush2.bf16.msra.mxu0 0
        %2780 = vmatprep.subr.bf16.mxu0 0
        %2781 = vmatpush2.bf16.msra.mxu0 0
        %2782 = vmatprep.subr.bf16.mxu0 0
        %2783 = vmatpush2.bf16.msra.mxu0 0
        %2784 = vmatprep.mubr.bf16.mxu0 0
        %2785 = vmatmul.mubr.bf16.gmra.mxu0 %v2750
        %v2786 = vpop.f32.mrf.mxu0
        %v2787 = vadd.f32 0.0, %v2786
        %v2788 = vpop.f32.mrf.mxu0
        %v2789 = vadd.f32 0.0, %v2788
        %v2790 = vpop.f32.mrf.mxu0
        %v2791 = vpop.f32.mrf.mxu0
        %2792 = vdwg.mxu0
        %v2793 = vadd.f32 %v2593, %v2787
        %v2794 = vadd.f32 %v2594, %v2789
        %v2795 = vld [vmem:[%s924] sm:$0x3]
        %v2797 = vlaneseq
        %v2798 = vshrl.u32 %v2797, 7
        %v2799 = vsub.s32 0, %v2798
        %v2800 = vrot.slane %v2795, %v2799
        %v2801 = vlaneseq
        %v2802 = vshrl.u32 %v2801, 7
        %v2803 = vsub.s32 1, %v2802
        %v2804 = vrot.slane %v2795, %v2803
        %v2807 = vadd.f32 %v2793, %v2800
        %v2808 = vadd.f32 %v2794, %v2804
        %v2809 = vadd.f32 %v1234, %v2807
        %v2810 = vadd.f32 %v1235, %v2808
        %v2811 = vld [vmem:[%s933] sm:$0x3]
        %v2812 = vld [vmem:[%s942] sm:$0x3]
        %v2813 = vadd.f32 %v2809, %v2810
        %2814 = vadd.xlane.f32.xlu0 %v2813
        %v2815 = vpop.xlane.xlu0 %2814
        %v2816 = vrcp.pop 256.0
        %v2817 = vmul.f32 %v2815, %v2816
        %v2818 = vsub.f32 %v2809, %v2817
        %v2819 = vsub.f32 %v2810, %v2817
        %v2820 = vmul.f32 %v2818, %v2818
        %v2821 = vmul.f32 %v2819, %v2819
        %v2822 = vadd.f32 %v2820, %v2821
        %2823 = vadd.xlane.f32.xlu0 %v2822
        %v2824 = vpop.xlane.xlu0 %2823
        %v2825 = vmul.f32 %v2824, %v2816
        %v2826 = vadd.f32 %v2825, 1e-05
        %v2827 = vrsqrt.pop %v2826
        %v2828 = vmul.f32 %v2818, %v2827
        %v2829 = vmul.f32 %v2819, %v2827
        %v2831 = vlaneseq
        %v2832 = vshrl.u32 %v2831, 7
        %v2833 = vsub.s32 0, %v2832
        %v2834 = vrot.slane %v2811, %v2833
        %v2835 = vlaneseq
        %v2836 = vshrl.u32 %v2835, 7
        %v2837 = vsub.s32 1, %v2836
        %v2838 = vrot.slane %v2811, %v2837
        %v2841 = vmul.f32 %v2828, %v2834
        %v2842 = vmul.f32 %v2829, %v2838
        %v2844 = vlaneseq
        %v2845 = vshrl.u32 %v2844, 7
        %v2846 = vsub.s32 0, %v2845
        %v2847 = vrot.slane %v2812, %v2846
        %v2848 = vlaneseq
        %v2849 = vshrl.u32 %v2848, 7
        %v2850 = vsub.s32 1, %v2849
        %v2851 = vrot.slane %v2812, %v2850
        %v2854 = vadd.f32 %v2841, %v2847
        %v2855 = vadd.f32 %v2842, %v2851
        %v2856 = vpack.c.bf16 %v2854, %v2854
        %v2857 = vpack.c.bf16 %v2855, %v2855
        %v2858 = vld [vmem:[%s1133] sm:$0xf]
        %v2859 = vld [vmem:[%s1133 + $0x4] sm:$0xf]
        %v2860 = vld [vmem:[%s1133 + $0x8] sm:$0xf]
        %v2861 = vld [vmem:[%s1133 + $0xc] sm:$0xf]
        %v2862 = vld [vmem:[%s1133 + $0x10] sm:$0xf]
        %v2863 = vld [vmem:[%s1133 + $0x14] sm:$0xf]
        %v2864 = vld [vmem:[%s1133 + $0x18] sm:$0xf]
        %v2865 = vld [vmem:[%s1133 + $0x1c] sm:$0xf]
        %v2866 = vld [vmem:[%s1133 + $0x20] sm:$0xf]
        %v2867 = vld [vmem:[%s1133 + $0x24] sm:$0xf]
        %v2868 = vld [vmem:[%s1133 + $0x28] sm:$0xf]
        %v2869 = vld [vmem:[%s1133 + $0x2c] sm:$0xf]
        %v2870 = vld [vmem:[%s1133 + $0x30] sm:$0xf]
        %v2871 = vld [vmem:[%s1133 + $0x34] sm:$0xf]
        %v2872 = vld [vmem:[%s1133 + $0x38] sm:$0xf]
        %v2873 = vld [vmem:[%s1133 + $0x3c] sm:$0xf]
        %v2874 = vld [vmem:[%s1133 + $0x40] sm:$0xf]
        %v2875 = vld [vmem:[%s1133 + $0x44] sm:$0xf]
        %v2876 = vld [vmem:[%s1133 + $0x48] sm:$0xf]
        %v2877 = vld [vmem:[%s1133 + $0x4c] sm:$0xf]
        %v2878 = vld [vmem:[%s1133 + $0x50] sm:$0xf]
        %v2879 = vld [vmem:[%s1133 + $0x54] sm:$0xf]
        %v2880 = vld [vmem:[%s1133 + $0x58] sm:$0xf]
        %v2881 = vld [vmem:[%s1133 + $0x5c] sm:$0xf]
        %v2882 = vld [vmem:[%s1133 + $0x60] sm:$0xf]
        %v2883 = vld [vmem:[%s1133 + $0x64] sm:$0xf]
        %v2884 = vld [vmem:[%s1133 + $0x68] sm:$0xf]
        %v2885 = vld [vmem:[%s1133 + $0x6c] sm:$0xf]
        %v2886 = vld [vmem:[%s1133 + $0x70] sm:$0xf]
        %v2887 = vld [vmem:[%s1133 + $0x74] sm:$0xf]
        %v2888 = vld [vmem:[%s1133 + $0x78] sm:$0xf]
        %v2889 = vld [vmem:[%s1133 + $0x7c] sm:$0xf]
        %v2890 = vld [vmem:[%s950] sm:$0x1]
        %v2892 = vlaneseq
        %v2893 = vshrl.u32 %v2892, 7
        %v2894 = vsub.s32 0, %v2893
        %v2895 = vrot.slane %v2890, %v2894
        %v2929 = vunpack.c.l.b16 %v2858
        %v2930 = vunpack.c.l.b16 %v2859
        %v2931 = vunpack.c.l.b16 %v2860
        %v2932 = vunpack.c.l.b16 %v2861
        %v2933 = vunpack.c.l.b16 %v2862
        %v2934 = vunpack.c.l.b16 %v2863
        %v2935 = vunpack.c.l.b16 %v2864
        %v2936 = vunpack.c.l.b16 %v2865
        %v2937 = vunpack.c.l.b16 %v2866
        %v2938 = vunpack.c.l.b16 %v2867
        %v2939 = vunpack.c.l.b16 %v2868
        %v2940 = vunpack.c.l.b16 %v2869
        %v2941 = vunpack.c.l.b16 %v2870
        %v2942 = vunpack.c.l.b16 %v2871
        %v2943 = vunpack.c.l.b16 %v2872
        %v2944 = vunpack.c.l.b16 %v2873
        %v2945 = vunpack.c.l.b16 %v2874
        %v2946 = vunpack.c.l.b16 %v2875
        %v2947 = vunpack.c.l.b16 %v2876
        %v2948 = vunpack.c.l.b16 %v2877
        %v2949 = vunpack.c.l.b16 %v2878
        %v2950 = vunpack.c.l.b16 %v2879
        %v2951 = vunpack.c.l.b16 %v2880
        %v2952 = vunpack.c.l.b16 %v2881
        %v2953 = vunpack.c.l.b16 %v2882
        %v2954 = vunpack.c.l.b16 %v2883
        %v2955 = vunpack.c.l.b16 %v2884
        %v2956 = vunpack.c.l.b16 %v2885
        %v2957 = vunpack.c.l.b16 %v2886
        %v2958 = vunpack.c.l.b16 %v2887
        %v2959 = vunpack.c.l.b16 %v2888
        %v2960 = vunpack.c.l.b16 %v2889
        %v2961 = vpack.c.b16 %v2930, %v2929
        %v2962 = vpack.c.b16 %v2932, %v2931
        %v2963 = vpack.c.b16 %v2934, %v2933
        %v2964 = vpack.c.b16 %v2936, %v2935
        %v2965 = vpack.c.b16 %v2938, %v2937
        %v2966 = vpack.c.b16 %v2940, %v2939
        %v2967 = vpack.c.b16 %v2942, %v2941
        %v2968 = vpack.c.b16 %v2944, %v2943
        %v2969 = vpack.c.b16 %v2946, %v2945
        %v2970 = vpack.c.b16 %v2948, %v2947
        %v2971 = vpack.c.b16 %v2950, %v2949
        %v2972 = vpack.c.b16 %v2952, %v2951
        %v2973 = vpack.c.b16 %v2954, %v2953
        %v2974 = vpack.c.b16 %v2956, %v2955
        %v2975 = vpack.c.b16 %v2958, %v2957
        %v2976 = vpack.c.b16 %v2960, %v2959
        %2993 = vmatprep.subr.bf16.mxu0 0
        %2994 = vmatpush1.bf16.msra.mxu0 %v2968
        %2995 = vmatprep.subr.bf16.mxu0 0
        %2996 = vmatpush1.bf16.msra.mxu0 %v2967
        %2997 = vmatprep.subr.bf16.mxu0 0
        %2998 = vmatpush1.bf16.msra.mxu0 %v2966
        %2999 = vmatprep.subr.bf16.mxu0 0
        %3000 = vmatpush1.bf16.msra.mxu0 %v2965
        %3001 = vmatprep.subr.bf16.mxu0 0
        %3002 = vmatpush1.bf16.msra.mxu0 %v2964
        %3003 = vmatprep.subr.bf16.mxu0 0
        %3004 = vmatpush1.bf16.msra.mxu0 %v2963
        %3005 = vmatprep.subr.bf16.mxu0 0
        %3006 = vmatpush1.bf16.msra.mxu0 %v2962
        %3007 = vmatprep.subr.bf16.mxu0 0
        %3008 = vmatpush1.bf16.msra.mxu0 %v2961
        %3009 = vmatprep.subr.bf16.mxu0 0
        %3010 = vmatpush2.bf16.msra.mxu0 %v2976
        %3011 = vmatprep.subr.bf16.mxu0 0
        %3012 = vmatpush2.bf16.msra.mxu0 %v2975
        %3013 = vmatprep.subr.bf16.mxu0 0
        %3014 = vmatpush2.bf16.msra.mxu0 %v2974
        %3015 = vmatprep.subr.bf16.mxu0 0
        %3016 = vmatpush2.bf16.msra.mxu0 %v2973
        %3017 = vmatprep.subr.bf16.mxu0 0
        %3018 = vmatpush2.bf16.msra.mxu0 %v2972
        %3019 = vmatprep.subr.bf16.mxu0 0
        %3020 = vmatpush2.bf16.msra.mxu0 %v2971
        %3021 = vmatprep.subr.bf16.mxu0 0
        %3022 = vmatpush2.bf16.msra.mxu0 %v2970
        %3023 = vmatprep.subr.bf16.mxu0 0
        %3024 = vmatpush2.bf16.msra.mxu0 %v2969
        %3025 = vmatprep.mubr.bf16.mxu0 %v2857
        %3026 = vmatmul.mubr.bf16.gmra.mxu0 %v2856
        %v3027 = vpop.f32.mrf.mxu0
        %v3028 = vadd.f32 %v2895, %v3027
        %v3029 = vpop.f32.mrf.mxu0
        %v3030 = vpop.f32.mrf.mxu0
        %v3031 = vpop.f32.mrf.mxu0
        %3032 = vdwg.mxu0
        %v3033 = vmax.f32 %v3028, 0.0
        %v3034 = vpack.c.bf16 %v3033, %v3033
        %v3035 = vld [vmem:[%s959] sm:$0xff]
        %v3036 = vld [vmem:[%s959 + $0x8] sm:$0xff]
        %v3037 = vld [vmem:[%s959 + $0x10] sm:$0xff]
        %v3038 = vld [vmem:[%s959 + $0x18] sm:$0xff]
        %v3039 = vld [vmem:[%s959 + $0x20] sm:$0xff]
        %v3040 = vld [vmem:[%s959 + $0x28] sm:$0xff]
        %v3041 = vld [vmem:[%s959 + $0x30] sm:$0xff]
        %v3042 = vld [vmem:[%s959 + $0x38] sm:$0xff]
        %v3043 = vld [vmem:[%s968] sm:$0x3]
        %v3045 = vlaneseq
        %v3046 = vshrl.u32 %v3045, 7
        %v3047 = vsub.s32 0, %v3046
        %v3048 = vrot.slane %v3043, %v3047
        %v3049 = vlaneseq
        %v3050 = vshrl.u32 %v3049, 7
        %v3051 = vsub.s32 1, %v3050
        %v3052 = vrot.slane %v3043, %v3051
        %v3063 = vunpack.c.l.b16 %v3035
        %v3064 = vunpack.c.h.b16 %v3035
        %v3065 = vunpack.c.l.b16 %v3036
        %v3066 = vunpack.c.h.b16 %v3036
        %v3067 = vunpack.c.l.b16 %v3037
        %v3068 = vunpack.c.h.b16 %v3037
        %v3069 = vunpack.c.l.b16 %v3038
        %v3070 = vunpack.c.h.b16 %v3038
        %v3071 = vunpack.c.l.b16 %v3039
        %v3072 = vunpack.c.h.b16 %v3039
        %v3073 = vunpack.c.l.b16 %v3040
        %v3074 = vunpack.c.h.b16 %v3040
        %v3075 = vunpack.c.l.b16 %v3041
        %v3076 = vunpack.c.h.b16 %v3041
        %v3077 = vunpack.c.l.b16 %v3042
        %v3078 = vunpack.c.h.b16 %v3042
        %v3079 = vpack.c.b16 %v3065, %v3063
        %v3080 = vpack.c.b16 %v3066, %v3064
        %v3081 = vpack.c.b16 %v3069, %v3067
        %v3082 = vpack.c.b16 %v3070, %v3068
        %v3083 = vpack.c.b16 %v3073, %v3071
        %v3084 = vpack.c.b16 %v3074, %v3072
        %v3085 = vpack.c.b16 %v3077, %v3075
        %v3086 = vpack.c.b16 %v3078, %v3076
        %v3096 = vsel %vm2011, %v3034, 0
        %3098 = vmatprep.subr.bf16.mxu0 0
        %3099 = vmatpush1.bf16.msra.mxu0 0
        %3100 = vmatprep.subr.bf16.mxu0 0
        %3101 = vmatpush1.bf16.msra.mxu0 0
        %3102 = vmatprep.subr.bf16.mxu0 0
        %3103 = vmatpush1.bf16.msra.mxu0 0
        %3104 = vmatprep.subr.bf16.mxu0 0
        %3105 = vmatpush1.bf16.msra.mxu0 0
        %3106 = vmatprep.subr.bf16.mxu0 %v3086
        %3107 = vmatpush1.bf16.msra.mxu0 %v3085
        %3108 = vmatprep.subr.bf16.mxu0 %v3084
        %3109 = vmatpush1.bf16.msra.mxu0 %v3083
        %3110 = vmatprep.subr.bf16.mxu0 %v3082
        %3111 = vmatpush1.bf16.msra.mxu0 %v3081
        %3112 = vmatprep.subr.bf16.mxu0 %v3080
        %3113 = vmatpush1.bf16.msra.mxu0 %v3079
        %3114 = vmatprep.subr.bf16.mxu0 0
        %3115 = vmatpush2.bf16.msra.mxu0 0
        %3116 = vmatprep.subr.bf16.mxu0 0
        %3117 = vmatpush2.bf16.msra.mxu0 0
        %3118 = vmatprep.subr.bf16.mxu0 0
        %3119 = vmatpush2.bf16.msra.mxu0 0
        %3120 = vmatprep.subr.bf16.mxu0 0
        %3121 = vmatpush2.bf16.msra.mxu0 0
        %3122 = vmatprep.subr.bf16.mxu0 0
        %3123 = vmatpush2.bf16.msra.mxu0 0
        %3124 = vmatprep.subr.bf16.mxu0 0
        %3125 = vmatpush2.bf16.msra.mxu0 0
        %3126 = vmatprep.subr.bf16.mxu0 0
        %3127 = vmatpush2.bf16.msra.mxu0 0
        %3128 = vmatprep.subr.bf16.mxu0 0
        %3129 = vmatpush2.bf16.msra.mxu0 0
        %3130 = vmatprep.mubr.bf16.mxu0 0
        %3131 = vmatmul.mubr.bf16.gmra.mxu0 %v3096
        %v3132 = vpop.f32.mrf.mxu0
        %v3133 = vadd.f32 %v3048, %v3132
        %v3134 = vpop.f32.mrf.mxu0
        %v3135 = vadd.f32 %v3052, %v3134
        %v3136 = vpop.f32.mrf.mxu0
        %v3137 = vpop.f32.mrf.mxu0
        %3138 = vdwg.mxu0
        %v3139 = vadd.f32 %v2854, %v3133
        %v3140 = vadd.f32 %v2855, %v3135
        %v3141 = vld [vmem:[%s977] sm:$0x3]
        %v3142 = vld [vmem:[%s986] sm:$0x3]
        %v3143 = vadd.f32 %v3139, %v3140
        %3144 = vadd.xlane.f32.xlu0 %v3143
        %v3145 = vpop.xlane.xlu0 %3144
        %v3146 = vmul.f32 %v3145, %v2816
        %v3147 = vsub.f32 %v3139, %v3146
        %v3148 = vsub.f32 %v3140, %v3146
        %v3149 = vmul.f32 %v3147, %v3147
        %v3150 = vmul.f32 %v3148, %v3148
        %v3151 = vadd.f32 %v3149, %v3150
        %3152 = vadd.xlane.f32.xlu0 %v3151
        %v3153 = vpop.xlane.xlu0 %3152
        %v3154 = vmul.f32 %v3153, %v2816
        %v3155 = vadd.f32 %v3154, 1e-05
        %v3156 = vrsqrt.pop %v3155
        %v3157 = vmul.f32 %v3147, %v3156
        %v3158 = vmul.f32 %v3148, %v3156
        %v3160 = vlaneseq
        %v3161 = vshrl.u32 %v3160, 7
        %v3162 = vsub.s32 0, %v3161
        %v3163 = vrot.slane %v3141, %v3162
        %v3164 = vlaneseq
        %v3165 = vshrl.u32 %v3164, 7
        %v3166 = vsub.s32 1, %v3165
        %v3167 = vrot.slane %v3141, %v3166
        %v3170 = vmul.f32 %v3157, %v3163
        %v3171 = vmul.f32 %v3158, %v3167
        %v3173 = vlaneseq
        %v3174 = vshrl.u32 %v3173, 7
        %v3175 = vsub.s32 0, %v3174
        %v3176 = vrot.slane %v3142, %v3175
        %v3177 = vlaneseq
        %v3178 = vshrl.u32 %v3177, 7
        %v3179 = vsub.s32 1, %v3178
        %v3180 = vrot.slane %v3142, %v3179
        %v3183 = vadd.f32 %v3170, %v3176
        %v3184 = vadd.f32 %v3171, %v3180
        %3185 = vst [vmem:[#allocation2] sm:$0xff] %v3183
        %3186 = vst [vmem:[#allocation2 + $0x8] sm:$0xff] %v3184
        %p3187 = scmp.eq.s32.totalorder %s55, 1
        // Predicated region
        $region165: #{encoder_crf_forward.1} parent=103 // pred_check
          %p3188 = pneg %p3187
        $region166: #{encoder_crf_forward.1} parent=103 // pred_check_branch
          %3190 = sbr.rel (%p3188) target = $region168
        $region167: #{encoder_crf_forward.1} parent=103 // pred_region
          %v3191 = vld [vmem:[#allocation20] sm:$0x3]
          %v3192 = vld [vmem:[#allocation22] sm:$0x3]
          %v3193 = vadd.f32 %v3183, %v3184
          %3194 = vadd.xlane.f32.xlu0 %v3193
          %v3195 = vpop.xlane.xlu0 %3194
          %v3196 = vmul.f32 %v3195, %v2816
          %v3197 = vsub.f32 %v3183, %v3196
          %v3198 = vsub.f32 %v3184, %v3196
          %v3199 = vmul.f32 %v3197, %v3197
          %v3200 = vmul.f32 %v3198, %v3198
          %v3201 = vadd.f32 %v3199, %v3200
          %3202 = vadd.xlane.f32.xlu0 %v3201
          %v3203 = vpop.xlane.xlu0 %3202
          %v3204 = vmul.f32 %v3203, %v2816
          %v3205 = vadd.f32 %v3204, 1e-05
          %v3206 = vrsqrt.pop %v3205
          %v3207 = vmul.f32 %v3197, %v3206
          %v3208 = vmul.f32 %v3198, %v3206
          %v3210 = vlaneseq
          %v3211 = vshrl.u32 %v3210, 7
          %v3212 = vsub.s32 0, %v3211
          %v3213 = vrot.slane %v3191, %v3212
          %v3214 = vlaneseq
          %v3215 = vshrl.u32 %v3214, 7
          %v3216 = vsub.s32 1, %v3215
          %v3217 = vrot.slane %v3191, %v3216
          %v3220 = vmul.f32 %v3207, %v3213
          %v3221 = vmul.f32 %v3208, %v3217
          %v3223 = vlaneseq
          %v3224 = vshrl.u32 %v3223, 7
          %v3225 = vsub.s32 0, %v3224
          %v3226 = vrot.slane %v3192, %v3225
          %v3227 = vlaneseq
          %v3228 = vshrl.u32 %v3227, 7
          %v3229 = vsub.s32 1, %v3228
          %v3230 = vrot.slane %v3192, %v3229
          %v3233 = vadd.f32 %v3220, %v3226
          %v3234 = vadd.f32 %v3221, %v3230
          %v3235 = vpack.c.bf16 %v3233, %v3233
          %v3236 = vpack.c.bf16 %v3234, %v3234
          %v3237 = vld [vmem:[#allocation23] sm:$0xf]
          %v3238 = vld [vmem:[#allocation23 + $0x4] sm:$0xf]
          %v3239 = vld [vmem:[#allocation23 + $0x8] sm:$0xf]
          %v3240 = vld [vmem:[#allocation23 + $0xc] sm:$0xf]
          %v3241 = vld [vmem:[#allocation23 + $0x10] sm:$0xf]
          %v3242 = vld [vmem:[#allocation23 + $0x14] sm:$0xf]
          %v3243 = vld [vmem:[#allocation23 + $0x18] sm:$0xf]
          %v3244 = vld [vmem:[#allocation23 + $0x1c] sm:$0xf]
          %v3245 = vld [vmem:[#allocation23 + $0x20] sm:$0xf]
          %v3246 = vld [vmem:[#allocation23 + $0x24] sm:$0xf]
          %v3247 = vld [vmem:[#allocation23 + $0x28] sm:$0xf]
          %v3248 = vld [vmem:[#allocation23 + $0x2c] sm:$0xf]
          %v3249 = vld [vmem:[#allocation23 + $0x30] sm:$0xf]
          %v3250 = vld [vmem:[#allocation23 + $0x34] sm:$0xf]
          %v3251 = vld [vmem:[#allocation23 + $0x38] sm:$0xf]
          %v3252 = vld [vmem:[#allocation23 + $0x3c] sm:$0xf]
          %v3253 = vld [vmem:[#allocation23 + $0x40] sm:$0xf]
          %v3254 = vld [vmem:[#allocation23 + $0x44] sm:$0xf]
          %v3255 = vld [vmem:[#allocation23 + $0x48] sm:$0xf]
          %v3256 = vld [vmem:[#allocation23 + $0x4c] sm:$0xf]
          %v3257 = vld [vmem:[#allocation23 + $0x50] sm:$0xf]
          %v3258 = vld [vmem:[#allocation23 + $0x54] sm:$0xf]
          %v3259 = vld [vmem:[#allocation23 + $0x58] sm:$0xf]
          %v3260 = vld [vmem:[#allocation23 + $0x5c] sm:$0xf]
          %v3261 = vld [vmem:[#allocation23 + $0x60] sm:$0xf]
          %v3262 = vld [vmem:[#allocation23 + $0x64] sm:$0xf]
          %v3263 = vld [vmem:[#allocation23 + $0x68] sm:$0xf]
          %v3264 = vld [vmem:[#allocation23 + $0x6c] sm:$0xf]
          %v3265 = vld [vmem:[#allocation23 + $0x70] sm:$0xf]
          %v3266 = vld [vmem:[#allocation23 + $0x74] sm:$0xf]
          %v3267 = vld [vmem:[#allocation23 + $0x78] sm:$0xf]
          %v3268 = vld [vmem:[#allocation23 + $0x7c] sm:$0xf]
          %v3269 = vld [vmem:[%s20] sm:$0x1]
          %v3271 = vlaneseq
          %v3272 = vshrl.u32 %v3271, 7
          %v3273 = vsub.s32 0, %v3272
          %v3274 = vrot.slane %v3269, %v3273
          %v3308 = vunpack.c.l.b16 %v3237
          %v3309 = vunpack.c.l.b16 %v3238
          %v3310 = vunpack.c.l.b16 %v3239
          %v3311 = vunpack.c.l.b16 %v3240
          %v3312 = vunpack.c.l.b16 %v3241
          %v3313 = vunpack.c.l.b16 %v3242
          %v3314 = vunpack.c.l.b16 %v3243
          %v3315 = vunpack.c.l.b16 %v3244
          %v3316 = vunpack.c.l.b16 %v3245
          %v3317 = vunpack.c.l.b16 %v3246
          %v3318 = vunpack.c.l.b16 %v3247
          %v3319 = vunpack.c.l.b16 %v3248
          %v3320 = vunpack.c.l.b16 %v3249
          %v3321 = vunpack.c.l.b16 %v3250
          %v3322 = vunpack.c.l.b16 %v3251
          %v3323 = vunpack.c.l.b16 %v3252
          %v3324 = vunpack.c.l.b16 %v3253
          %v3325 = vunpack.c.l.b16 %v3254
          %v3326 = vunpack.c.l.b16 %v3255
          %v3327 = vunpack.c.l.b16 %v3256
          %v3328 = vunpack.c.l.b16 %v3257
          %v3329 = vunpack.c.l.b16 %v3258
          %v3330 = vunpack.c.l.b16 %v3259
          %v3331 = vunpack.c.l.b16 %v3260
          %v3332 = vunpack.c.l.b16 %v3261
          %v3333 = vunpack.c.l.b16 %v3262
          %v3334 = vunpack.c.l.b16 %v3263
          %v3335 = vunpack.c.l.b16 %v3264
          %v3336 = vunpack.c.l.b16 %v3265
          %v3337 = vunpack.c.l.b16 %v3266
          %v3338 = vunpack.c.l.b16 %v3267
          %v3339 = vunpack.c.l.b16 %v3268
          %v3340 = vpack.c.b16 %v3309, %v3308
          %v3341 = vpack.c.b16 %v3311, %v3310
          %v3342 = vpack.c.b16 %v3313, %v3312
          %v3343 = vpack.c.b16 %v3315, %v3314
          %v3344 = vpack.c.b16 %v3317, %v3316
          %v3345 = vpack.c.b16 %v3319, %v3318
          %v3346 = vpack.c.b16 %v3321, %v3320
          %v3347 = vpack.c.b16 %v3323, %v3322
          %v3348 = vpack.c.b16 %v3325, %v3324
          %v3349 = vpack.c.b16 %v3327, %v3326
          %v3350 = vpack.c.b16 %v3329, %v3328
          %v3351 = vpack.c.b16 %v3331, %v3330
          %v3352 = vpack.c.b16 %v3333, %v3332
          %v3353 = vpack.c.b16 %v3335, %v3334
          %v3354 = vpack.c.b16 %v3337, %v3336
          %v3355 = vpack.c.b16 %v3339, %v3338
          %3372 = vmatprep.subr.bf16.mxu0 0
          %3373 = vmatpush1.bf16.msra.mxu0 %v3347
          %3374 = vmatprep.subr.bf16.mxu0 0
          %3375 = vmatpush1.bf16.msra.mxu0 %v3346
          %3376 = vmatprep.subr.bf16.mxu0 0
          %3377 = vmatpush1.bf16.msra.mxu0 %v3345
          %3378 = vmatprep.subr.bf16.mxu0 0
          %3379 = vmatpush1.bf16.msra.mxu0 %v3344
          %3380 = vmatprep.subr.bf16.mxu0 0
          %3381 = vmatpush1.bf16.msra.mxu0 %v3343
          %3382 = vmatprep.subr.bf16.mxu0 0
          %3383 = vmatpush1.bf16.msra.mxu0 %v3342
          %3384 = vmatprep.subr.bf16.mxu0 0
          %3385 = vmatpush1.bf16.msra.mxu0 %v3341
          %3386 = vmatprep.subr.bf16.mxu0 0
          %3387 = vmatpush1.bf16.msra.mxu0 %v3340
          %3388 = vmatprep.subr.bf16.mxu0 0
          %3389 = vmatpush2.bf16.msra.mxu0 %v3355
          %3390 = vmatprep.subr.bf16.mxu0 0
          %3391 = vmatpush2.bf16.msra.mxu0 %v3354
          %3392 = vmatprep.subr.bf16.mxu0 0
          %3393 = vmatpush2.bf16.msra.mxu0 %v3353
          %3394 = vmatprep.subr.bf16.mxu0 0
          %3395 = vmatpush2.bf16.msra.mxu0 %v3352
          %3396 = vmatprep.subr.bf16.mxu0 0
          %3397 = vmatpush2.bf16.msra.mxu0 %v3351
          %3398 = vmatprep.subr.bf16.mxu0 0
          %3399 = vmatpush2.bf16.msra.mxu0 %v3350
          %3400 = vmatprep.subr.bf16.mxu0 0
          %3401 = vmatpush2.bf16.msra.mxu0 %v3349
          %3402 = vmatprep.subr.bf16.mxu0 0
          %3403 = vmatpush2.bf16.msra.mxu0 %v3348
          %3404 = vmatprep.mubr.bf16.mxu0 %v3236
          %3405 = vmatmul.mubr.bf16.gmra.mxu0 %v3235
          %v3406 = vpop.f32.mrf.mxu0
          %v3407 = vadd.f32 %v3274, %v3406
          %v3408 = vpop.f32.mrf.mxu0
          %v3409 = vpop.f32.mrf.mxu0
          %v3410 = vpop.f32.mrf.mxu0
          %3411 = vdwg.mxu0
          %3412 = vmax.xlane.f32.xlu0 %v3407
          %v3413 = vpop.xlane.xlu0 %3412
          %v3414 = vsub.f32 %v3407, %v3413
          %v3415 = vmul.f32 %v3414, 1.442695
          %v3416 = vpow.pop %v3415
          %3417 = vadd.xlane.f32.xlu0 %v3416
          %v3418 = vpop.xlane.xlu0 %3417
          %v3419 = vlog2.pop %v3418
          %v3420 = vmul.f32 %v3419, 0.6931472
          %v3421 = vadd.f32 %v3420, %v3413
          %v3422 = vsub.f32 %v3407, %v3421
          %3423 = vst [vmem:[%s1137] sm:$0xff] %v3422
        $region168: #{encoder_crf_forward.1} parent=103 // pred_fallthru
          _
        %p3424 = scmp.lt.s32.totalorder %s54, 1
        %s3425 = scalar_select %p3424, %s54, 1
        %s3426 = smul.addr %s3425, 8
        %s3427 = scalar_lea.vmem %s21, %s3426
        // Predicated region
        $region169: #{encoder_crf_forward.1} parent=103 // pred_check
          %p3428 = pneg %p591
        $region170: #{encoder_crf_forward.1} parent=103 // pred_check_branch
          %3430 = sbr.rel (%p3428) target = $region172
        $region171: #{encoder_crf_forward.1} parent=103 // pred_region
          _
        $region172: #{encoder_crf_forward.1} parent=103 // pred_fallthru
          _
      $region104: #{encoder_crf_forward.1} parent=5 // pred_fallthru
        _
      %p3431 = scmp.le.s32.totalorder 2, %s45
      // Predicated region
      $region173: #{encoder_crf_forward.1} parent=5 // pred_check
        %p3432 = pneg %p3431
      $region174: #{encoder_crf_forward.1} parent=5 // pred_check_branch
        %3434 = sbr.rel (%p3432) target = $region176
      $region175: #{encoder_crf_forward.1} parent=5 // pred_region
        %s3435 = ssub.s32 %s45, 2
        // Predicated region
        $region177: #{encoder_crf_forward.1} parent=175 // pred_check
          %p3436 = pneg %p597
        $region178: #{encoder_crf_forward.1} parent=175 // pred_check_branch
          %3438 = sbr.rel (%p3436) target = $region180
        $region179: #{encoder_crf_forward.1} parent=175 // pred_region
          %p3439 = scmp.lt.s32.totalorder %s56, 1
          %s3440 = scalar_select %p3439, %s56, 1
          %s3441 = smul.addr %s3440, 8
          %s3442 = scalar_lea.vmem %s21, %s3441
        $region180: #{encoder_crf_forward.1} parent=175 // pred_fallthru
          _
      $region176: #{encoder_crf_forward.1} parent=5 // pred_fallthru
        _
    $region6: #{encoder_crf_forward.1} parent=1 // loop_footer
      %s49 = sadd.s32 1, %s45
    $region7: #{encoder_crf_forward.1} parent=1 // loop_footer_branch
      %44 = sbr.rel target = $region3
    $region8: #{encoder_crf_forward.1} parent=1 // loop_exit
      _
    %3443 = vsyncpa [#allocation4], 1
    %s3444 = scalar_lea.sflag [#allocation4], 1
    %3445 = vsyncpa %s3444, 1
    %3446 = vsyncpa [#allocation6], 1
    %s3447 = scalar_lea.sflag [#allocation6], 1
    %3448 = vsyncpa %s3447, 1
    %3449 = vsyncpa [#allocation9], 1
    %s3450 = scalar_lea.sflag [#allocation9], 1
    %3451 = vsyncpa %s3450, 1
    %3452 = vsyncpa [#allocation12], 1
    %s3453 = scalar_lea.sflag [#allocation12], 1
    %3454 = vsyncpa %s3453, 1
    %3455 = vsyncpa [#allocation15], 1
    %s3456 = scalar_lea.sflag [#allocation15], 1
    %3457 = vsyncpa %s3456, 1
    %3458 = vsyncpa [#allocation18], 1
    %s3459 = scalar_lea.sflag [#allocation18], 1
    %3460 = vsyncpa %s3459, 1
    %3461 = vsyncpa [#allocation21], 1
    %3462 = vsyncpa [#allocation24], 1

</llo_original>
